<compile_context>
chip_gen: v7x
topology: tpu7x:2x2x1
jax: 0.10.0
libtpu: 0.0.40
codegen_flags: <defaults>
</compile_context>

<pallas_src>
import jax
import jax.numpy as jnp
from jax.experimental import pallas as pl
from jax.experimental.pallas import tpu as pltpu


IN_DIM = 100   # latent dim
HID = 784
OUT_DIM = 784


def _g_kernel(x_ref, w1_ref, b1_ref, w2_ref, b2_ref, w3_ref, b3_ref, o_ref):
    """Fused 3-layer generator forward for one batch tile."""
    # Cast x to bf16 in-register for the MXU (no separate wrapper cast pass).
    x = x_ref[...].astype(jnp.bfloat16)                                  # (tile_b, 100)

    h1 = jnp.dot(x, w1_ref[...], preferred_element_type=jnp.float32) + b1_ref[...]
    h1 = jnp.maximum(h1, 0.0).astype(jnp.bfloat16)      # fused bias+relu+cast; bf16 MXU inputs

    h2 = jnp.dot(h1, w2_ref[...], preferred_element_type=jnp.float32) + b2_ref[...]
    h2 = jnp.maximum(h2, 0.0).astype(jnp.bfloat16)

    h3 = jnp.dot(h2, w3_ref[...], preferred_element_type=jnp.float32) + b3_ref[...]
    if o_ref.dtype == jnp.bfloat16:
        # bf16 tanh uses the bf16 EUP on v6e/v7x and halves output writeback bytes.
        o_ref[...] = jnp.tanh(h3.astype(jnp.bfloat16))
    else:
        o_ref[...] = jnp.tanh(h3).astype(o_ref.dtype)                    # (tile_b, 784)


def _resident(shape):
    """Constant-index, VMEM-resident spec: DMA'd once, single pipeline buffer."""
    return pl.BlockSpec(shape, lambda i: (0,) * len(shape),
                        pipeline_mode=pl.Buffered(1))


def _choose_tile_b(B, requested=None):
    """Batch-tile heuristic:
      - big tiles (target 512, multiple of 128) to amortize the ~0.35us/step
        pipeline overhead without flipping v5e into a store-bound regime;
      - at least 2 tiles when B >= 256 so v7x's two TensorCores both get work;
      - a single full-batch tile for small B.
    """
    if requested is not None:
        return max(1, min(requested, B))
    if B < 256:
        return B                              # single tile; too small to split usefully
    tile = min(512, pl.cdiv(B, 2))            # >= 2 tiles, capped at 512
    tile = max(128, (tile // 128) * 128)      # 128-aligned for the MXU M dimension
    return tile


def prepare_params(params):
    """One-time conversion for the hot path (call once, reuse every step):
    weights -> bf16 (halves weight DMA traffic, doubles MXU rate), biases f32."""
    (w1, b1), (w2, b2), (w3, b3) = params
    return (w1.astype(jnp.bfloat16), b1.astype(jnp.float32),
            w2.astype(jnp.bfloat16), b2.astype(jnp.float32),
            w3.astype(jnp.bfloat16), b3.astype(jnp.float32))


def g_forward(x, prepared_params, *, out_dtype=jnp.float32, tile_b=None):
    """Pallas implementation of G.forward. x: (B, 100) -> (B, 784) out_dtype."""
    w1, b1, w2, b2, w3, b3 = prepared_params
    B = x.shape[0]
    tb = _choose_tile_b(B, tile_b)
    grid = (pl.cdiv(B, tb),)

    flops = 2 * B * (IN_DIM * HID + HID * HID + HID * OUT_DIM)
    bytes_accessed = (x.size * x.dtype.itemsize
                      + (w1.size + w2.size + w3.size) * 2
                      + (b1.size + b2.size + b3.size) * 4
                      + B * OUT_DIM * jnp.dtype(out_dtype).itemsize)

    return pl.pallas_call(
        _g_kernel,
        out_shape=jax.ShapeDtypeStruct((B, OUT_DIM), out_dtype),
        grid=grid,
        in_specs=[
            pl.BlockSpec((tb, IN_DIM), lambda i: (i, 0)),   # x: batch-tiled, pipelined
            _resident(w1.shape), _resident(b1.shape),
            _resident(w2.shape), _resident(b2.shape),
            _resident(w3.shape), _resident(b3.shape),
        ],
        out_specs=pl.BlockSpec((tb, OUT_DIM), lambda i: (i, 0)),
        compiler_params=pltpu.CompilerParams(
            # Parallel batch axis -> shards tiles across both TCs on v7x.
            dimension_semantics=("parallel",),
            # Working set ~10-14 MiB even at tile_b=512; fits v7x's scoped default.
            vmem_limit_bytes=32 << 20,
        ),
        cost_estimate=pl.CostEstimate(
            flops=flops, transcendentals=B * OUT_DIM, bytes_accessed=bytes_accessed),
    )(x, w1, b1, w2, b2, w3, b3)


def init_params(key):
    """Deterministic init mimicking PyTorch nn.Linear default U[-1/sqrt(in), 1/sqrt(in)].

    Weights stored as (in_features, out_features); biases as (1, out_features).
    """
    dims = [(IN_DIM, HID), (HID, HID), (HID, OUT_DIM)]
    params = []
    for fan_in, fan_out in dims:
        key, kw, kb = jax.random.split(key, 3)
        bound = 1.0 / (fan_in ** 0.5)
        w = jax.random.uniform(kw, (fan_in, fan_out), jnp.float32, -bound, bound)
        b = jax.random.uniform(kb, (1, fan_out), jnp.float32, -bound, bound)
        params.append((w, b))
    return params


def reference_forward(x, params):
    """Pure-JAX reference mirroring the kernel's bf16-matmul-input / f32-accumulate path."""
    (w1, b1), (w2, b2), (w3, b3) = params
    bf = lambda a: a.astype(jnp.bfloat16)
    mm = lambda a, w: jnp.dot(bf(a), bf(w), preferred_element_type=jnp.float32)
    h = jnp.maximum(mm(x, w1) + b1, 0.0)
    h = jnp.maximum(mm(h, w2) + b2, 0.0)
    return jnp.tanh(mm(h, w3) + b3)


if __name__ == "__main__":
    key = jax.random.PRNGKey(0)
    key, kx = jax.random.split(key)

    params = init_params(key)
    prepared = prepare_params(params)   # hoisted one-time f32->bf16 weight cast

    # 1) Small smoke test (single tile), f32 output.
    B = 8
    x = jax.random.normal(kx, (B, IN_DIM), jnp.float32)
    out = jax.block_until_ready(g_forward(x, prepared))
    ref = reference_forward(x, params)
    assert out.shape == (B, OUT_DIM), out.shape
    assert jnp.allclose(out, ref, atol=2e-3, rtol=2e-3), float(jnp.max(jnp.abs(out - ref)))

    # 2) Multi-tile + ragged last tile (exercises the >=2-tile split used on v7x).
    B2 = 300
    x2 = jax.random.normal(jax.random.PRNGKey(1), (B2, IN_DIM), jnp.float32)
    out2 = jax.block_until_ready(g_forward(x2, prepared))
    ref2 = reference_forward(x2, params)
    assert out2.shape == (B2, OUT_DIM), out2.shape
    assert jnp.allclose(out2, ref2, atol=2e-3, rtol=2e-3), float(jnp.max(jnp.abs(out2 - ref2)))

    # 3) bf16 output path (halves writeback; relevant on v6e).
    out_bf = jax.block_until_ready(g_forward(x, prepared, out_dtype=jnp.bfloat16))
    assert out_bf.dtype == jnp.bfloat16
    assert jnp.allclose(out_bf.astype(jnp.float32), ref, atol=2e-2, rtol=2e-2)

    print("KERNEL_OK")
</pallas_src>

<mosaic_0001>
module attributes {stable_mosaic.version = 11 : i64} {
  func.func @_g_kernel(%arg0: i32, %arg1: memref<8x100xf32, #tpu.memory_space<vmem>>, %arg2: memref<100x784xbf16, #tpu.memory_space<vmem>>, %arg3: memref<1x784xf32, #tpu.memory_space<vmem>>, %arg4: memref<784x784xbf16, #tpu.memory_space<vmem>>, %arg5: memref<1x784xf32, #tpu.memory_space<vmem>>, %arg6: memref<784x784xbf16, #tpu.memory_space<vmem>>, %arg7: memref<1x784xf32, #tpu.memory_space<vmem>>, %arg8: memref<8x784xf32, #tpu.memory_space<vmem>>) attributes {dimension_semantics = [#tpu.dimension_semantics<parallel>], iteration_bounds = array<i64: 1>, scalar_prefetch = 0 : i64, scratch_operands = 0 : i64, tpu.core_type = #tpu.core_type<tc>, window_params = [{transform_indices = @transform_0, window_bounds = array<i64: 8, 100>}, {pipeline_mode = #tpu.pipeline_mode<synchronous>, transform_indices = @transform_1, window_bounds = array<i64: 100, 784>}, {pipeline_mode = #tpu.pipeline_mode<synchronous>, transform_indices = @transform_2, window_bounds = array<i64: 1, 784>}, {pipeline_mode = #tpu.pipeline_mode<synchronous>, transform_indices = @transform_3, window_bounds = array<i64: 784, 784>}, {pipeline_mode = #tpu.pipeline_mode<synchronous>, transform_indices = @transform_4, window_bounds = array<i64: 1, 784>}, {pipeline_mode = #tpu.pipeline_mode<synchronous>, transform_indices = @transform_5, window_bounds = array<i64: 784, 784>}, {pipeline_mode = #tpu.pipeline_mode<synchronous>, transform_indices = @transform_6, window_bounds = array<i64: 1, 784>}, {transform_indices = @transform_7, window_bounds = array<i64: 8, 784>}]} {
    %c0 = arith.constant 0 : index
    %c0_0 = arith.constant 0 : index
    %0 = vector.load %arg1[%c0, %c0_0] : memref<8x100xf32, #tpu.memory_space<vmem>>, vector<8x100xf32>
    %1 = arith.truncf %0 : vector<8x100xf32> to vector<8x100xbf16>
    %c0_1 = arith.constant 0 : index
    %c0_2 = arith.constant 0 : index
    %2 = vector.load %arg2[%c0_1, %c0_2] : memref<100x784xbf16, #tpu.memory_space<vmem>>, vector<100x784xbf16>
    %cst = arith.constant dense<0.000000e+00> : vector<8x784xf32>
    %3 = tpu.matmul %1, %2, %cst {dimension_numbers = #tpu.dot_dimension_numbers<[1], [0], [0], [1], [0, 0, 1, 1], [], []>} : vector<8x100xbf16>, vector<100x784xbf16>, vector<8x784xf32> -> vector<8x784xf32>
    %c0_3 = arith.constant 0 : index
    %c0_4 = arith.constant 0 : index
    %4 = vector.load %arg3[%c0_3, %c0_4] : memref<1x784xf32, #tpu.memory_space<vmem>>, vector<1x784xf32>
    %5 = vector.broadcast %4 : vector<1x784xf32> to vector<8x784xf32>
    %6 = arith.addf %3, %5 : vector<8x784xf32>
    %cst_5 = arith.constant 0.000000e+00 : f32
    %7 = vector.broadcast %cst_5 : f32 to vector<8x784xf32>
    %8 = arith.maximumf %6, %7 : vector<8x784xf32>
    %9 = arith.truncf %8 : vector<8x784xf32> to vector<8x784xbf16>
    %c0_6 = arith.constant 0 : index
    %c0_7 = arith.constant 0 : index
    %10 = vector.load %arg4[%c0_6, %c0_7] : memref<784x784xbf16, #tpu.memory_space<vmem>>, vector<784x784xbf16>
    %cst_8 = arith.constant dense<0.000000e+00> : vector<8x784xf32>
    %11 = tpu.matmul %9, %10, %cst_8 {dimension_numbers = #tpu.dot_dimension_numbers<[1], [0], [0], [1], [0, 0, 1, 1], [], []>} : vector<8x784xbf16>, vector<784x784xbf16>, vector<8x784xf32> -> vector<8x784xf32>
    %c0_9 = arith.constant 0 : index
    %c0_10 = arith.constant 0 : index
    %12 = vector.load %arg5[%c0_9, %c0_10] : memref<1x784xf32, #tpu.memory_space<vmem>>, vector<1x784xf32>
    %13 = vector.broadcast %12 : vector<1x784xf32> to vector<8x784xf32>
    %14 = arith.addf %11, %13 : vector<8x784xf32>
    %cst_11 = arith.constant 0.000000e+00 : f32
    %15 = vector.broadcast %cst_11 : f32 to vector<8x784xf32>
    %16 = arith.maximumf %14, %15 : vector<8x784xf32>
    %17 = arith.truncf %16 : vector<8x784xf32> to vector<8x784xbf16>
    %c0_12 = arith.constant 0 : index
    %c0_13 = arith.constant 0 : index
    %18 = vector.load %arg6[%c0_12, %c0_13] : memref<784x784xbf16, #tpu.memory_space<vmem>>, vector<784x784xbf16>
    %cst_14 = arith.constant dense<0.000000e+00> : vector<8x784xf32>
    %19 = tpu.matmul %17, %18, %cst_14 {dimension_numbers = #tpu.dot_dimension_numbers<[1], [0], [0], [1], [0, 0, 1, 1], [], []>} : vector<8x784xbf16>, vector<784x784xbf16>, vector<8x784xf32> -> vector<8x784xf32>
    %c0_15 = arith.constant 0 : index
    %c0_16 = arith.constant 0 : index
    %20 = vector.load %arg7[%c0_15, %c0_16] : memref<1x784xf32, #tpu.memory_space<vmem>>, vector<1x784xf32>
    %21 = vector.broadcast %20 : vector<1x784xf32> to vector<8x784xf32>
    %22 = arith.addf %19, %21 : vector<8x784xf32>
    %23 = math.tanh %22 : vector<8x784xf32>
    %c0_17 = arith.constant 0 : index
    %c0_18 = arith.constant 0 : index
    %24 = vector.load %arg8[%c0_17, %c0_18] : memref<8x784xf32, #tpu.memory_space<vmem>>, vector<8x784xf32>
    tpu.vector_store %arg8[%c0_17, %c0_18], %23 {strides = array<i32>} : memref<8x784xf32, #tpu.memory_space<vmem>>, vector<8x784xf32>,
    return
  }
  func.func @transform_0(%arg0: i32) -> (i32, i32) {
    %c0_i32 = arith.constant 0 : i32
    %c0_i32_0 = arith.constant 0 : i32
    return %arg0, %c0_i32 : i32, i32
  }
  func.func @transform_1(%arg0: i32) -> (i32, i32) {
    %c0_i32 = arith.constant 0 : i32
    %c0_i32_0 = arith.constant 0 : i32
    %c0_i32_1 = arith.constant 0 : i32
    return %c0_i32, %c0_i32_0 : i32, i32
  }
  func.func @transform_2(%arg0: i32) -> (i32, i32) {
    %c0_i32 = arith.constant 0 : i32
    %c0_i32_0 = arith.constant 0 : i32
    %c0_i32_1 = arith.constant 0 : i32
    return %c0_i32, %c0_i32_0 : i32, i32
  }
  func.func @transform_3(%arg0: i32) -> (i32, i32) {
    %c0_i32 = arith.constant 0 : i32
    %c0_i32_0 = arith.constant 0 : i32
    %c0_i32_1 = arith.constant 0 : i32
    return %c0_i32, %c0_i32_0 : i32, i32
  }
  func.func @transform_4(%arg0: i32) -> (i32, i32) {
    %c0_i32 = arith.constant 0 : i32
    %c0_i32_0 = arith.constant 0 : i32
    %c0_i32_1 = arith.constant 0 : i32
    return %c0_i32, %c0_i32_0 : i32, i32
  }
  func.func @transform_5(%arg0: i32) -> (i32, i32) {
    %c0_i32 = arith.constant 0 : i32
    %c0_i32_0 = arith.constant 0 : i32
    %c0_i32_1 = arith.constant 0 : i32
    return %c0_i32, %c0_i32_0 : i32, i32
  }
  func.func @transform_6(%arg0: i32) -> (i32, i32) {
    %c0_i32 = arith.constant 0 : i32
    %c0_i32_0 = arith.constant 0 : i32
    %c0_i32_1 = arith.constant 0 : i32
    return %c0_i32, %c0_i32_0 : i32, i32
  }
  func.func @transform_7(%arg0: i32) -> (i32, i32) {
    %c0_i32 = arith.constant 0 : i32
    %c0_i32_0 = arith.constant 0 : i32
    return %arg0, %c0_i32 : i32, i32
  }
}

</mosaic_0001>

<llo_original>
// kernel: tpu_custom_call.1
$region0: #{tpu_custom_call.1}
  #allocation0 [shape = 'u32[]', space=smem, size = 0x4, offset = 0x4, fixed_abs, tag = 'smem constant byte address 0x4 - core index']
  #allocation1 [shape = 'u32[144,128]{1,0:T(1,128)}', space=vmem, size = 0x12000, scoped, tag = 'internal scratch']
  %s0 = inlined_call_operand.hbm [shape: f32[8,100], index: 0, kind: input, shape index: {}]
  %s1 = inlined_call_operand.hbm [shape: bf16[100,784], index: 1, kind: input, shape index: {}]
  %s2 = inlined_call_operand.hbm [shape: f32[1,784], index: 2, kind: input, shape index: {}]
  %s3 = inlined_call_operand.hbm [shape: bf16[784,784], index: 3, kind: input, shape index: {}]
  %s4 = inlined_call_operand.hbm [shape: f32[1,784], index: 4, kind: input, shape index: {}]
  %s5 = inlined_call_operand.hbm [shape: bf16[784,784], index: 5, kind: input, shape index: {}]
  %s6 = inlined_call_operand.hbm [shape: f32[1,784], index: 6, kind: input, shape index: {}]
  %s7 = inlined_call_operand.hbm [shape: f32[8,784], index: 7, kind: output, shape index: {}]
  %s8 = sld [smem:[#allocation0]]
  $region66: #{tpu_custom_call.1} parent=0
    _
  %s10 = ssub.s32 1, %s8
  %s11 = scalar_select 0, %s10, %s8
  $region1: #{tpu_custom_call.1} parent=0
    #allocation2 [shape = 'u8[4096]{0}', space=vmem, size = 0x1000, scoped, tag = 'input window, operand 0, single buffered']
    #allocation3 [shape = 's32[1]{0}', space=sflag, size = 0x4, scoped, tag = 'scoped memory for tpu_custom_call.1']
    #allocation4 [shape = 's32[1]{0}', space=sflag, size = 0x4, scoped, tag = 'scoped memory for tpu_custom_call.1']
    #allocation5 [shape = 'u8[186368]{0}', space=vmem, size = 0x2d800, scoped, tag = 'input window, operand 1, single buffered']
    #allocation6 [shape = 's32[1]{0}', space=sflag, size = 0x4, scoped, tag = 'scoped memory for tpu_custom_call.1']
    #allocation7 [shape = 'u8[3584]{0}', space=vmem, size = 0x1000, scoped, tag = 'input window, operand 2, single buffered']
    #allocation8 [shape = 'u8[1404928]{0}', space=vmem, size = 0x157000, scoped, tag = 'input window, operand 3, single buffered']
    #allocation9 [shape = 's32[1]{0}', space=sflag, size = 0x4, scoped, tag = 'scoped memory for tpu_custom_call.1']
    #allocation10 [shape = 'u8[3584]{0}', space=vmem, size = 0x1000, scoped, tag = 'input window, operand 4, single buffered']
    #allocation11 [shape = 'u8[1404928]{0}', space=vmem, size = 0x157000, scoped, tag = 'input window, operand 5, single buffered']
    #allocation12 [shape = 's32[1]{0}', space=sflag, size = 0x4, scoped, tag = 'scoped memory for tpu_custom_call.1']
    #allocation13 [shape = 'u8[3584]{0}', space=vmem, size = 0x1000, scoped, tag = 'input window, operand 6, single buffered']
    #allocation14 [shape = 'u8[28672]{0}', space=vmem, size = 0x7000, scoped, tag = 'output window, operand 0, single buffered']
    %12 = vsyncpa [#allocation3], 0
    %13 = vsyncpa [#allocation6], 0
    %14 = vsyncpa [#allocation9], 0
    %15 = vsyncpa [#allocation12], 0
    %16 = vsyncpa [#allocation4], 0
    // Predicated region
    $region2: #{tpu_custom_call.1} parent=1 // pred_check
      _
    $region3: #{tpu_custom_call.1} parent=1 // pred_check_branch
      %18 = sbr.rel (0) target = $region5
    $region4: #{tpu_custom_call.1} parent=1 // pred_region
      %s20 = ssub.s32 128, 128
      %21 = vsyncadd [#allocation3], %s20
      %s23 = sshll.u32 [#allocation2], 4
      %s24 = int_to_ptr.vmem [resolvable:$true] %s23
      %26 = dma.hbm_to_vmem [thread:$0]  %s0, 128, %s24, [#allocation3]
    $region5: #{tpu_custom_call.1} parent=1 // pred_fallthru
      _
    // Predicated region
    $region6: #{tpu_custom_call.1} parent=1 // pred_check
      _
    $region7: #{tpu_custom_call.1} parent=1 // pred_check_branch
      %28 = sbr.rel (0) target = $region9
    $region8: #{tpu_custom_call.1} parent=1 // pred_region
      %s30 = ssub.s32 5824, 5824
      %31 = vsyncadd [#allocation6], %s30
      %s32 = sshll.u32 [#allocation5], 4
      %s33 = int_to_ptr.vmem [resolvable:$true] %s32
      %38 = dma.hbm_to_vmem [thread:$0]  %s1, 5824, %s33, [#allocation6], 448, 448, 28
    $region9: #{tpu_custom_call.1} parent=1 // pred_fallthru
      _
    // Predicated region
    $region10: #{tpu_custom_call.1} parent=1 // pred_check
      _
    $region11: #{tpu_custom_call.1} parent=1 // pred_check_branch
      %40 = sbr.rel (0) target = $region13
    $region12: #{tpu_custom_call.1} parent=1 // pred_region
      %s42 = ssub.s32 112, 112
      %43 = vsyncadd [#allocation6], %s42
      %s45 = sshll.u32 [#allocation7], 4
      %s46 = int_to_ptr.vmem [resolvable:$true] %s45
      %48 = dma.hbm_to_vmem [thread:$0]  %s2, 112, %s46, [#allocation6]
    $region13: #{tpu_custom_call.1} parent=1 // pred_fallthru
      _
    // Predicated region
    $region14: #{tpu_custom_call.1} parent=1 // pred_check
      _
    $region15: #{tpu_custom_call.1} parent=1 // pred_check_branch
      %50 = sbr.rel (0) target = $region17
    $region16: #{tpu_custom_call.1} parent=1 // pred_region
      %s52 = ssub.s32 43904, 43904
      %53 = vsyncadd [#allocation9], %s52
      %s54 = sshll.u32 [#allocation8], 4
      %s55 = int_to_ptr.vmem [resolvable:$true] %s54
      %60 = dma.hbm_to_vmem [thread:$0]  %s3, 43904, %s55, [#allocation9], 448, 448, 28
    $region17: #{tpu_custom_call.1} parent=1 // pred_fallthru
      _
    // Predicated region
    $region18: #{tpu_custom_call.1} parent=1 // pred_check
      _
    $region19: #{tpu_custom_call.1} parent=1 // pred_check_branch
      %62 = sbr.rel (0) target = $region21
    $region20: #{tpu_custom_call.1} parent=1 // pred_region
      %s64 = ssub.s32 112, 112
      %65 = vsyncadd [#allocation9], %s64
      %s67 = sshll.u32 [#allocation10], 4
      %s68 = int_to_ptr.vmem [resolvable:$true] %s67
      %70 = dma.hbm_to_vmem [thread:$0]  %s4, 112, %s68, [#allocation9]
    $region21: #{tpu_custom_call.1} parent=1 // pred_fallthru
      _
    // Predicated region
    $region22: #{tpu_custom_call.1} parent=1 // pred_check
      _
    $region23: #{tpu_custom_call.1} parent=1 // pred_check_branch
      %72 = sbr.rel (0) target = $region25
    $region24: #{tpu_custom_call.1} parent=1 // pred_region
      %s74 = ssub.s32 43904, 43904
      %75 = vsyncadd [#allocation12], %s74
      %s76 = sshll.u32 [#allocation11], 4
      %s77 = int_to_ptr.vmem [resolvable:$true] %s76
      %82 = dma.hbm_to_vmem [thread:$0]  %s5, 43904, %s77, [#allocation12], 448, 448, 28
    $region25: #{tpu_custom_call.1} parent=1 // pred_fallthru
      _
    // Predicated region
    $region26: #{tpu_custom_call.1} parent=1 // pred_check
      _
    $region27: #{tpu_custom_call.1} parent=1 // pred_check_branch
      %84 = sbr.rel (0) target = $region29
    $region28: #{tpu_custom_call.1} parent=1 // pred_region
      %s86 = ssub.s32 112, 112
      %87 = vsyncadd [#allocation12], %s86
      %s89 = sshll.u32 [#allocation13], 4
      %s90 = int_to_ptr.vmem [resolvable:$true] %s89
      %92 = dma.hbm_to_vmem [thread:$0]  %s6, 112, %s90, [#allocation12]
    $region29: #{tpu_custom_call.1} parent=1 // pred_fallthru
      _
    // Predicated region
    $region30: #{tpu_custom_call.1} parent=1 // pred_check
      _
    $region31: #{tpu_custom_call.1} parent=1 // pred_check_branch
      %94 = sbr.rel (0) target = $region33
    $region32: #{tpu_custom_call.1} parent=1 // pred_region
      %95 = dma.done [#allocation3], 128
    $region33: #{tpu_custom_call.1} parent=1 // pred_fallthru
      _
    // Predicated region
    $region34: #{tpu_custom_call.1} parent=1 // pred_check
      _
    $region35: #{tpu_custom_call.1} parent=1 // pred_check_branch
      %97 = sbr.rel (0) target = $region37
    $region36: #{tpu_custom_call.1} parent=1 // pred_region
      %98 = dma.done [#allocation6], 5824
    $region37: #{tpu_custom_call.1} parent=1 // pred_fallthru
      _
    // Predicated region
    $region38: #{tpu_custom_call.1} parent=1 // pred_check
      _
    $region39: #{tpu_custom_call.1} parent=1 // pred_check_branch
      %100 = sbr.rel (0) target = $region41
    $region40: #{tpu_custom_call.1} parent=1 // pred_region
      %101 = dma.done [#allocation6], 112
    $region41: #{tpu_custom_call.1} parent=1 // pred_fallthru
      _
    // Predicated region
    $region42: #{tpu_custom_call.1} parent=1 // pred_check
      _
    $region43: #{tpu_custom_call.1} parent=1 // pred_check_branch
      %103 = sbr.rel (0) target = $region45
    $region44: #{tpu_custom_call.1} parent=1 // pred_region
      %104 = dma.done [#allocation9], 43904
    $region45: #{tpu_custom_call.1} parent=1 // pred_fallthru
      _
    // Predicated region
    $region46: #{tpu_custom_call.1} parent=1 // pred_check
      _
    $region47: #{tpu_custom_call.1} parent=1 // pred_check_branch
      %106 = sbr.rel (0) target = $region49
    $region48: #{tpu_custom_call.1} parent=1 // pred_region
      %107 = dma.done [#allocation9], 112
    $region49: #{tpu_custom_call.1} parent=1 // pred_fallthru
      _
    // Predicated region
    $region50: #{tpu_custom_call.1} parent=1 // pred_check
      _
    $region51: #{tpu_custom_call.1} parent=1 // pred_check_branch
      %109 = sbr.rel (0) target = $region53
    $region52: #{tpu_custom_call.1} parent=1 // pred_region
      %110 = dma.done [#allocation12], 43904
    $region53: #{tpu_custom_call.1} parent=1 // pred_fallthru
      _
    // Predicated region
    $region54: #{tpu_custom_call.1} parent=1 // pred_check
      _
    $region55: #{tpu_custom_call.1} parent=1 // pred_check_branch
      %112 = sbr.rel (0) target = $region57
    $region56: #{tpu_custom_call.1} parent=1 // pred_region
      %113 = dma.done [#allocation12], 112
    $region57: #{tpu_custom_call.1} parent=1 // pred_fallthru
      _
    %v115 = vld [vmem:[#allocation2] sm:$0xff]
    %v116 = vpack.c.bf16 %v115, %v115
    %v117 = vld [vmem:[#allocation5] sm:$0xff]
    %v118 = vld [vmem:[#allocation5 + $0x8] sm:$0xff]
    %v119 = vld [vmem:[#allocation5 + $0x10] sm:$0xff]
    %v120 = vld [vmem:[#allocation5 + $0x18] sm:$0xf]
    %v121 = vld [vmem:[#allocation5 + $0x1c] sm:$0xff]
    %v122 = vld [vmem:[#allocation5 + $0x24] sm:$0xff]
    %v123 = vld [vmem:[#allocation5 + $0x2c] sm:$0xff]
    %v124 = vld [vmem:[#allocation5 + $0x34] sm:$0xf]
    %v125 = vld [vmem:[#allocation5 + $0x38] sm:$0xff]
    %v126 = vld [vmem:[#allocation5 + $0x40] sm:$0xff]
    %v127 = vld [vmem:[#allocation5 + $0x48] sm:$0xff]
    %v128 = vld [vmem:[#allocation5 + $0x50] sm:$0xf]
    %v129 = vld [vmem:[#allocation5 + $0x54] sm:$0xff]
    %v130 = vld [vmem:[#allocation5 + $0x5c] sm:$0xff]
    %v131 = vld [vmem:[#allocation5 + $0x64] sm:$0xff]
    %v132 = vld [vmem:[#allocation5 + $0x6c] sm:$0xf]
    %v133 = vld [vmem:[#allocation5 + $0x70] sm:$0xff]
    %v134 = vld [vmem:[#allocation5 + $0x78] sm:$0xff]
    %v135 = vld [vmem:[#allocation5 + $0x80] sm:$0xff]
    %v136 = vld [vmem:[#allocation5 + $0x88] sm:$0xf]
    %v137 = vld [vmem:[#allocation5 + $0x8c] sm:$0xff]
    %v138 = vld [vmem:[#allocation5 + $0x94] sm:$0xff]
    %v139 = vld [vmem:[#allocation5 + $0x9c] sm:$0xff]
    %v140 = vld [vmem:[#allocation5 + $0xa4] sm:$0xf]
    %v141 = vld [vmem:[#allocation5 + $0xa8] sm:$0xff]
    %v142 = vld [vmem:[#allocation5 + $0xb0] sm:$0xff]
    %v143 = vld [vmem:[#allocation5 + $0xb8] sm:$0xff]
    %v144 = vld [vmem:[#allocation5 + $0xc0] sm:$0xf]
    %v145 = vld [vmem:[#allocation5 + $0xc4] sm:$0xff]
    %v146 = vld [vmem:[#allocation5 + $0xcc] sm:$0xff]
    %v147 = vld [vmem:[#allocation5 + $0xd4] sm:$0xff]
    %v148 = vld [vmem:[#allocation5 + $0xdc] sm:$0xf]
    %v149 = vld [vmem:[#allocation5 + $0xe0] sm:$0xff]
    %v150 = vld [vmem:[#allocation5 + $0xe8] sm:$0xff]
    %v151 = vld [vmem:[#allocation5 + $0xf0] sm:$0xff]
    %v152 = vld [vmem:[#allocation5 + $0xf8] sm:$0xf]
    %v153 = vld [vmem:[#allocation5 + $0xfc] sm:$0xff]
    %v154 = vld [vmem:[#allocation5 + $0x104] sm:$0xff]
    %v155 = vld [vmem:[#allocation5 + $0x10c] sm:$0xff]
    %v156 = vld [vmem:[#allocation5 + $0x114] sm:$0xf]
    %v157 = vld [vmem:[#allocation5 + $0x118] sm:$0xff]
    %v158 = vld [vmem:[#allocation5 + $0x120] sm:$0xff]
    %v159 = vld [vmem:[#allocation5 + $0x128] sm:$0xff]
    %v160 = vld [vmem:[#allocation5 + $0x130] sm:$0xf]
    %v161 = vld [vmem:[#allocation5 + $0x134] sm:$0xff]
    %v162 = vld [vmem:[#allocation5 + $0x13c] sm:$0xff]
    %v163 = vld [vmem:[#allocation5 + $0x144] sm:$0xff]
    %v164 = vld [vmem:[#allocation5 + $0x14c] sm:$0xf]
    %v165 = vld [vmem:[#allocation5 + $0x150] sm:$0x33]
    %v166 = vld [vmem:[#allocation5 + $0x158] sm:$0x33]
    %v167 = vld [vmem:[#allocation5 + $0x160] sm:$0x33]
    %v168 = vld [vmem:[#allocation5 + $0x168] sm:$0x3]
    %v169 = vld [vmem:[#allocation7] sm:$0x7f]
    %v171 = vlaneseq
    %v172 = vshrl.u32 %v171, 7
    %v173 = vsub.s32 0, %v172
    %v174 = vrot.slane %v169, %v173
    %v175 = vlaneseq
    %v176 = vshrl.u32 %v175, 7
    %v177 = vsub.s32 1, %v176
    %v178 = vrot.slane %v169, %v177
    %v179 = vlaneseq
    %v180 = vshrl.u32 %v179, 7
    %v181 = vsub.s32 2, %v180
    %v182 = vrot.slane %v169, %v181
    %v183 = vlaneseq
    %v184 = vshrl.u32 %v183, 7
    %v185 = vsub.s32 3, %v184
    %v186 = vrot.slane %v169, %v185
    %v187 = vlaneseq
    %v188 = vshrl.u32 %v187, 7
    %v189 = vsub.s32 4, %v188
    %v190 = vrot.slane %v169, %v189
    %v191 = vlaneseq
    %v192 = vshrl.u32 %v191, 7
    %v193 = vsub.s32 5, %v192
    %v194 = vrot.slane %v169, %v193
    %v195 = vlaneseq
    %v196 = vshrl.u32 %v195, 7
    %v197 = vsub.s32 6, %v196
    %v198 = vrot.slane %v169, %v197
    %v258 = vunpack.c.l.b16 %v117
    %v259 = vunpack.c.h.b16 %v117
    %v260 = vunpack.c.l.b16 %v118
    %v261 = vunpack.c.h.b16 %v118
    %v262 = vunpack.c.l.b16 %v119
    %v263 = vunpack.c.h.b16 %v119
    %v264 = vunpack.c.l.b16 %v120
    %v265 = vunpack.c.l.b16 %v121
    %v266 = vunpack.c.h.b16 %v121
    %v267 = vunpack.c.l.b16 %v122
    %v268 = vunpack.c.h.b16 %v122
    %v269 = vunpack.c.l.b16 %v123
    %v270 = vunpack.c.h.b16 %v123
    %v271 = vunpack.c.l.b16 %v124
    %v272 = vunpack.c.l.b16 %v125
    %v273 = vunpack.c.h.b16 %v125
    %v274 = vunpack.c.l.b16 %v126
    %v275 = vunpack.c.h.b16 %v126
    %v276 = vunpack.c.l.b16 %v127
    %v277 = vunpack.c.h.b16 %v127
    %v278 = vunpack.c.l.b16 %v128
    %v279 = vunpack.c.l.b16 %v129
    %v280 = vunpack.c.h.b16 %v129
    %v281 = vunpack.c.l.b16 %v130
    %v282 = vunpack.c.h.b16 %v130
    %v283 = vunpack.c.l.b16 %v131
    %v284 = vunpack.c.h.b16 %v131
    %v285 = vunpack.c.l.b16 %v132
    %v286 = vunpack.c.l.b16 %v133
    %v287 = vunpack.c.h.b16 %v133
    %v288 = vunpack.c.l.b16 %v134
    %v289 = vunpack.c.h.b16 %v134
    %v290 = vunpack.c.l.b16 %v135
    %v291 = vunpack.c.h.b16 %v135
    %v292 = vunpack.c.l.b16 %v136
    %v293 = vunpack.c.l.b16 %v137
    %v294 = vunpack.c.h.b16 %v137
    %v295 = vunpack.c.l.b16 %v138
    %v296 = vunpack.c.h.b16 %v138
    %v297 = vunpack.c.l.b16 %v139
    %v298 = vunpack.c.h.b16 %v139
    %v299 = vunpack.c.l.b16 %v140
    %v300 = vunpack.c.l.b16 %v141
    %v301 = vunpack.c.h.b16 %v141
    %v302 = vunpack.c.l.b16 %v142
    %v303 = vunpack.c.h.b16 %v142
    %v304 = vunpack.c.l.b16 %v143
    %v305 = vunpack.c.h.b16 %v143
    %v306 = vunpack.c.l.b16 %v144
    %v307 = vunpack.c.l.b16 %v145
    %v308 = vunpack.c.h.b16 %v145
    %v309 = vunpack.c.l.b16 %v146
    %v310 = vunpack.c.h.b16 %v146
    %v311 = vunpack.c.l.b16 %v147
    %v312 = vunpack.c.h.b16 %v147
    %v313 = vunpack.c.l.b16 %v148
    %v314 = vunpack.c.l.b16 %v149
    %v315 = vunpack.c.h.b16 %v149
    %v316 = vunpack.c.l.b16 %v150
    %v317 = vunpack.c.h.b16 %v150
    %v318 = vunpack.c.l.b16 %v151
    %v319 = vunpack.c.h.b16 %v151
    %v320 = vunpack.c.l.b16 %v152
    %v321 = vunpack.c.l.b16 %v153
    %v322 = vunpack.c.h.b16 %v153
    %v323 = vunpack.c.l.b16 %v154
    %v324 = vunpack.c.h.b16 %v154
    %v325 = vunpack.c.l.b16 %v155
    %v326 = vunpack.c.h.b16 %v155
    %v327 = vunpack.c.l.b16 %v156
    %v328 = vunpack.c.l.b16 %v157
    %v329 = vunpack.c.h.b16 %v157
    %v330 = vunpack.c.l.b16 %v158
    %v331 = vunpack.c.h.b16 %v158
    %v332 = vunpack.c.l.b16 %v159
    %v333 = vunpack.c.h.b16 %v159
    %v334 = vunpack.c.l.b16 %v160
    %v335 = vunpack.c.l.b16 %v161
    %v336 = vunpack.c.h.b16 %v161
    %v337 = vunpack.c.l.b16 %v162
    %v338 = vunpack.c.h.b16 %v162
    %v339 = vunpack.c.l.b16 %v163
    %v340 = vunpack.c.h.b16 %v163
    %v341 = vunpack.c.l.b16 %v164
    %v342 = vunpack.c.l.b16 %v165
    %v343 = vunpack.c.h.b16 %v165
    %v344 = vunpack.c.l.b16 %v166
    %v345 = vunpack.c.h.b16 %v166
    %v346 = vunpack.c.l.b16 %v167
    %v347 = vunpack.c.h.b16 %v167
    %v348 = vunpack.c.l.b16 %v168
    %v349 = vpack.c.b16 %v265, %v258
    %v350 = vpack.c.b16 %v266, %v259
    %v351 = vpack.c.b16 %v267, %v260
    %v352 = vpack.c.b16 %v268, %v261
    %v353 = vpack.c.b16 %v269, %v262
    %v354 = vpack.c.b16 %v270, %v263
    %v355 = vpack.c.b16 %v271, %v264
    %v356 = vpack.c.b16 %v279, %v272
    %v357 = vpack.c.b16 %v280, %v273
    %v358 = vpack.c.b16 %v281, %v274
    %v359 = vpack.c.b16 %v282, %v275
    %v360 = vpack.c.b16 %v283, %v276
    %v361 = vpack.c.b16 %v284, %v277
    %v362 = vpack.c.b16 %v285, %v278
    %v363 = vpack.c.b16 %v293, %v286
    %v364 = vpack.c.b16 %v294, %v287
    %v365 = vpack.c.b16 %v295, %v288
    %v366 = vpack.c.b16 %v296, %v289
    %v367 = vpack.c.b16 %v297, %v290
    %v368 = vpack.c.b16 %v298, %v291
    %v369 = vpack.c.b16 %v299, %v292
    %v370 = vpack.c.b16 %v307, %v300
    %v371 = vpack.c.b16 %v308, %v301
    %v372 = vpack.c.b16 %v309, %v302
    %v373 = vpack.c.b16 %v310, %v303
    %v374 = vpack.c.b16 %v311, %v304
    %v375 = vpack.c.b16 %v312, %v305
    %v376 = vpack.c.b16 %v313, %v306
    %v377 = vpack.c.b16 %v321, %v314
    %v378 = vpack.c.b16 %v322, %v315
    %v379 = vpack.c.b16 %v323, %v316
    %v380 = vpack.c.b16 %v324, %v317
    %v381 = vpack.c.b16 %v325, %v318
    %v382 = vpack.c.b16 %v326, %v319
    %v383 = vpack.c.b16 %v327, %v320
    %v384 = vpack.c.b16 %v335, %v328
    %v385 = vpack.c.b16 %v336, %v329
    %v386 = vpack.c.b16 %v337, %v330
    %v387 = vpack.c.b16 %v338, %v331
    %v388 = vpack.c.b16 %v339, %v332
    %v389 = vpack.c.b16 %v340, %v333
    %v390 = vpack.c.b16 %v341, %v334
    %v391 = vpack.c.b16 %v342, %v342
    %v392 = vpack.c.b16 %v343, %v343
    %v393 = vpack.c.b16 %v344, %v344
    %v394 = vpack.c.b16 %v345, %v345
    %v395 = vpack.c.b16 %v346, %v346
    %v396 = vpack.c.b16 %v347, %v347
    %v397 = vpack.c.b16 %v348, %v348
    %vm440 = vcmask 818176
    %v442 = vsel %vm440, %v116, 0
    %vm444 = vcmask 1041408
    %v446 = vsel %vm444, %v391, 0
    %v449 = vsel %vm444, %v392, 0
    %v452 = vsel %vm444, %v393, 0
    %v455 = vsel %vm444, %v394, 0
    %v458 = vsel %vm444, %v395, 0
    %v461 = vsel %vm444, %v396, 0
    %v464 = vsel %vm444, %v397, 0
    %466 = vmatprep.subr.bf16.mxu0 %v350
    %467 = vmatpush1.bf16.msra.mxu0 %v349
    %468 = vmatprep.subr.bf16.mxu0 %v357
    %469 = vmatpush1.bf16.msra.mxu0 %v356
    %470 = vmatprep.subr.bf16.mxu0 %v364
    %471 = vmatpush1.bf16.msra.mxu0 %v363
    %472 = vmatprep.subr.bf16.mxu0 %v371
    %473 = vmatpush1.bf16.msra.mxu0 %v370
    %474 = vmatprep.subr.bf16.mxu0 %v378
    %475 = vmatpush1.bf16.msra.mxu0 %v377
    %476 = vmatprep.subr.bf16.mxu0 %v385
    %477 = vmatpush1.bf16.msra.mxu0 %v384
    %478 = vmatprep.subr.bf16.mxu0 %v449
    %479 = vmatpush1.bf16.msra.mxu0 %v446
    %480 = vmatprep.subr.bf16.mxu0 0
    %481 = vmatpush1.bf16.msra.mxu0 0
    %482 = vmatprep.subr.bf16.mxu0 0
    %483 = vmatpush1.bf16.msra.mxu0 0
    %484 = vmatprep.subr.bf16.mxu0 0
    %485 = vmatpush1.bf16.msra.mxu0 0
    %486 = vmatprep.subr.bf16.mxu0 0
    %487 = vmatpush1.bf16.msra.mxu0 0
    %488 = vmatprep.subr.bf16.mxu0 0
    %489 = vmatpush1.bf16.msra.mxu0 0
    %490 = vmatprep.subr.bf16.mxu0 0
    %491 = vmatpush1.bf16.msra.mxu0 0
    %492 = vmatprep.subr.bf16.mxu0 0
    %493 = vmatpush1.bf16.msra.mxu0 0
    %494 = vmatprep.subr.bf16.mxu0 0
    %495 = vmatpush1.bf16.msra.mxu0 0
    %496 = vmatprep.subr.bf16.mxu0 0
    %497 = vmatpush1.bf16.msra.mxu0 0
    %498 = vmatprep.mubr.bf16.mxu0 0
    %499 = vmatmul.mubr.bf16.gmra.mrb[0].mxu0 %v442
    %v500 = vpop.f32.mrb[0].mxu0
    %v501 = vadd.f32 %v174, %v500
    %v502 = vpop.f32.mrb[0].mxu0
    %v503 = vadd.f32 %v178, %v502
    %v504 = vpop.f32.mrb[0].mxu0
    %v505 = vpop.f32.mrb[0].mxu0
    %506 = vdwg.mxu0
    %507 = vmatprep.subr.bf16.mxu0 %v352
    %508 = vmatpush1.bf16.msra.mxu0 %v351
    %509 = vmatprep.subr.bf16.mxu0 %v359
    %510 = vmatpush1.bf16.msra.mxu0 %v358
    %511 = vmatprep.subr.bf16.mxu0 %v366
    %512 = vmatpush1.bf16.msra.mxu0 %v365
    %513 = vmatprep.subr.bf16.mxu0 %v373
    %514 = vmatpush1.bf16.msra.mxu0 %v372
    %515 = vmatprep.subr.bf16.mxu0 %v380
    %516 = vmatpush1.bf16.msra.mxu0 %v379
    %517 = vmatprep.subr.bf16.mxu0 %v387
    %518 = vmatpush1.bf16.msra.mxu0 %v386
    %519 = vmatprep.subr.bf16.mxu0 %v455
    %520 = vmatpush1.bf16.msra.mxu0 %v452
    %521 = vmatprep.subr.bf16.mxu0 0
    %522 = vmatpush1.bf16.msra.mxu0 0
    %523 = vmatprep.subr.bf16.mxu0 0
    %524 = vmatpush1.bf16.msra.mxu0 0
    %525 = vmatprep.subr.bf16.mxu0 0
    %526 = vmatpush1.bf16.msra.mxu0 0
    %527 = vmatprep.subr.bf16.mxu0 0
    %528 = vmatpush1.bf16.msra.mxu0 0
    %529 = vmatprep.subr.bf16.mxu0 0
    %530 = vmatpush1.bf16.msra.mxu0 0
    %531 = vmatprep.subr.bf16.mxu0 0
    %532 = vmatpush1.bf16.msra.mxu0 0
    %533 = vmatprep.subr.bf16.mxu0 0
    %534 = vmatpush1.bf16.msra.mxu0 0
    %535 = vmatprep.subr.bf16.mxu0 0
    %536 = vmatpush1.bf16.msra.mxu0 0
    %537 = vmatprep.subr.bf16.mxu0 0
    %538 = vmatpush1.bf16.msra.mxu0 0
    %539 = vmatprep.mubr.bf16.mxu0 0
    %540 = vmatmul.mubr.bf16.gmra.mrb[0].mxu0 %v442
    %v541 = vpop.f32.mrb[0].mxu0
    %v542 = vadd.f32 %v182, %v541
    %v543 = vpop.f32.mrb[0].mxu0
    %v544 = vadd.f32 %v186, %v543
    %v545 = vpop.f32.mrb[0].mxu0
    %v546 = vpop.f32.mrb[0].mxu0
    %547 = vdwg.mxu0
    %548 = vmatprep.subr.bf16.mxu0 %v354
    %549 = vmatpush1.bf16.msra.mxu0 %v353
    %550 = vmatprep.subr.bf16.mxu0 %v361
    %551 = vmatpush1.bf16.msra.mxu0 %v360
    %552 = vmatprep.subr.bf16.mxu0 %v368
    %553 = vmatpush1.bf16.msra.mxu0 %v367
    %554 = vmatprep.subr.bf16.mxu0 %v375
    %555 = vmatpush1.bf16.msra.mxu0 %v374
    %556 = vmatprep.subr.bf16.mxu0 %v382
    %557 = vmatpush1.bf16.msra.mxu0 %v381
    %558 = vmatprep.subr.bf16.mxu0 %v389
    %559 = vmatpush1.bf16.msra.mxu0 %v388
    %560 = vmatprep.subr.bf16.mxu0 %v461
    %561 = vmatpush1.bf16.msra.mxu0 %v458
    %562 = vmatprep.subr.bf16.mxu0 0
    %563 = vmatpush1.bf16.msra.mxu0 0
    %564 = vmatprep.subr.bf16.mxu0 0
    %565 = vmatpush1.bf16.msra.mxu0 0
    %566 = vmatprep.subr.bf16.mxu0 0
    %567 = vmatpush1.bf16.msra.mxu0 0
    %568 = vmatprep.subr.bf16.mxu0 0
    %569 = vmatpush1.bf16.msra.mxu0 0
    %570 = vmatprep.subr.bf16.mxu0 0
    %571 = vmatpush1.bf16.msra.mxu0 0
    %572 = vmatprep.subr.bf16.mxu0 0
    %573 = vmatpush1.bf16.msra.mxu0 0
    %574 = vmatprep.subr.bf16.mxu0 0
    %575 = vmatpush1.bf16.msra.mxu0 0
    %576 = vmatprep.subr.bf16.mxu0 0
    %577 = vmatpush1.bf16.msra.mxu0 0
    %578 = vmatprep.subr.bf16.mxu0 0
    %579 = vmatpush1.bf16.msra.mxu0 0
    %580 = vmatprep.mubr.bf16.mxu0 0
    %581 = vmatmul.mubr.bf16.gmra.mrb[0].mxu0 %v442
    %v582 = vpop.f32.mrb[0].mxu0
    %v583 = vadd.f32 %v190, %v582
    %v584 = vpop.f32.mrb[0].mxu0
    %v585 = vadd.f32 %v194, %v584
    %v586 = vpop.f32.mrb[0].mxu0
    %v587 = vpop.f32.mrb[0].mxu0
    %588 = vdwg.mxu0
    %589 = vmatprep.subr.bf16.mxu0 0
    %590 = vmatpush1.bf16.msra.mxu0 %v355
    %591 = vmatprep.subr.bf16.mxu0 0
    %592 = vmatpush1.bf16.msra.mxu0 %v362
    %593 = vmatprep.subr.bf16.mxu0 0
    %594 = vmatpush1.bf16.msra.mxu0 %v369
    %595 = vmatprep.subr.bf16.mxu0 0
    %596 = vmatpush1.bf16.msra.mxu0 %v376
    %597 = vmatprep.subr.bf16.mxu0 0
    %598 = vmatpush1.bf16.msra.mxu0 %v383
    %599 = vmatprep.subr.bf16.mxu0 0
    %600 = vmatpush1.bf16.msra.mxu0 %v390
    %601 = vmatprep.subr.bf16.mxu0 0
    %602 = vmatpush1.bf16.msra.mxu0 %v464
    %603 = vmatprep.subr.bf16.mxu0 0
    %604 = vmatpush1.bf16.msra.mxu0 0
    %605 = vmatprep.subr.bf16.mxu0 0
    %606 = vmatpush1.bf16.msra.mxu0 0
    %607 = vmatprep.subr.bf16.mxu0 0
    %608 = vmatpush1.bf16.msra.mxu0 0
    %609 = vmatprep.subr.bf16.mxu0 0
    %610 = vmatpush1.bf16.msra.mxu0 0
    %611 = vmatprep.subr.bf16.mxu0 0
    %612 = vmatpush1.bf16.msra.mxu0 0
    %613 = vmatprep.subr.bf16.mxu0 0
    %614 = vmatpush1.bf16.msra.mxu0 0
    %615 = vmatprep.subr.bf16.mxu0 0
    %616 = vmatpush1.bf16.msra.mxu0 0
    %617 = vmatprep.subr.bf16.mxu0 0
    %618 = vmatpush1.bf16.msra.mxu0 0
    %619 = vmatprep.subr.bf16.mxu0 0
    %620 = vmatpush1.bf16.msra.mxu0 0
    %621 = vmatprep.mubr.bf16.mxu0 0
    %622 = vmatmul.mubr.bf16.gmra.mrb[0].mxu0 %v442
    %v623 = vpop.f32.mrb[0].mxu0
    %v624 = vadd.f32 %v198, %v623
    %v625 = vpop.f32.mrb[0].mxu0
    %v626 = vpop.f32.mrb[0].mxu0
    %v627 = vpop.f32.mrb[0].mxu0
    %628 = vdwg.mxu0
    %v629 = vmax.f32 %v501, 0.0
    %v630 = vmax.f32 %v503, 0.0
    %v631 = vmax.f32 %v542, 0.0
    %v632 = vmax.f32 %v544, 0.0
    %v633 = vmax.f32 %v583, 0.0
    %v634 = vmax.f32 %v585, 0.0
    %v635 = vmax.f32 %v624, 0.0
    %v636 = vpack.c.bf16 %v629, %v629
    %v637 = vpack.c.bf16 %v630, %v630
    %v638 = vpack.c.bf16 %v631, %v631
    %v639 = vpack.c.bf16 %v632, %v632
    %v640 = vpack.c.bf16 %v633, %v633
    %v641 = vpack.c.bf16 %v634, %v634
    %v642 = vpack.c.bf16 %v635, %v635
    %v643 = vld [vmem:[#allocation8] sm:$0xff]
    %v644 = vld [vmem:[#allocation8 + $0x8] sm:$0xff]
    %v645 = vld [vmem:[#allocation8 + $0x10] sm:$0xff]
    %v646 = vld [vmem:[#allocation8 + $0x18] sm:$0xf]
    %v647 = vld [vmem:[#allocation8 + $0x1c] sm:$0xff]
    %v648 = vld [vmem:[#allocation8 + $0x24] sm:$0xff]
    %v649 = vld [vmem:[#allocation8 + $0x2c] sm:$0xff]
    %v650 = vld [vmem:[#allocation8 + $0x34] sm:$0xf]
    %v651 = vld [vmem:[#allocation8 + $0x38] sm:$0xff]
    %v652 = vld [vmem:[#allocation8 + $0x40] sm:$0xff]
    %v653 = vld [vmem:[#allocation8 + $0x48] sm:$0xff]
    %v654 = vld [vmem:[#allocation8 + $0x50] sm:$0xf]
    %v655 = vld [vmem:[#allocation8 + $0x54] sm:$0xff]
    %v656 = vld [vmem:[#allocation8 + $0x5c] sm:$0xff]
    %v657 = vld [vmem:[#allocation8 + $0x64] sm:$0xff]
    %v658 = vld [vmem:[#allocation8 + $0x6c] sm:$0xf]
    %v659 = vld [vmem:[#allocation8 + $0x70] sm:$0xff]
    %v660 = vld [vmem:[#allocation8 + $0x78] sm:$0xff]
    %v661 = vld [vmem:[#allocation8 + $0x80] sm:$0xff]
    %v662 = vld [vmem:[#allocation8 + $0x88] sm:$0xf]
    %v663 = vld [vmem:[#allocation8 + $0x8c] sm:$0xff]
    %v664 = vld [vmem:[#allocation8 + $0x94] sm:$0xff]
    %v665 = vld [vmem:[#allocation8 + $0x9c] sm:$0xff]
    %v666 = vld [vmem:[#allocation8 + $0xa4] sm:$0xf]
    %v667 = vld [vmem:[#allocation8 + $0xa8] sm:$0xff]
    %v668 = vld [vmem:[#allocation8 + $0xb0] sm:$0xff]
    %v669 = vld [vmem:[#allocation8 + $0xb8] sm:$0xff]
    %v670 = vld [vmem:[#allocation8 + $0xc0] sm:$0xf]
    %v671 = vld [vmem:[#allocation8 + $0xc4] sm:$0xff]
    %v672 = vld [vmem:[#allocation8 + $0xcc] sm:$0xff]
    %v673 = vld [vmem:[#allocation8 + $0xd4] sm:$0xff]
    %v674 = vld [vmem:[#allocation8 + $0xdc] sm:$0xf]
    %v675 = vld [vmem:[#allocation8 + $0xe0] sm:$0xff]
    %v676 = vld [vmem:[#allocation8 + $0xe8] sm:$0xff]
    %v677 = vld [vmem:[#allocation8 + $0xf0] sm:$0xff]
    %v678 = vld [vmem:[#allocation8 + $0xf8] sm:$0xf]
    %v679 = vld [vmem:[#allocation8 + $0xfc] sm:$0xff]
    %v680 = vld [vmem:[#allocation8 + $0x104] sm:$0xff]
    %v681 = vld [vmem:[#allocation8 + $0x10c] sm:$0xff]
    %v682 = vld [vmem:[#allocation8 + $0x114] sm:$0xf]
    %v683 = vld [vmem:[#allocation8 + $0x118] sm:$0xff]
    %v684 = vld [vmem:[#allocation8 + $0x120] sm:$0xff]
    %v685 = vld [vmem:[#allocation8 + $0x128] sm:$0xff]
    %v686 = vld [vmem:[#allocation8 + $0x130] sm:$0xf]
    %v687 = vld [vmem:[#allocation8 + $0x134] sm:$0xff]
    %v688 = vld [vmem:[#allocation8 + $0x13c] sm:$0xff]
    %v689 = vld [vmem:[#allocation8 + $0x144] sm:$0xff]
    %v690 = vld [vmem:[#allocation8 + $0x14c] sm:$0xf]
    %v691 = vld [vmem:[#allocation8 + $0x150] sm:$0xff]
    %v692 = vld [vmem:[#allocation8 + $0x158] sm:$0xff]
    %v693 = vld [vmem:[#allocation8 + $0x160] sm:$0xff]
    %v694 = vld [vmem:[#allocation8 + $0x168] sm:$0xf]
    %v695 = vld [vmem:[#allocation8 + $0x16c] sm:$0xff]
    %v696 = vld [vmem:[#allocation8 + $0x174] sm:$0xff]
    %v697 = vld [vmem:[#allocation8 + $0x17c] sm:$0xff]
    %v698 = vld [vmem:[#allocation8 + $0x184] sm:$0xf]
    %v699 = vld [vmem:[#allocation8 + $0x188] sm:$0xff]
    %v700 = vld [vmem:[#allocation8 + $0x190] sm:$0xff]
    %v701 = vld [vmem:[#allocation8 + $0x198] sm:$0xff]
    %v702 = vld [vmem:[#allocation8 + $0x1a0] sm:$0xf]
    %v703 = vld [vmem:[#allocation8 + $0x1a4] sm:$0xff]
    %v704 = vld [vmem:[#allocation8 + $0x1ac] sm:$0xff]
    %v705 = vld [vmem:[#allocation8 + $0x1b4] sm:$0xff]
    %v706 = vld [vmem:[#allocation8 + $0x1bc] sm:$0xf]
    %v707 = vld [vmem:[#allocation8 + $0x1c0] sm:$0xff]
    %v708 = vld [vmem:[#allocation8 + $0x1c8] sm:$0xff]
    %v709 = vld [vmem:[#allocation8 + $0x1d0] sm:$0xff]
    %v710 = vld [vmem:[#allocation8 + $0x1d8] sm:$0xf]
    %v711 = vld [vmem:[#allocation8 + $0x1dc] sm:$0xff]
    %v712 = vld [vmem:[#allocation8 + $0x1e4] sm:$0xff]
    %v713 = vld [vmem:[#allocation8 + $0x1ec] sm:$0xff]
    %v714 = vld [vmem:[#allocation8 + $0x1f4] sm:$0xf]
    %v715 = vld [vmem:[#allocation8 + $0x1f8] sm:$0xff]
    %v716 = vld [vmem:[#allocation8 + $0x200] sm:$0xff]
    %v717 = vld [vmem:[#allocation8 + $0x208] sm:$0xff]
    %v718 = vld [vmem:[#allocation8 + $0x210] sm:$0xf]
    %v719 = vld [vmem:[#allocation8 + $0x214] sm:$0xff]
    %v720 = vld [vmem:[#allocation8 + $0x21c] sm:$0xff]
    %v721 = vld [vmem:[#allocation8 + $0x224] sm:$0xff]
    %v722 = vld [vmem:[#allocation8 + $0x22c] sm:$0xf]
    %v723 = vld [vmem:[#allocation8 + $0x230] sm:$0xff]
    %v724 = vld [vmem:[#allocation8 + $0x238] sm:$0xff]
    %v725 = vld [vmem:[#allocation8 + $0x240] sm:$0xff]
    %v726 = vld [vmem:[#allocation8 + $0x248] sm:$0xf]
    %v727 = vld [vmem:[#allocation8 + $0x24c] sm:$0xff]
    %v728 = vld [vmem:[#allocation8 + $0x254] sm:$0xff]
    %v729 = vld [vmem:[#allocation8 + $0x25c] sm:$0xff]
    %v730 = vld [vmem:[#allocation8 + $0x264] sm:$0xf]
    %v731 = vld [vmem:[#allocation8 + $0x268] sm:$0xff]
    %v732 = vld [vmem:[#allocation8 + $0x270] sm:$0xff]
    %v733 = vld [vmem:[#allocation8 + $0x278] sm:$0xff]
    %v734 = vld [vmem:[#allocation8 + $0x280] sm:$0xf]
    %v735 = vld [vmem:[#allocation8 + $0x284] sm:$0xff]
    %v736 = vld [vmem:[#allocation8 + $0x28c] sm:$0xff]
    %v737 = vld [vmem:[#allocation8 + $0x294] sm:$0xff]
    %v738 = vld [vmem:[#allocation8 + $0x29c] sm:$0xf]
    %v739 = vld [vmem:[#allocation8 + $0x2a0] sm:$0xff]
    %v740 = vld [vmem:[#allocation8 + $0x2a8] sm:$0xff]
    %v741 = vld [vmem:[#allocation8 + $0x2b0] sm:$0xff]
    %v742 = vld [vmem:[#allocation8 + $0x2b8] sm:$0xf]
    %v743 = vld [vmem:[#allocation8 + $0x2bc] sm:$0xff]
    %v744 = vld [vmem:[#allocation8 + $0x2c4] sm:$0xff]
    %v745 = vld [vmem:[#allocation8 + $0x2cc] sm:$0xff]
    %v746 = vld [vmem:[#allocation8 + $0x2d4] sm:$0xf]
    %v747 = vld [vmem:[#allocation8 + $0x2d8] sm:$0xff]
    %v748 = vld [vmem:[#allocation8 + $0x2e0] sm:$0xff]
    %v749 = vld [vmem:[#allocation8 + $0x2e8] sm:$0xff]
    %v750 = vld [vmem:[#allocation8 + $0x2f0] sm:$0xf]
    %v751 = vld [vmem:[#allocation8 + $0x2f4] sm:$0xff]
    %v752 = vld [vmem:[#allocation8 + $0x2fc] sm:$0xff]
    %v753 = vld [vmem:[#allocation8 + $0x304] sm:$0xff]
    %v754 = vld [vmem:[#allocation8 + $0x30c] sm:$0xf]
    %v755 = vld [vmem:[#allocation8 + $0x310] sm:$0xff]
    %v756 = vld [vmem:[#allocation8 + $0x318] sm:$0xff]
    %v757 = vld [vmem:[#allocation8 + $0x320] sm:$0xff]
    %v758 = vld [vmem:[#allocation8 + $0x328] sm:$0xf]
    %v759 = vld [vmem:[#allocation8 + $0x32c] sm:$0xff]
    %v760 = vld [vmem:[#allocation8 + $0x334] sm:$0xff]
    %v761 = vld [vmem:[#allocation8 + $0x33c] sm:$0xff]
    %v762 = vld [vmem:[#allocation8 + $0x344] sm:$0xf]
    %v763 = vld [vmem:[#allocation8 + $0x348] sm:$0xff]
    %v764 = vld [vmem:[#allocation8 + $0x350] sm:$0xff]
    %v765 = vld [vmem:[#allocation8 + $0x358] sm:$0xff]
    %v766 = vld [vmem:[#allocation8 + $0x360] sm:$0xf]
    %v767 = vld [vmem:[#allocation8 + $0x364] sm:$0xff]
    %v768 = vld [vmem:[#allocation8 + $0x36c] sm:$0xff]
    %v769 = vld [vmem:[#allocation8 + $0x374] sm:$0xff]
    %v770 = vld [vmem:[#allocation8 + $0x37c] sm:$0xf]
    %v771 = vld [vmem:[#allocation8 + $0x380] sm:$0xff]
    %v772 = vld [vmem:[#allocation8 + $0x388] sm:$0xff]
    %v773 = vld [vmem:[#allocation8 + $0x390] sm:$0xff]
    %v774 = vld [vmem:[#allocation8 + $0x398] sm:$0xf]
    %v775 = vld [vmem:[#allocation8 + $0x39c] sm:$0xff]
    %v776 = vld [vmem:[#allocation8 + $0x3a4] sm:$0xff]
    %v777 = vld [vmem:[#allocation8 + $0x3ac] sm:$0xff]
    %v778 = vld [vmem:[#allocation8 + $0x3b4] sm:$0xf]
    %v779 = vld [vmem:[#allocation8 + $0x3b8] sm:$0xff]
    %v780 = vld [vmem:[#allocation8 + $0x3c0] sm:$0xff]
    %v781 = vld [vmem:[#allocation8 + $0x3c8] sm:$0xff]
    %v782 = vld [vmem:[#allocation8 + $0x3d0] sm:$0xf]
    %v783 = vld [vmem:[#allocation8 + $0x3d4] sm:$0xff]
    %v784 = vld [vmem:[#allocation8 + $0x3dc] sm:$0xff]
    %v785 = vld [vmem:[#allocation8 + $0x3e4] sm:$0xff]
    %v786 = vld [vmem:[#allocation8 + $0x3ec] sm:$0xf]
    %v787 = vld [vmem:[#allocation8 + $0x3f0] sm:$0xff]
    %v788 = vld [vmem:[#allocation8 + $0x3f8] sm:$0xff]
    %v789 = vld [vmem:[#allocation8 + $0x400] sm:$0xff]
    %v790 = vld [vmem:[#allocation8 + $0x408] sm:$0xf]
    %v791 = vld [vmem:[#allocation8 + $0x40c] sm:$0xff]
    %v792 = vld [vmem:[#allocation8 + $0x414] sm:$0xff]
    %v793 = vld [vmem:[#allocation8 + $0x41c] sm:$0xff]
    %v794 = vld [vmem:[#allocation8 + $0x424] sm:$0xf]
    %v795 = vld [vmem:[#allocation8 + $0x428] sm:$0xff]
    %v796 = vld [vmem:[#allocation8 + $0x430] sm:$0xff]
    %v797 = vld [vmem:[#allocation8 + $0x438] sm:$0xff]
    %v798 = vld [vmem:[#allocation8 + $0x440] sm:$0xf]
    %v799 = vld [vmem:[#allocation8 + $0x444] sm:$0xff]
    %v800 = vld [vmem:[#allocation8 + $0x44c] sm:$0xff]
    %v801 = vld [vmem:[#allocation8 + $0x454] sm:$0xff]
    %v802 = vld [vmem:[#allocation8 + $0x45c] sm:$0xf]
    %v803 = vld [vmem:[#allocation8 + $0x460] sm:$0xff]
    %v804 = vld [vmem:[#allocation8 + $0x468] sm:$0xff]
    %v805 = vld [vmem:[#allocation8 + $0x470] sm:$0xff]
    %v806 = vld [vmem:[#allocation8 + $0x478] sm:$0xf]
    %v807 = vld [vmem:[#allocation8 + $0x47c] sm:$0xff]
    %v808 = vld [vmem:[#allocation8 + $0x484] sm:$0xff]
    %v809 = vld [vmem:[#allocation8 + $0x48c] sm:$0xff]
    %v810 = vld [vmem:[#allocation8 + $0x494] sm:$0xf]
    %v811 = vld [vmem:[#allocation8 + $0x498] sm:$0xff]
    %v812 = vld [vmem:[#allocation8 + $0x4a0] sm:$0xff]
    %v813 = vld [vmem:[#allocation8 + $0x4a8] sm:$0xff]
    %v814 = vld [vmem:[#allocation8 + $0x4b0] sm:$0xf]
    %v815 = vld [vmem:[#allocation8 + $0x4b4] sm:$0xff]
    %v816 = vld [vmem:[#allocation8 + $0x4bc] sm:$0xff]
    %v817 = vld [vmem:[#allocation8 + $0x4c4] sm:$0xff]
    %v818 = vld [vmem:[#allocation8 + $0x4cc] sm:$0xf]
    %v819 = vld [vmem:[#allocation8 + $0x4d0] sm:$0xff]
    %v820 = vld [vmem:[#allocation8 + $0x4d8] sm:$0xff]
    %v821 = vld [vmem:[#allocation8 + $0x4e0] sm:$0xff]
    %v822 = vld [vmem:[#allocation8 + $0x4e8] sm:$0xf]
    %v823 = vld [vmem:[#allocation8 + $0x4ec] sm:$0xff]
    %v824 = vld [vmem:[#allocation8 + $0x4f4] sm:$0xff]
    %v825 = vld [vmem:[#allocation8 + $0x4fc] sm:$0xff]
    %v826 = vld [vmem:[#allocation8 + $0x504] sm:$0xf]
    %v827 = vld [vmem:[#allocation8 + $0x508] sm:$0xff]
    %v828 = vld [vmem:[#allocation8 + $0x510] sm:$0xff]
    %v829 = vld [vmem:[#allocation8 + $0x518] sm:$0xff]
    %v830 = vld [vmem:[#allocation8 + $0x520] sm:$0xf]
    %v831 = vld [vmem:[#allocation8 + $0x524] sm:$0xff]
    %v832 = vld [vmem:[#allocation8 + $0x52c] sm:$0xff]
    %v833 = vld [vmem:[#allocation8 + $0x534] sm:$0xff]
    %v834 = vld [vmem:[#allocation8 + $0x53c] sm:$0xf]
    %v835 = vld [vmem:[#allocation8 + $0x540] sm:$0xff]
    %v836 = vld [vmem:[#allocation8 + $0x548] sm:$0xff]
    %v837 = vld [vmem:[#allocation8 + $0x550] sm:$0xff]
    %v838 = vld [vmem:[#allocation8 + $0x558] sm:$0xf]
    %v839 = vld [vmem:[#allocation8 + $0x55c] sm:$0xff]
    %v840 = vld [vmem:[#allocation8 + $0x564] sm:$0xff]
    %v841 = vld [vmem:[#allocation8 + $0x56c] sm:$0xff]
    %v842 = vld [vmem:[#allocation8 + $0x574] sm:$0xf]
    %v843 = vld [vmem:[#allocation8 + $0x578] sm:$0xff]
    %v844 = vld [vmem:[#allocation8 + $0x580] sm:$0xff]
    %v845 = vld [vmem:[#allocation8 + $0x588] sm:$0xff]
    %v846 = vld [vmem:[#allocation8 + $0x590] sm:$0xf]
    %v847 = vld [vmem:[#allocation8 + $0x594] sm:$0xff]
    %v848 = vld [vmem:[#allocation8 + $0x59c] sm:$0xff]
    %v849 = vld [vmem:[#allocation8 + $0x5a4] sm:$0xff]
    %v850 = vld [vmem:[#allocation8 + $0x5ac] sm:$0xf]
    %v851 = vld [vmem:[#allocation8 + $0x5b0] sm:$0xff]
    %v852 = vld [vmem:[#allocation8 + $0x5b8] sm:$0xff]
    %v853 = vld [vmem:[#allocation8 + $0x5c0] sm:$0xff]
    %v854 = vld [vmem:[#allocation8 + $0x5c8] sm:$0xf]
    %v855 = vld [vmem:[#allocation8 + $0x5cc] sm:$0xff]
    %v856 = vld [vmem:[#allocation8 + $0x5d4] sm:$0xff]
    %v857 = vld [vmem:[#allocation8 + $0x5dc] sm:$0xff]
    %v858 = vld [vmem:[#allocation8 + $0x5e4] sm:$0xf]
    %v859 = vld [vmem:[#allocation8 + $0x5e8] sm:$0xff]
    %v860 = vld [vmem:[#allocation8 + $0x5f0] sm:$0xff]
    %v861 = vld [vmem:[#allocation8 + $0x5f8] sm:$0xff]
    %v862 = vld [vmem:[#allocation8 + $0x600] sm:$0xf]
    %v863 = vld [vmem:[#allocation8 + $0x604] sm:$0xff]
    %v864 = vld [vmem:[#allocation8 + $0x60c] sm:$0xff]
    %v865 = vld [vmem:[#allocation8 + $0x614] sm:$0xff]
    %v866 = vld [vmem:[#allocation8 + $0x61c] sm:$0xf]
    %v867 = vld [vmem:[#allocation8 + $0x620] sm:$0xff]
    %v868 = vld [vmem:[#allocation8 + $0x628] sm:$0xff]
    %v869 = vld [vmem:[#allocation8 + $0x630] sm:$0xff]
    %v870 = vld [vmem:[#allocation8 + $0x638] sm:$0xf]
    %v871 = vld [vmem:[#allocation8 + $0x63c] sm:$0xff]
    %v872 = vld [vmem:[#allocation8 + $0x644] sm:$0xff]
    %v873 = vld [vmem:[#allocation8 + $0x64c] sm:$0xff]
    %v874 = vld [vmem:[#allocation8 + $0x654] sm:$0xf]
    %v875 = vld [vmem:[#allocation8 + $0x658] sm:$0xff]
    %v876 = vld [vmem:[#allocation8 + $0x660] sm:$0xff]
    %v877 = vld [vmem:[#allocation8 + $0x668] sm:$0xff]
    %v878 = vld [vmem:[#allocation8 + $0x670] sm:$0xf]
    %v879 = vld [vmem:[#allocation8 + $0x674] sm:$0xff]
    %v880 = vld [vmem:[#allocation8 + $0x67c] sm:$0xff]
    %v881 = vld [vmem:[#allocation8 + $0x684] sm:$0xff]
    %v882 = vld [vmem:[#allocation8 + $0x68c] sm:$0xf]
    %v883 = vld [vmem:[#allocation8 + $0x690] sm:$0xff]
    %v884 = vld [vmem:[#allocation8 + $0x698] sm:$0xff]
    %v885 = vld [vmem:[#allocation8 + $0x6a0] sm:$0xff]
    %v886 = vld [vmem:[#allocation8 + $0x6a8] sm:$0xf]
    %v887 = vld [vmem:[#allocation8 + $0x6ac] sm:$0xff]
    %v888 = vld [vmem:[#allocation8 + $0x6b4] sm:$0xff]
    %v889 = vld [vmem:[#allocation8 + $0x6bc] sm:$0xff]
    %v890 = vld [vmem:[#allocation8 + $0x6c4] sm:$0xf]
    %v891 = vld [vmem:[#allocation8 + $0x6c8] sm:$0xff]
    %v892 = vld [vmem:[#allocation8 + $0x6d0] sm:$0xff]
    %v893 = vld [vmem:[#allocation8 + $0x6d8] sm:$0xff]
    %v894 = vld [vmem:[#allocation8 + $0x6e0] sm:$0xf]
    %v895 = vld [vmem:[#allocation8 + $0x6e4] sm:$0xff]
    %v896 = vld [vmem:[#allocation8 + $0x6ec] sm:$0xff]
    %v897 = vld [vmem:[#allocation8 + $0x6f4] sm:$0xff]
    %v898 = vld [vmem:[#allocation8 + $0x6fc] sm:$0xf]
    %v899 = vld [vmem:[#allocation8 + $0x700] sm:$0xff]
    %v900 = vld [vmem:[#allocation8 + $0x708] sm:$0xff]
    %v901 = vld [vmem:[#allocation8 + $0x710] sm:$0xff]
    %v902 = vld [vmem:[#allocation8 + $0x718] sm:$0xf]
    %v903 = vld [vmem:[#allocation8 + $0x71c] sm:$0xff]
    %v904 = vld [vmem:[#allocation8 + $0x724] sm:$0xff]
    %v905 = vld [vmem:[#allocation8 + $0x72c] sm:$0xff]
    %v906 = vld [vmem:[#allocation8 + $0x734] sm:$0xf]
    %v907 = vld [vmem:[#allocation8 + $0x738] sm:$0xff]
    %v908 = vld [vmem:[#allocation8 + $0x740] sm:$0xff]
    %v909 = vld [vmem:[#allocation8 + $0x748] sm:$0xff]
    %v910 = vld [vmem:[#allocation8 + $0x750] sm:$0xf]
    %v911 = vld [vmem:[#allocation8 + $0x754] sm:$0xff]
    %v912 = vld [vmem:[#allocation8 + $0x75c] sm:$0xff]
    %v913 = vld [vmem:[#allocation8 + $0x764] sm:$0xff]
    %v914 = vld [vmem:[#allocation8 + $0x76c] sm:$0xf]
    %v915 = vld [vmem:[#allocation8 + $0x770] sm:$0xff]
    %v916 = vld [vmem:[#allocation8 + $0x778] sm:$0xff]
    %v917 = vld [vmem:[#allocation8 + $0x780] sm:$0xff]
    %v918 = vld [vmem:[#allocation8 + $0x788] sm:$0xf]
    %v919 = vld [vmem:[#allocation8 + $0x78c] sm:$0xff]
    %v920 = vld [vmem:[#allocation8 + $0x794] sm:$0xff]
    %v921 = vld [vmem:[#allocation8 + $0x79c] sm:$0xff]
    %v922 = vld [vmem:[#allocation8 + $0x7a4] sm:$0xf]
    %v923 = vld [vmem:[#allocation8 + $0x7a8] sm:$0xff]
    %v924 = vld [vmem:[#allocation8 + $0x7b0] sm:$0xff]
    %v925 = vld [vmem:[#allocation8 + $0x7b8] sm:$0xff]
    %v926 = vld [vmem:[#allocation8 + $0x7c0] sm:$0xf]
    %v927 = vld [vmem:[#allocation8 + $0x7c4] sm:$0xff]
    %v928 = vld [vmem:[#allocation8 + $0x7cc] sm:$0xff]
    %v929 = vld [vmem:[#allocation8 + $0x7d4] sm:$0xff]
    %v930 = vld [vmem:[#allocation8 + $0x7dc] sm:$0xf]
    %v931 = vld [vmem:[#allocation8 + $0x7e0] sm:$0xff]
    %v932 = vld [vmem:[#allocation8 + $0x7e8] sm:$0xff]
    %v933 = vld [vmem:[#allocation8 + $0x7f0] sm:$0xff]
    %v934 = vld [vmem:[#allocation8 + $0x7f8] sm:$0xf]
    %v935 = vld [vmem:[#allocation8 + $0x7fc] sm:$0xff]
    %v936 = vld [vmem:[#allocation8 + $0x804] sm:$0xff]
    %v937 = vld [vmem:[#allocation8 + $0x80c] sm:$0xff]
    %v938 = vld [vmem:[#allocation8 + $0x814] sm:$0xf]
    %v939 = vld [vmem:[#allocation8 + $0x818] sm:$0xff]
    %v940 = vld [vmem:[#allocation8 + $0x820] sm:$0xff]
    %v941 = vld [vmem:[#allocation8 + $0x828] sm:$0xff]
    %v942 = vld [vmem:[#allocation8 + $0x830] sm:$0xf]
    %v943 = vld [vmem:[#allocation8 + $0x834] sm:$0xff]
    %v944 = vld [vmem:[#allocation8 + $0x83c] sm:$0xff]
    %v945 = vld [vmem:[#allocation8 + $0x844] sm:$0xff]
    %v946 = vld [vmem:[#allocation8 + $0x84c] sm:$0xf]
    %v947 = vld [vmem:[#allocation8 + $0x850] sm:$0xff]
    %v948 = vld [vmem:[#allocation8 + $0x858] sm:$0xff]
    %v949 = vld [vmem:[#allocation8 + $0x860] sm:$0xff]
    %v950 = vld [vmem:[#allocation8 + $0x868] sm:$0xf]
    %v951 = vld [vmem:[#allocation8 + $0x86c] sm:$0xff]
    %v952 = vld [vmem:[#allocation8 + $0x874] sm:$0xff]
    %v953 = vld [vmem:[#allocation8 + $0x87c] sm:$0xff]
    %v954 = vld [vmem:[#allocation8 + $0x884] sm:$0xf]
    %v955 = vld [vmem:[#allocation8 + $0x888] sm:$0xff]
    %v956 = vld [vmem:[#allocation8 + $0x890] sm:$0xff]
    %v957 = vld [vmem:[#allocation8 + $0x898] sm:$0xff]
    %v958 = vld [vmem:[#allocation8 + $0x8a0] sm:$0xf]
    %v959 = vld [vmem:[#allocation8 + $0x8a4] sm:$0xff]
    %v960 = vld [vmem:[#allocation8 + $0x8ac] sm:$0xff]
    %v961 = vld [vmem:[#allocation8 + $0x8b4] sm:$0xff]
    %v962 = vld [vmem:[#allocation8 + $0x8bc] sm:$0xf]
    %v963 = vld [vmem:[#allocation8 + $0x8c0] sm:$0xff]
    %v964 = vld [vmem:[#allocation8 + $0x8c8] sm:$0xff]
    %v965 = vld [vmem:[#allocation8 + $0x8d0] sm:$0xff]
    %v966 = vld [vmem:[#allocation8 + $0x8d8] sm:$0xf]
    %v967 = vld [vmem:[#allocation8 + $0x8dc] sm:$0xff]
    %v968 = vld [vmem:[#allocation8 + $0x8e4] sm:$0xff]
    %v969 = vld [vmem:[#allocation8 + $0x8ec] sm:$0xff]
    %v970 = vld [vmem:[#allocation8 + $0x8f4] sm:$0xf]
    %v971 = vld [vmem:[#allocation8 + $0x8f8] sm:$0xff]
    %v972 = vld [vmem:[#allocation8 + $0x900] sm:$0xff]
    %v973 = vld [vmem:[#allocation8 + $0x908] sm:$0xff]
    %v974 = vld [vmem:[#allocation8 + $0x910] sm:$0xf]
    %v975 = vld [vmem:[#allocation8 + $0x914] sm:$0xff]
    %v976 = vld [vmem:[#allocation8 + $0x91c] sm:$0xff]
    %v977 = vld [vmem:[#allocation8 + $0x924] sm:$0xff]
    %v978 = vld [vmem:[#allocation8 + $0x92c] sm:$0xf]
    %v979 = vld [vmem:[#allocation8 + $0x930] sm:$0xff]
    %v980 = vld [vmem:[#allocation8 + $0x938] sm:$0xff]
    %v981 = vld [vmem:[#allocation8 + $0x940] sm:$0xff]
    %v982 = vld [vmem:[#allocation8 + $0x948] sm:$0xf]
    %v983 = vld [vmem:[#allocation8 + $0x94c] sm:$0xff]
    %v984 = vld [vmem:[#allocation8 + $0x954] sm:$0xff]
    %v985 = vld [vmem:[#allocation8 + $0x95c] sm:$0xff]
    %v986 = vld [vmem:[#allocation8 + $0x964] sm:$0xf]
    %v987 = vld [vmem:[#allocation8 + $0x968] sm:$0xff]
    %v988 = vld [vmem:[#allocation8 + $0x970] sm:$0xff]
    %v989 = vld [vmem:[#allocation8 + $0x978] sm:$0xff]
    %v990 = vld [vmem:[#allocation8 + $0x980] sm:$0xf]
    %v991 = vld [vmem:[#allocation8 + $0x984] sm:$0xff]
    %v992 = vld [vmem:[#allocation8 + $0x98c] sm:$0xff]
    %v993 = vld [vmem:[#allocation8 + $0x994] sm:$0xff]
    %v994 = vld [vmem:[#allocation8 + $0x99c] sm:$0xf]
    %v995 = vld [vmem:[#allocation8 + $0x9a0] sm:$0xff]
    %v996 = vld [vmem:[#allocation8 + $0x9a8] sm:$0xff]
    %v997 = vld [vmem:[#allocation8 + $0x9b0] sm:$0xff]
    %v998 = vld [vmem:[#allocation8 + $0x9b8] sm:$0xf]
    %v999 = vld [vmem:[#allocation8 + $0x9bc] sm:$0xff]
    %v1000 = vld [vmem:[#allocation8 + $0x9c4] sm:$0xff]
    %v1001 = vld [vmem:[#allocation8 + $0x9cc] sm:$0xff]
    %v1002 = vld [vmem:[#allocation8 + $0x9d4] sm:$0xf]
    %v1003 = vld [vmem:[#allocation8 + $0x9d8] sm:$0xff]
    %v1004 = vld [vmem:[#allocation8 + $0x9e0] sm:$0xff]
    %v1005 = vld [vmem:[#allocation8 + $0x9e8] sm:$0xff]
    %v1006 = vld [vmem:[#allocation8 + $0x9f0] sm:$0xf]
    %v1007 = vld [vmem:[#allocation8 + $0x9f4] sm:$0xff]
    %v1008 = vld [vmem:[#allocation8 + $0x9fc] sm:$0xff]
    %v1009 = vld [vmem:[#allocation8 + $0xa04] sm:$0xff]
    %v1010 = vld [vmem:[#allocation8 + $0xa0c] sm:$0xf]
    %v1011 = vld [vmem:[#allocation8 + $0xa10] sm:$0xff]
    %v1012 = vld [vmem:[#allocation8 + $0xa18] sm:$0xff]
    %v1013 = vld [vmem:[#allocation8 + $0xa20] sm:$0xff]
    %v1014 = vld [vmem:[#allocation8 + $0xa28] sm:$0xf]
    %v1015 = vld [vmem:[#allocation8 + $0xa2c] sm:$0xff]
    %v1016 = vld [vmem:[#allocation8 + $0xa34] sm:$0xff]
    %v1017 = vld [vmem:[#allocation8 + $0xa3c] sm:$0xff]
    %v1018 = vld [vmem:[#allocation8 + $0xa44] sm:$0xf]
    %v1019 = vld [vmem:[#allocation8 + $0xa48] sm:$0xff]
    %v1020 = vld [vmem:[#allocation8 + $0xa50] sm:$0xff]
    %v1021 = vld [vmem:[#allocation8 + $0xa58] sm:$0xff]
    %v1022 = vld [vmem:[#allocation8 + $0xa60] sm:$0xf]
    %v1023 = vld [vmem:[#allocation8 + $0xa64] sm:$0xff]
    %v1024 = vld [vmem:[#allocation8 + $0xa6c] sm:$0xff]
    %v1025 = vld [vmem:[#allocation8 + $0xa74] sm:$0xff]
    %v1026 = vld [vmem:[#allocation8 + $0xa7c] sm:$0xf]
    %v1027 = vld [vmem:[#allocation8 + $0xa80] sm:$0xff]
    %v1028 = vld [vmem:[#allocation8 + $0xa88] sm:$0xff]
    %v1029 = vld [vmem:[#allocation8 + $0xa90] sm:$0xff]
    %v1030 = vld [vmem:[#allocation8 + $0xa98] sm:$0xf]
    %v1031 = vld [vmem:[#allocation8 + $0xa9c] sm:$0xff]
    %v1032 = vld [vmem:[#allocation8 + $0xaa4] sm:$0xff]
    %v1033 = vld [vmem:[#allocation8 + $0xaac] sm:$0xff]
    %v1034 = vld [vmem:[#allocation8 + $0xab4] sm:$0xf]
    %v1035 = vld [vmem:[#allocation10] sm:$0x7f]
    %v1037 = vlaneseq
    %v1038 = vshrl.u32 %v1037, 7
    %v1039 = vsub.s32 0, %v1038
    %v1040 = vrot.slane %v1035, %v1039
    %v1041 = vlaneseq
    %v1042 = vshrl.u32 %v1041, 7
    %v1043 = vsub.s32 1, %v1042
    %v1044 = vrot.slane %v1035, %v1043
    %v1045 = vlaneseq
    %v1046 = vshrl.u32 %v1045, 7
    %v1047 = vsub.s32 2, %v1046
    %v1048 = vrot.slane %v1035, %v1047
    %v1049 = vlaneseq
    %v1050 = vshrl.u32 %v1049, 7
    %v1051 = vsub.s32 3, %v1050
    %v1052 = vrot.slane %v1035, %v1051
    %v1053 = vlaneseq
    %v1054 = vshrl.u32 %v1053, 7
    %v1055 = vsub.s32 4, %v1054
    %v1056 = vrot.slane %v1035, %v1055
    %v1057 = vlaneseq
    %v1058 = vshrl.u32 %v1057, 7
    %v1059 = vsub.s32 5, %v1058
    %v1060 = vrot.slane %v1035, %v1059
    %v1061 = vlaneseq
    %v1062 = vshrl.u32 %v1061, 7
    %v1063 = vsub.s32 6, %v1062
    %v1064 = vrot.slane %v1035, %v1063
    %v1464 = vunpack.c.l.b16 %v643
    %v1465 = vunpack.c.h.b16 %v643
    %v1466 = vunpack.c.l.b16 %v644
    %v1467 = vunpack.c.h.b16 %v644
    %v1468 = vunpack.c.l.b16 %v645
    %v1469 = vunpack.c.h.b16 %v645
    %v1470 = vunpack.c.l.b16 %v646
    %v1471 = vunpack.c.l.b16 %v647
    %v1472 = vunpack.c.h.b16 %v647
    %v1473 = vunpack.c.l.b16 %v648
    %v1474 = vunpack.c.h.b16 %v648
    %v1475 = vunpack.c.l.b16 %v649
    %v1476 = vunpack.c.h.b16 %v649
    %v1477 = vunpack.c.l.b16 %v650
    %v1478 = vunpack.c.l.b16 %v651
    %v1479 = vunpack.c.h.b16 %v651
    %v1480 = vunpack.c.l.b16 %v652
    %v1481 = vunpack.c.h.b16 %v652
    %v1482 = vunpack.c.l.b16 %v653
    %v1483 = vunpack.c.h.b16 %v653
    %v1484 = vunpack.c.l.b16 %v654
    %v1485 = vunpack.c.l.b16 %v655
    %v1486 = vunpack.c.h.b16 %v655
    %v1487 = vunpack.c.l.b16 %v656
    %v1488 = vunpack.c.h.b16 %v656
    %v1489 = vunpack.c.l.b16 %v657
    %v1490 = vunpack.c.h.b16 %v657
    %v1491 = vunpack.c.l.b16 %v658
    %v1492 = vunpack.c.l.b16 %v659
    %v1493 = vunpack.c.h.b16 %v659
    %v1494 = vunpack.c.l.b16 %v660
    %v1495 = vunpack.c.h.b16 %v660
    %v1496 = vunpack.c.l.b16 %v661
    %v1497 = vunpack.c.h.b16 %v661
    %v1498 = vunpack.c.l.b16 %v662
    %v1499 = vunpack.c.l.b16 %v663
    %v1500 = vunpack.c.h.b16 %v663
    %v1501 = vunpack.c.l.b16 %v664
    %v1502 = vunpack.c.h.b16 %v664
    %v1503 = vunpack.c.l.b16 %v665
    %v1504 = vunpack.c.h.b16 %v665
    %v1505 = vunpack.c.l.b16 %v666
    %v1506 = vunpack.c.l.b16 %v667
    %v1507 = vunpack.c.h.b16 %v667
    %v1508 = vunpack.c.l.b16 %v668
    %v1509 = vunpack.c.h.b16 %v668
    %v1510 = vunpack.c.l.b16 %v669
    %v1511 = vunpack.c.h.b16 %v669
    %v1512 = vunpack.c.l.b16 %v670
    %v1513 = vunpack.c.l.b16 %v671
    %v1514 = vunpack.c.h.b16 %v671
    %v1515 = vunpack.c.l.b16 %v672
    %v1516 = vunpack.c.h.b16 %v672
    %v1517 = vunpack.c.l.b16 %v673
    %v1518 = vunpack.c.h.b16 %v673
    %v1519 = vunpack.c.l.b16 %v674
    %v1520 = vunpack.c.l.b16 %v675
    %v1521 = vunpack.c.h.b16 %v675
    %v1522 = vunpack.c.l.b16 %v676
    %v1523 = vunpack.c.h.b16 %v676
    %v1524 = vunpack.c.l.b16 %v677
    %v1525 = vunpack.c.h.b16 %v677
    %v1526 = vunpack.c.l.b16 %v678
    %v1527 = vunpack.c.l.b16 %v679
    %v1528 = vunpack.c.h.b16 %v679
    %v1529 = vunpack.c.l.b16 %v680
    %v1530 = vunpack.c.h.b16 %v680
    %v1531 = vunpack.c.l.b16 %v681
    %v1532 = vunpack.c.h.b16 %v681
    %v1533 = vunpack.c.l.b16 %v682
    %v1534 = vunpack.c.l.b16 %v683
    %v1535 = vunpack.c.h.b16 %v683
    %v1536 = vunpack.c.l.b16 %v684
    %v1537 = vunpack.c.h.b16 %v684
    %v1538 = vunpack.c.l.b16 %v685
    %v1539 = vunpack.c.h.b16 %v685
    %v1540 = vunpack.c.l.b16 %v686
    %v1541 = vunpack.c.l.b16 %v687
    %v1542 = vunpack.c.h.b16 %v687
    %v1543 = vunpack.c.l.b16 %v688
    %v1544 = vunpack.c.h.b16 %v688
    %v1545 = vunpack.c.l.b16 %v689
    %v1546 = vunpack.c.h.b16 %v689
    %v1547 = vunpack.c.l.b16 %v690
    %v1548 = vunpack.c.l.b16 %v691
    %v1549 = vunpack.c.h.b16 %v691
    %v1550 = vunpack.c.l.b16 %v692
    %v1551 = vunpack.c.h.b16 %v692
    %v1552 = vunpack.c.l.b16 %v693
    %v1553 = vunpack.c.h.b16 %v693
    %v1554 = vunpack.c.l.b16 %v694
    %v1555 = vunpack.c.l.b16 %v695
    %v1556 = vunpack.c.h.b16 %v695
    %v1557 = vunpack.c.l.b16 %v696
    %v1558 = vunpack.c.h.b16 %v696
    %v1559 = vunpack.c.l.b16 %v697
    %v1560 = vunpack.c.h.b16 %v697
    %v1561 = vunpack.c.l.b16 %v698
    %v1562 = vunpack.c.l.b16 %v699
    %v1563 = vunpack.c.h.b16 %v699
    %v1564 = vunpack.c.l.b16 %v700
    %v1565 = vunpack.c.h.b16 %v700
    %v1566 = vunpack.c.l.b16 %v701
    %v1567 = vunpack.c.h.b16 %v701
    %v1568 = vunpack.c.l.b16 %v702
    %v1569 = vunpack.c.l.b16 %v703
    %v1570 = vunpack.c.h.b16 %v703
    %v1571 = vunpack.c.l.b16 %v704
    %v1572 = vunpack.c.h.b16 %v704
    %v1573 = vunpack.c.l.b16 %v705
    %v1574 = vunpack.c.h.b16 %v705
    %v1575 = vunpack.c.l.b16 %v706
    %v1576 = vunpack.c.l.b16 %v707
    %v1577 = vunpack.c.h.b16 %v707
    %v1578 = vunpack.c.l.b16 %v708
    %v1579 = vunpack.c.h.b16 %v708
    %v1580 = vunpack.c.l.b16 %v709
    %v1581 = vunpack.c.h.b16 %v709
    %v1582 = vunpack.c.l.b16 %v710
    %v1583 = vunpack.c.l.b16 %v711
    %v1584 = vunpack.c.h.b16 %v711
    %v1585 = vunpack.c.l.b16 %v712
    %v1586 = vunpack.c.h.b16 %v712
    %v1587 = vunpack.c.l.b16 %v713
    %v1588 = vunpack.c.h.b16 %v713
    %v1589 = vunpack.c.l.b16 %v714
    %v1590 = vunpack.c.l.b16 %v715
    %v1591 = vunpack.c.h.b16 %v715
    %v1592 = vunpack.c.l.b16 %v716
    %v1593 = vunpack.c.h.b16 %v716
    %v1594 = vunpack.c.l.b16 %v717
    %v1595 = vunpack.c.h.b16 %v717
    %v1596 = vunpack.c.l.b16 %v718
    %v1597 = vunpack.c.l.b16 %v719
    %v1598 = vunpack.c.h.b16 %v719
    %v1599 = vunpack.c.l.b16 %v720
    %v1600 = vunpack.c.h.b16 %v720
    %v1601 = vunpack.c.l.b16 %v721
    %v1602 = vunpack.c.h.b16 %v721
    %v1603 = vunpack.c.l.b16 %v722
    %v1604 = vunpack.c.l.b16 %v723
    %v1605 = vunpack.c.h.b16 %v723
    %v1606 = vunpack.c.l.b16 %v724
    %v1607 = vunpack.c.h.b16 %v724
    %v1608 = vunpack.c.l.b16 %v725
    %v1609 = vunpack.c.h.b16 %v725
    %v1610 = vunpack.c.l.b16 %v726
    %v1611 = vunpack.c.l.b16 %v727
    %v1612 = vunpack.c.h.b16 %v727
    %v1613 = vunpack.c.l.b16 %v728
    %v1614 = vunpack.c.h.b16 %v728
    %v1615 = vunpack.c.l.b16 %v729
    %v1616 = vunpack.c.h.b16 %v729
    %v1617 = vunpack.c.l.b16 %v730
    %v1618 = vunpack.c.l.b16 %v731
    %v1619 = vunpack.c.h.b16 %v731
    %v1620 = vunpack.c.l.b16 %v732
    %v1621 = vunpack.c.h.b16 %v732
    %v1622 = vunpack.c.l.b16 %v733
    %v1623 = vunpack.c.h.b16 %v733
    %v1624 = vunpack.c.l.b16 %v734
    %v1625 = vunpack.c.l.b16 %v735
    %v1626 = vunpack.c.h.b16 %v735
    %v1627 = vunpack.c.l.b16 %v736
    %v1628 = vunpack.c.h.b16 %v736
    %v1629 = vunpack.c.l.b16 %v737
    %v1630 = vunpack.c.h.b16 %v737
    %v1631 = vunpack.c.l.b16 %v738
    %v1632 = vunpack.c.l.b16 %v739
    %v1633 = vunpack.c.h.b16 %v739
    %v1634 = vunpack.c.l.b16 %v740
    %v1635 = vunpack.c.h.b16 %v740
    %v1636 = vunpack.c.l.b16 %v741
    %v1637 = vunpack.c.h.b16 %v741
    %v1638 = vunpack.c.l.b16 %v742
    %v1639 = vunpack.c.l.b16 %v743
    %v1640 = vunpack.c.h.b16 %v743
    %v1641 = vunpack.c.l.b16 %v744
    %v1642 = vunpack.c.h.b16 %v744
    %v1643 = vunpack.c.l.b16 %v745
    %v1644 = vunpack.c.h.b16 %v745
    %v1645 = vunpack.c.l.b16 %v746
    %v1646 = vunpack.c.l.b16 %v747
    %v1647 = vunpack.c.h.b16 %v747
    %v1648 = vunpack.c.l.b16 %v748
    %v1649 = vunpack.c.h.b16 %v748
    %v1650 = vunpack.c.l.b16 %v749
    %v1651 = vunpack.c.h.b16 %v749
    %v1652 = vunpack.c.l.b16 %v750
    %v1653 = vunpack.c.l.b16 %v751
    %v1654 = vunpack.c.h.b16 %v751
    %v1655 = vunpack.c.l.b16 %v752
    %v1656 = vunpack.c.h.b16 %v752
    %v1657 = vunpack.c.l.b16 %v753
    %v1658 = vunpack.c.h.b16 %v753
    %v1659 = vunpack.c.l.b16 %v754
    %v1660 = vunpack.c.l.b16 %v755
    %v1661 = vunpack.c.h.b16 %v755
    %v1662 = vunpack.c.l.b16 %v756
    %v1663 = vunpack.c.h.b16 %v756
    %v1664 = vunpack.c.l.b16 %v757
    %v1665 = vunpack.c.h.b16 %v757
    %v1666 = vunpack.c.l.b16 %v758
    %v1667 = vunpack.c.l.b16 %v759
    %v1668 = vunpack.c.h.b16 %v759
    %v1669 = vunpack.c.l.b16 %v760
    %v1670 = vunpack.c.h.b16 %v760
    %v1671 = vunpack.c.l.b16 %v761
    %v1672 = vunpack.c.h.b16 %v761
    %v1673 = vunpack.c.l.b16 %v762
    %v1674 = vunpack.c.l.b16 %v763
    %v1675 = vunpack.c.h.b16 %v763
    %v1676 = vunpack.c.l.b16 %v764
    %v1677 = vunpack.c.h.b16 %v764
    %v1678 = vunpack.c.l.b16 %v765
    %v1679 = vunpack.c.h.b16 %v765
    %v1680 = vunpack.c.l.b16 %v766
    %v1681 = vunpack.c.l.b16 %v767
    %v1682 = vunpack.c.h.b16 %v767
    %v1683 = vunpack.c.l.b16 %v768
    %v1684 = vunpack.c.h.b16 %v768
    %v1685 = vunpack.c.l.b16 %v769
    %v1686 = vunpack.c.h.b16 %v769
    %v1687 = vunpack.c.l.b16 %v770
    %v1688 = vunpack.c.l.b16 %v771
    %v1689 = vunpack.c.h.b16 %v771
    %v1690 = vunpack.c.l.b16 %v772
    %v1691 = vunpack.c.h.b16 %v772
    %v1692 = vunpack.c.l.b16 %v773
    %v1693 = vunpack.c.h.b16 %v773
    %v1694 = vunpack.c.l.b16 %v774
    %v1695 = vunpack.c.l.b16 %v775
    %v1696 = vunpack.c.h.b16 %v775
    %v1697 = vunpack.c.l.b16 %v776
    %v1698 = vunpack.c.h.b16 %v776
    %v1699 = vunpack.c.l.b16 %v777
    %v1700 = vunpack.c.h.b16 %v777
    %v1701 = vunpack.c.l.b16 %v778
    %v1702 = vunpack.c.l.b16 %v779
    %v1703 = vunpack.c.h.b16 %v779
    %v1704 = vunpack.c.l.b16 %v780
    %v1705 = vunpack.c.h.b16 %v780
    %v1706 = vunpack.c.l.b16 %v781
    %v1707 = vunpack.c.h.b16 %v781
    %v1708 = vunpack.c.l.b16 %v782
    %v1709 = vunpack.c.l.b16 %v783
    %v1710 = vunpack.c.h.b16 %v783
    %v1711 = vunpack.c.l.b16 %v784
    %v1712 = vunpack.c.h.b16 %v784
    %v1713 = vunpack.c.l.b16 %v785
    %v1714 = vunpack.c.h.b16 %v785
    %v1715 = vunpack.c.l.b16 %v786
    %v1716 = vunpack.c.l.b16 %v787
    %v1717 = vunpack.c.h.b16 %v787
    %v1718 = vunpack.c.l.b16 %v788
    %v1719 = vunpack.c.h.b16 %v788
    %v1720 = vunpack.c.l.b16 %v789
    %v1721 = vunpack.c.h.b16 %v789
    %v1722 = vunpack.c.l.b16 %v790
    %v1723 = vunpack.c.l.b16 %v791
    %v1724 = vunpack.c.h.b16 %v791
    %v1725 = vunpack.c.l.b16 %v792
    %v1726 = vunpack.c.h.b16 %v792
    %v1727 = vunpack.c.l.b16 %v793
    %v1728 = vunpack.c.h.b16 %v793
    %v1729 = vunpack.c.l.b16 %v794
    %v1730 = vunpack.c.l.b16 %v795
    %v1731 = vunpack.c.h.b16 %v795
    %v1732 = vunpack.c.l.b16 %v796
    %v1733 = vunpack.c.h.b16 %v796
    %v1734 = vunpack.c.l.b16 %v797
    %v1735 = vunpack.c.h.b16 %v797
    %v1736 = vunpack.c.l.b16 %v798
    %v1737 = vunpack.c.l.b16 %v799
    %v1738 = vunpack.c.h.b16 %v799
    %v1739 = vunpack.c.l.b16 %v800
    %v1740 = vunpack.c.h.b16 %v800
    %v1741 = vunpack.c.l.b16 %v801
    %v1742 = vunpack.c.h.b16 %v801
    %v1743 = vunpack.c.l.b16 %v802
    %v1744 = vunpack.c.l.b16 %v803
    %v1745 = vunpack.c.h.b16 %v803
    %v1746 = vunpack.c.l.b16 %v804
    %v1747 = vunpack.c.h.b16 %v804
    %v1748 = vunpack.c.l.b16 %v805
    %v1749 = vunpack.c.h.b16 %v805
    %v1750 = vunpack.c.l.b16 %v806
    %v1751 = vunpack.c.l.b16 %v807
    %v1752 = vunpack.c.h.b16 %v807
    %v1753 = vunpack.c.l.b16 %v808
    %v1754 = vunpack.c.h.b16 %v808
    %v1755 = vunpack.c.l.b16 %v809
    %v1756 = vunpack.c.h.b16 %v809
    %v1757 = vunpack.c.l.b16 %v810
    %v1758 = vunpack.c.l.b16 %v811
    %v1759 = vunpack.c.h.b16 %v811
    %v1760 = vunpack.c.l.b16 %v812
    %v1761 = vunpack.c.h.b16 %v812
    %v1762 = vunpack.c.l.b16 %v813
    %v1763 = vunpack.c.h.b16 %v813
    %v1764 = vunpack.c.l.b16 %v814
    %v1765 = vunpack.c.l.b16 %v815
    %v1766 = vunpack.c.h.b16 %v815
    %v1767 = vunpack.c.l.b16 %v816
    %v1768 = vunpack.c.h.b16 %v816
    %v1769 = vunpack.c.l.b16 %v817
    %v1770 = vunpack.c.h.b16 %v817
    %v1771 = vunpack.c.l.b16 %v818
    %v1772 = vunpack.c.l.b16 %v819
    %v1773 = vunpack.c.h.b16 %v819
    %v1774 = vunpack.c.l.b16 %v820
    %v1775 = vunpack.c.h.b16 %v820
    %v1776 = vunpack.c.l.b16 %v821
    %v1777 = vunpack.c.h.b16 %v821
    %v1778 = vunpack.c.l.b16 %v822
    %v1779 = vunpack.c.l.b16 %v823
    %v1780 = vunpack.c.h.b16 %v823
    %v1781 = vunpack.c.l.b16 %v824
    %v1782 = vunpack.c.h.b16 %v824
    %v1783 = vunpack.c.l.b16 %v825
    %v1784 = vunpack.c.h.b16 %v825
    %v1785 = vunpack.c.l.b16 %v826
    %v1786 = vunpack.c.l.b16 %v827
    %v1787 = vunpack.c.h.b16 %v827
    %v1788 = vunpack.c.l.b16 %v828
    %v1789 = vunpack.c.h.b16 %v828
    %v1790 = vunpack.c.l.b16 %v829
    %v1791 = vunpack.c.h.b16 %v829
    %v1792 = vunpack.c.l.b16 %v830
    %v1793 = vunpack.c.l.b16 %v831
    %v1794 = vunpack.c.h.b16 %v831
    %v1795 = vunpack.c.l.b16 %v832
    %v1796 = vunpack.c.h.b16 %v832
    %v1797 = vunpack.c.l.b16 %v833
    %v1798 = vunpack.c.h.b16 %v833
    %v1799 = vunpack.c.l.b16 %v834
    %v1800 = vunpack.c.l.b16 %v835
    %v1801 = vunpack.c.h.b16 %v835
    %v1802 = vunpack.c.l.b16 %v836
    %v1803 = vunpack.c.h.b16 %v836
    %v1804 = vunpack.c.l.b16 %v837
    %v1805 = vunpack.c.h.b16 %v837
    %v1806 = vunpack.c.l.b16 %v838
    %v1807 = vunpack.c.l.b16 %v839
    %v1808 = vunpack.c.h.b16 %v839
    %v1809 = vunpack.c.l.b16 %v840
    %v1810 = vunpack.c.h.b16 %v840
    %v1811 = vunpack.c.l.b16 %v841
    %v1812 = vunpack.c.h.b16 %v841
    %v1813 = vunpack.c.l.b16 %v842
    %v1814 = vunpack.c.l.b16 %v843
    %v1815 = vunpack.c.h.b16 %v843
    %v1816 = vunpack.c.l.b16 %v844
    %v1817 = vunpack.c.h.b16 %v844
    %v1818 = vunpack.c.l.b16 %v845
    %v1819 = vunpack.c.h.b16 %v845
    %v1820 = vunpack.c.l.b16 %v846
    %v1821 = vunpack.c.l.b16 %v847
    %v1822 = vunpack.c.h.b16 %v847
    %v1823 = vunpack.c.l.b16 %v848
    %v1824 = vunpack.c.h.b16 %v848
    %v1825 = vunpack.c.l.b16 %v849
    %v1826 = vunpack.c.h.b16 %v849
    %v1827 = vunpack.c.l.b16 %v850
    %v1828 = vunpack.c.l.b16 %v851
    %v1829 = vunpack.c.h.b16 %v851
    %v1830 = vunpack.c.l.b16 %v852
    %v1831 = vunpack.c.h.b16 %v852
    %v1832 = vunpack.c.l.b16 %v853
    %v1833 = vunpack.c.h.b16 %v853
    %v1834 = vunpack.c.l.b16 %v854
    %v1835 = vunpack.c.l.b16 %v855
    %v1836 = vunpack.c.h.b16 %v855
    %v1837 = vunpack.c.l.b16 %v856
    %v1838 = vunpack.c.h.b16 %v856
    %v1839 = vunpack.c.l.b16 %v857
    %v1840 = vunpack.c.h.b16 %v857
    %v1841 = vunpack.c.l.b16 %v858
    %v1842 = vunpack.c.l.b16 %v859
    %v1843 = vunpack.c.h.b16 %v859
    %v1844 = vunpack.c.l.b16 %v860
    %v1845 = vunpack.c.h.b16 %v860
    %v1846 = vunpack.c.l.b16 %v861
    %v1847 = vunpack.c.h.b16 %v861
    %v1848 = vunpack.c.l.b16 %v862
    %v1849 = vunpack.c.l.b16 %v863
    %v1850 = vunpack.c.h.b16 %v863
    %v1851 = vunpack.c.l.b16 %v864
    %v1852 = vunpack.c.h.b16 %v864
    %v1853 = vunpack.c.l.b16 %v865
    %v1854 = vunpack.c.h.b16 %v865
    %v1855 = vunpack.c.l.b16 %v866
    %v1856 = vunpack.c.l.b16 %v867
    %v1857 = vunpack.c.h.b16 %v867
    %v1858 = vunpack.c.l.b16 %v868
    %v1859 = vunpack.c.h.b16 %v868
    %v1860 = vunpack.c.l.b16 %v869
    %v1861 = vunpack.c.h.b16 %v869
    %v1862 = vunpack.c.l.b16 %v870
    %v1863 = vunpack.c.l.b16 %v871
    %v1864 = vunpack.c.h.b16 %v871
    %v1865 = vunpack.c.l.b16 %v872
    %v1866 = vunpack.c.h.b16 %v872
    %v1867 = vunpack.c.l.b16 %v873
    %v1868 = vunpack.c.h.b16 %v873
    %v1869 = vunpack.c.l.b16 %v874
    %v1870 = vunpack.c.l.b16 %v875
    %v1871 = vunpack.c.h.b16 %v875
    %v1872 = vunpack.c.l.b16 %v876
    %v1873 = vunpack.c.h.b16 %v876
    %v1874 = vunpack.c.l.b16 %v877
    %v1875 = vunpack.c.h.b16 %v877
    %v1876 = vunpack.c.l.b16 %v878
    %v1877 = vunpack.c.l.b16 %v879
    %v1878 = vunpack.c.h.b16 %v879
    %v1879 = vunpack.c.l.b16 %v880
    %v1880 = vunpack.c.h.b16 %v880
    %v1881 = vunpack.c.l.b16 %v881
    %v1882 = vunpack.c.h.b16 %v881
    %v1883 = vunpack.c.l.b16 %v882
    %v1884 = vunpack.c.l.b16 %v883
    %v1885 = vunpack.c.h.b16 %v883
    %v1886 = vunpack.c.l.b16 %v884
    %v1887 = vunpack.c.h.b16 %v884
    %v1888 = vunpack.c.l.b16 %v885
    %v1889 = vunpack.c.h.b16 %v885
    %v1890 = vunpack.c.l.b16 %v886
    %v1891 = vunpack.c.l.b16 %v887
    %v1892 = vunpack.c.h.b16 %v887
    %v1893 = vunpack.c.l.b16 %v888
    %v1894 = vunpack.c.h.b16 %v888
    %v1895 = vunpack.c.l.b16 %v889
    %v1896 = vunpack.c.h.b16 %v889
    %v1897 = vunpack.c.l.b16 %v890
    %v1898 = vunpack.c.l.b16 %v891
    %v1899 = vunpack.c.h.b16 %v891
    %v1900 = vunpack.c.l.b16 %v892
    %v1901 = vunpack.c.h.b16 %v892
    %v1902 = vunpack.c.l.b16 %v893
    %v1903 = vunpack.c.h.b16 %v893
    %v1904 = vunpack.c.l.b16 %v894
    %v1905 = vunpack.c.l.b16 %v895
    %v1906 = vunpack.c.h.b16 %v895
    %v1907 = vunpack.c.l.b16 %v896
    %v1908 = vunpack.c.h.b16 %v896
    %v1909 = vunpack.c.l.b16 %v897
    %v1910 = vunpack.c.h.b16 %v897
    %v1911 = vunpack.c.l.b16 %v898
    %v1912 = vunpack.c.l.b16 %v899
    %v1913 = vunpack.c.h.b16 %v899
    %v1914 = vunpack.c.l.b16 %v900
    %v1915 = vunpack.c.h.b16 %v900
    %v1916 = vunpack.c.l.b16 %v901
    %v1917 = vunpack.c.h.b16 %v901
    %v1918 = vunpack.c.l.b16 %v902
    %v1919 = vunpack.c.l.b16 %v903
    %v1920 = vunpack.c.h.b16 %v903
    %v1921 = vunpack.c.l.b16 %v904
    %v1922 = vunpack.c.h.b16 %v904
    %v1923 = vunpack.c.l.b16 %v905
    %v1924 = vunpack.c.h.b16 %v905
    %v1925 = vunpack.c.l.b16 %v906
    %v1926 = vunpack.c.l.b16 %v907
    %v1927 = vunpack.c.h.b16 %v907
    %v1928 = vunpack.c.l.b16 %v908
    %v1929 = vunpack.c.h.b16 %v908
    %v1930 = vunpack.c.l.b16 %v909
    %v1931 = vunpack.c.h.b16 %v909
    %v1932 = vunpack.c.l.b16 %v910
    %v1933 = vunpack.c.l.b16 %v911
    %v1934 = vunpack.c.h.b16 %v911
    %v1935 = vunpack.c.l.b16 %v912
    %v1936 = vunpack.c.h.b16 %v912
    %v1937 = vunpack.c.l.b16 %v913
    %v1938 = vunpack.c.h.b16 %v913
    %v1939 = vunpack.c.l.b16 %v914
    %v1940 = vunpack.c.l.b16 %v915
    %v1941 = vunpack.c.h.b16 %v915
    %v1942 = vunpack.c.l.b16 %v916
    %v1943 = vunpack.c.h.b16 %v916
    %v1944 = vunpack.c.l.b16 %v917
    %v1945 = vunpack.c.h.b16 %v917
    %v1946 = vunpack.c.l.b16 %v918
    %v1947 = vunpack.c.l.b16 %v919
    %v1948 = vunpack.c.h.b16 %v919
    %v1949 = vunpack.c.l.b16 %v920
    %v1950 = vunpack.c.h.b16 %v920
    %v1951 = vunpack.c.l.b16 %v921
    %v1952 = vunpack.c.h.b16 %v921
    %v1953 = vunpack.c.l.b16 %v922
    %v1954 = vunpack.c.l.b16 %v923
    %v1955 = vunpack.c.h.b16 %v923
    %v1956 = vunpack.c.l.b16 %v924
    %v1957 = vunpack.c.h.b16 %v924
    %v1958 = vunpack.c.l.b16 %v925
    %v1959 = vunpack.c.h.b16 %v925
    %v1960 = vunpack.c.l.b16 %v926
    %v1961 = vunpack.c.l.b16 %v927
    %v1962 = vunpack.c.h.b16 %v927
    %v1963 = vunpack.c.l.b16 %v928
    %v1964 = vunpack.c.h.b16 %v928
    %v1965 = vunpack.c.l.b16 %v929
    %v1966 = vunpack.c.h.b16 %v929
    %v1967 = vunpack.c.l.b16 %v930
    %v1968 = vunpack.c.l.b16 %v931
    %v1969 = vunpack.c.h.b16 %v931
    %v1970 = vunpack.c.l.b16 %v932
    %v1971 = vunpack.c.h.b16 %v932
    %v1972 = vunpack.c.l.b16 %v933
    %v1973 = vunpack.c.h.b16 %v933
    %v1974 = vunpack.c.l.b16 %v934
    %v1975 = vunpack.c.l.b16 %v935
    %v1976 = vunpack.c.h.b16 %v935
    %v1977 = vunpack.c.l.b16 %v936
    %v1978 = vunpack.c.h.b16 %v936
    %v1979 = vunpack.c.l.b16 %v937
    %v1980 = vunpack.c.h.b16 %v937
    %v1981 = vunpack.c.l.b16 %v938
    %v1982 = vunpack.c.l.b16 %v939
    %v1983 = vunpack.c.h.b16 %v939
    %v1984 = vunpack.c.l.b16 %v940
    %v1985 = vunpack.c.h.b16 %v940
    %v1986 = vunpack.c.l.b16 %v941
    %v1987 = vunpack.c.h.b16 %v941
    %v1988 = vunpack.c.l.b16 %v942
    %v1989 = vunpack.c.l.b16 %v943
    %v1990 = vunpack.c.h.b16 %v943
    %v1991 = vunpack.c.l.b16 %v944
    %v1992 = vunpack.c.h.b16 %v944
    %v1993 = vunpack.c.l.b16 %v945
    %v1994 = vunpack.c.h.b16 %v945
    %v1995 = vunpack.c.l.b16 %v946
    %v1996 = vunpack.c.l.b16 %v947
    %v1997 = vunpack.c.h.b16 %v947
    %v1998 = vunpack.c.l.b16 %v948
    %v1999 = vunpack.c.h.b16 %v948
    %v2000 = vunpack.c.l.b16 %v949
    %v2001 = vunpack.c.h.b16 %v949
    %v2002 = vunpack.c.l.b16 %v950
    %v2003 = vunpack.c.l.b16 %v951
    %v2004 = vunpack.c.h.b16 %v951
    %v2005 = vunpack.c.l.b16 %v952
    %v2006 = vunpack.c.h.b16 %v952
    %v2007 = vunpack.c.l.b16 %v953
    %v2008 = vunpack.c.h.b16 %v953
    %v2009 = vunpack.c.l.b16 %v954
    %v2010 = vunpack.c.l.b16 %v955
    %v2011 = vunpack.c.h.b16 %v955
    %v2012 = vunpack.c.l.b16 %v956
    %v2013 = vunpack.c.h.b16 %v956
    %v2014 = vunpack.c.l.b16 %v957
    %v2015 = vunpack.c.h.b16 %v957
    %v2016 = vunpack.c.l.b16 %v958
    %v2017 = vunpack.c.l.b16 %v959
    %v2018 = vunpack.c.h.b16 %v959
    %v2019 = vunpack.c.l.b16 %v960
    %v2020 = vunpack.c.h.b16 %v960
    %v2021 = vunpack.c.l.b16 %v961
    %v2022 = vunpack.c.h.b16 %v961
    %v2023 = vunpack.c.l.b16 %v962
    %v2024 = vunpack.c.l.b16 %v963
    %v2025 = vunpack.c.h.b16 %v963
    %v2026 = vunpack.c.l.b16 %v964
    %v2027 = vunpack.c.h.b16 %v964
    %v2028 = vunpack.c.l.b16 %v965
    %v2029 = vunpack.c.h.b16 %v965
    %v2030 = vunpack.c.l.b16 %v966
    %v2031 = vunpack.c.l.b16 %v967
    %v2032 = vunpack.c.h.b16 %v967
    %v2033 = vunpack.c.l.b16 %v968
    %v2034 = vunpack.c.h.b16 %v968
    %v2035 = vunpack.c.l.b16 %v969
    %v2036 = vunpack.c.h.b16 %v969
    %v2037 = vunpack.c.l.b16 %v970
    %v2038 = vunpack.c.l.b16 %v971
    %v2039 = vunpack.c.h.b16 %v971
    %v2040 = vunpack.c.l.b16 %v972
    %v2041 = vunpack.c.h.b16 %v972
    %v2042 = vunpack.c.l.b16 %v973
    %v2043 = vunpack.c.h.b16 %v973
    %v2044 = vunpack.c.l.b16 %v974
    %v2045 = vunpack.c.l.b16 %v975
    %v2046 = vunpack.c.h.b16 %v975
    %v2047 = vunpack.c.l.b16 %v976
    %v2048 = vunpack.c.h.b16 %v976
    %v2049 = vunpack.c.l.b16 %v977
    %v2050 = vunpack.c.h.b16 %v977
    %v2051 = vunpack.c.l.b16 %v978
    %v2052 = vunpack.c.l.b16 %v979
    %v2053 = vunpack.c.h.b16 %v979
    %v2054 = vunpack.c.l.b16 %v980
    %v2055 = vunpack.c.h.b16 %v980
    %v2056 = vunpack.c.l.b16 %v981
    %v2057 = vunpack.c.h.b16 %v981
    %v2058 = vunpack.c.l.b16 %v982
    %v2059 = vunpack.c.l.b16 %v983
    %v2060 = vunpack.c.h.b16 %v983
    %v2061 = vunpack.c.l.b16 %v984
    %v2062 = vunpack.c.h.b16 %v984
    %v2063 = vunpack.c.l.b16 %v985
    %v2064 = vunpack.c.h.b16 %v985
    %v2065 = vunpack.c.l.b16 %v986
    %v2066 = vunpack.c.l.b16 %v987
    %v2067 = vunpack.c.h.b16 %v987
    %v2068 = vunpack.c.l.b16 %v988
    %v2069 = vunpack.c.h.b16 %v988
    %v2070 = vunpack.c.l.b16 %v989
    %v2071 = vunpack.c.h.b16 %v989
    %v2072 = vunpack.c.l.b16 %v990
    %v2073 = vunpack.c.l.b16 %v991
    %v2074 = vunpack.c.h.b16 %v991
    %v2075 = vunpack.c.l.b16 %v992
    %v2076 = vunpack.c.h.b16 %v992
    %v2077 = vunpack.c.l.b16 %v993
    %v2078 = vunpack.c.h.b16 %v993
    %v2079 = vunpack.c.l.b16 %v994
    %v2080 = vunpack.c.l.b16 %v995
    %v2081 = vunpack.c.h.b16 %v995
    %v2082 = vunpack.c.l.b16 %v996
    %v2083 = vunpack.c.h.b16 %v996
    %v2084 = vunpack.c.l.b16 %v997
    %v2085 = vunpack.c.h.b16 %v997
    %v2086 = vunpack.c.l.b16 %v998
    %v2087 = vunpack.c.l.b16 %v999
    %v2088 = vunpack.c.h.b16 %v999
    %v2089 = vunpack.c.l.b16 %v1000
    %v2090 = vunpack.c.h.b16 %v1000
    %v2091 = vunpack.c.l.b16 %v1001
    %v2092 = vunpack.c.h.b16 %v1001
    %v2093 = vunpack.c.l.b16 %v1002
    %v2094 = vunpack.c.l.b16 %v1003
    %v2095 = vunpack.c.h.b16 %v1003
    %v2096 = vunpack.c.l.b16 %v1004
    %v2097 = vunpack.c.h.b16 %v1004
    %v2098 = vunpack.c.l.b16 %v1005
    %v2099 = vunpack.c.h.b16 %v1005
    %v2100 = vunpack.c.l.b16 %v1006
    %v2101 = vunpack.c.l.b16 %v1007
    %v2102 = vunpack.c.h.b16 %v1007
    %v2103 = vunpack.c.l.b16 %v1008
    %v2104 = vunpack.c.h.b16 %v1008
    %v2105 = vunpack.c.l.b16 %v1009
    %v2106 = vunpack.c.h.b16 %v1009
    %v2107 = vunpack.c.l.b16 %v1010
    %v2108 = vunpack.c.l.b16 %v1011
    %v2109 = vunpack.c.h.b16 %v1011
    %v2110 = vunpack.c.l.b16 %v1012
    %v2111 = vunpack.c.h.b16 %v1012
    %v2112 = vunpack.c.l.b16 %v1013
    %v2113 = vunpack.c.h.b16 %v1013
    %v2114 = vunpack.c.l.b16 %v1014
    %v2115 = vunpack.c.l.b16 %v1015
    %v2116 = vunpack.c.h.b16 %v1015
    %v2117 = vunpack.c.l.b16 %v1016
    %v2118 = vunpack.c.h.b16 %v1016
    %v2119 = vunpack.c.l.b16 %v1017
    %v2120 = vunpack.c.h.b16 %v1017
    %v2121 = vunpack.c.l.b16 %v1018
    %v2122 = vunpack.c.l.b16 %v1019
    %v2123 = vunpack.c.h.b16 %v1019
    %v2124 = vunpack.c.l.b16 %v1020
    %v2125 = vunpack.c.h.b16 %v1020
    %v2126 = vunpack.c.l.b16 %v1021
    %v2127 = vunpack.c.h.b16 %v1021
    %v2128 = vunpack.c.l.b16 %v1022
    %v2129 = vunpack.c.l.b16 %v1023
    %v2130 = vunpack.c.h.b16 %v1023
    %v2131 = vunpack.c.l.b16 %v1024
    %v2132 = vunpack.c.h.b16 %v1024
    %v2133 = vunpack.c.l.b16 %v1025
    %v2134 = vunpack.c.h.b16 %v1025
    %v2135 = vunpack.c.l.b16 %v1026
    %v2136 = vunpack.c.l.b16 %v1027
    %v2137 = vunpack.c.h.b16 %v1027
    %v2138 = vunpack.c.l.b16 %v1028
    %v2139 = vunpack.c.h.b16 %v1028
    %v2140 = vunpack.c.l.b16 %v1029
    %v2141 = vunpack.c.h.b16 %v1029
    %v2142 = vunpack.c.l.b16 %v1030
    %v2143 = vunpack.c.l.b16 %v1031
    %v2144 = vunpack.c.h.b16 %v1031
    %v2145 = vunpack.c.l.b16 %v1032
    %v2146 = vunpack.c.h.b16 %v1032
    %v2147 = vunpack.c.l.b16 %v1033
    %v2148 = vunpack.c.h.b16 %v1033
    %v2149 = vunpack.c.l.b16 %v1034
    %v2150 = vpack.c.b16 %v1471, %v1464
    %v2151 = vpack.c.b16 %v1472, %v1465
    %v2152 = vpack.c.b16 %v1473, %v1466
    %v2153 = vpack.c.b16 %v1474, %v1467
    %v2154 = vpack.c.b16 %v1475, %v1468
    %v2155 = vpack.c.b16 %v1476, %v1469
    %v2156 = vpack.c.b16 %v1477, %v1470
    %v2157 = vpack.c.b16 %v1485, %v1478
    %v2158 = vpack.c.b16 %v1486, %v1479
    %v2159 = vpack.c.b16 %v1487, %v1480
    %v2160 = vpack.c.b16 %v1488, %v1481
    %v2161 = vpack.c.b16 %v1489, %v1482
    %v2162 = vpack.c.b16 %v1490, %v1483
    %v2163 = vpack.c.b16 %v1491, %v1484
    %v2164 = vpack.c.b16 %v1499, %v1492
    %v2165 = vpack.c.b16 %v1500, %v1493
    %v2166 = vpack.c.b16 %v1501, %v1494
    %v2167 = vpack.c.b16 %v1502, %v1495
    %v2168 = vpack.c.b16 %v1503, %v1496
    %v2169 = vpack.c.b16 %v1504, %v1497
    %v2170 = vpack.c.b16 %v1505, %v1498
    %v2171 = vpack.c.b16 %v1513, %v1506
    %v2172 = vpack.c.b16 %v1514, %v1507
    %v2173 = vpack.c.b16 %v1515, %v1508
    %v2174 = vpack.c.b16 %v1516, %v1509
    %v2175 = vpack.c.b16 %v1517, %v1510
    %v2176 = vpack.c.b16 %v1518, %v1511
    %v2177 = vpack.c.b16 %v1519, %v1512
    %v2178 = vpack.c.b16 %v1527, %v1520
    %v2179 = vpack.c.b16 %v1528, %v1521
    %v2180 = vpack.c.b16 %v1529, %v1522
    %v2181 = vpack.c.b16 %v1530, %v1523
    %v2182 = vpack.c.b16 %v1531, %v1524
    %v2183 = vpack.c.b16 %v1532, %v1525
    %v2184 = vpack.c.b16 %v1533, %v1526
    %v2185 = vpack.c.b16 %v1541, %v1534
    %v2186 = vpack.c.b16 %v1542, %v1535
    %v2187 = vpack.c.b16 %v1543, %v1536
    %v2188 = vpack.c.b16 %v1544, %v1537
    %v2189 = vpack.c.b16 %v1545, %v1538
    %v2190 = vpack.c.b16 %v1546, %v1539
    %v2191 = vpack.c.b16 %v1547, %v1540
    %v2192 = vpack.c.b16 %v1555, %v1548
    %v2193 = vpack.c.b16 %v1556, %v1549
    %v2194 = vpack.c.b16 %v1557, %v1550
    %v2195 = vpack.c.b16 %v1558, %v1551
    %v2196 = vpack.c.b16 %v1559, %v1552
    %v2197 = vpack.c.b16 %v1560, %v1553
    %v2198 = vpack.c.b16 %v1561, %v1554
    %v2199 = vpack.c.b16 %v1569, %v1562
    %v2200 = vpack.c.b16 %v1570, %v1563
    %v2201 = vpack.c.b16 %v1571, %v1564
    %v2202 = vpack.c.b16 %v1572, %v1565
    %v2203 = vpack.c.b16 %v1573, %v1566
    %v2204 = vpack.c.b16 %v1574, %v1567
    %v2205 = vpack.c.b16 %v1575, %v1568
    %v2206 = vpack.c.b16 %v1583, %v1576
    %v2207 = vpack.c.b16 %v1584, %v1577
    %v2208 = vpack.c.b16 %v1585, %v1578
    %v2209 = vpack.c.b16 %v1586, %v1579
    %v2210 = vpack.c.b16 %v1587, %v1580
    %v2211 = vpack.c.b16 %v1588, %v1581
    %v2212 = vpack.c.b16 %v1589, %v1582
    %v2213 = vpack.c.b16 %v1597, %v1590
    %v2214 = vpack.c.b16 %v1598, %v1591
    %v2215 = vpack.c.b16 %v1599, %v1592
    %v2216 = vpack.c.b16 %v1600, %v1593
    %v2217 = vpack.c.b16 %v1601, %v1594
    %v2218 = vpack.c.b16 %v1602, %v1595
    %v2219 = vpack.c.b16 %v1603, %v1596
    %v2220 = vpack.c.b16 %v1611, %v1604
    %v2221 = vpack.c.b16 %v1612, %v1605
    %v2222 = vpack.c.b16 %v1613, %v1606
    %v2223 = vpack.c.b16 %v1614, %v1607
    %v2224 = vpack.c.b16 %v1615, %v1608
    %v2225 = vpack.c.b16 %v1616, %v1609
    %v2226 = vpack.c.b16 %v1617, %v1610
    %v2227 = vpack.c.b16 %v1625, %v1618
    %v2228 = vpack.c.b16 %v1626, %v1619
    %v2229 = vpack.c.b16 %v1627, %v1620
    %v2230 = vpack.c.b16 %v1628, %v1621
    %v2231 = vpack.c.b16 %v1629, %v1622
    %v2232 = vpack.c.b16 %v1630, %v1623
    %v2233 = vpack.c.b16 %v1631, %v1624
    %v2234 = vpack.c.b16 %v1639, %v1632
    %v2235 = vpack.c.b16 %v1640, %v1633
    %v2236 = vpack.c.b16 %v1641, %v1634
    %v2237 = vpack.c.b16 %v1642, %v1635
    %v2238 = vpack.c.b16 %v1643, %v1636
    %v2239 = vpack.c.b16 %v1644, %v1637
    %v2240 = vpack.c.b16 %v1645, %v1638
    %v2241 = vpack.c.b16 %v1653, %v1646
    %v2242 = vpack.c.b16 %v1654, %v1647
    %v2243 = vpack.c.b16 %v1655, %v1648
    %v2244 = vpack.c.b16 %v1656, %v1649
    %v2245 = vpack.c.b16 %v1657, %v1650
    %v2246 = vpack.c.b16 %v1658, %v1651
    %v2247 = vpack.c.b16 %v1659, %v1652
    %v2248 = vpack.c.b16 %v1667, %v1660
    %v2249 = vpack.c.b16 %v1668, %v1661
    %v2250 = vpack.c.b16 %v1669, %v1662
    %v2251 = vpack.c.b16 %v1670, %v1663
    %v2252 = vpack.c.b16 %v1671, %v1664
    %v2253 = vpack.c.b16 %v1672, %v1665
    %v2254 = vpack.c.b16 %v1673, %v1666
    %v2255 = vpack.c.b16 %v1681, %v1674
    %v2256 = vpack.c.b16 %v1682, %v1675
    %v2257 = vpack.c.b16 %v1683, %v1676
    %v2258 = vpack.c.b16 %v1684, %v1677
    %v2259 = vpack.c.b16 %v1685, %v1678
    %v2260 = vpack.c.b16 %v1686, %v1679
    %v2261 = vpack.c.b16 %v1687, %v1680
    %v2262 = vpack.c.b16 %v1695, %v1688
    %v2263 = vpack.c.b16 %v1696, %v1689
    %v2264 = vpack.c.b16 %v1697, %v1690
    %v2265 = vpack.c.b16 %v1698, %v1691
    %v2266 = vpack.c.b16 %v1699, %v1692
    %v2267 = vpack.c.b16 %v1700, %v1693
    %v2268 = vpack.c.b16 %v1701, %v1694
    %v2269 = vpack.c.b16 %v1709, %v1702
    %v2270 = vpack.c.b16 %v1710, %v1703
    %v2271 = vpack.c.b16 %v1711, %v1704
    %v2272 = vpack.c.b16 %v1712, %v1705
    %v2273 = vpack.c.b16 %v1713, %v1706
    %v2274 = vpack.c.b16 %v1714, %v1707
    %v2275 = vpack.c.b16 %v1715, %v1708
    %v2276 = vpack.c.b16 %v1723, %v1716
    %v2277 = vpack.c.b16 %v1724, %v1717
    %v2278 = vpack.c.b16 %v1725, %v1718
    %v2279 = vpack.c.b16 %v1726, %v1719
    %v2280 = vpack.c.b16 %v1727, %v1720
    %v2281 = vpack.c.b16 %v1728, %v1721
    %v2282 = vpack.c.b16 %v1729, %v1722
    %v2283 = vpack.c.b16 %v1737, %v1730
    %v2284 = vpack.c.b16 %v1738, %v1731
    %v2285 = vpack.c.b16 %v1739, %v1732
    %v2286 = vpack.c.b16 %v1740, %v1733
    %v2287 = vpack.c.b16 %v1741, %v1734
    %v2288 = vpack.c.b16 %v1742, %v1735
    %v2289 = vpack.c.b16 %v1743, %v1736
    %v2290 = vpack.c.b16 %v1751, %v1744
    %v2291 = vpack.c.b16 %v1752, %v1745
    %v2292 = vpack.c.b16 %v1753, %v1746
    %v2293 = vpack.c.b16 %v1754, %v1747
    %v2294 = vpack.c.b16 %v1755, %v1748
    %v2295 = vpack.c.b16 %v1756, %v1749
    %v2296 = vpack.c.b16 %v1757, %v1750
    %v2297 = vpack.c.b16 %v1765, %v1758
    %v2298 = vpack.c.b16 %v1766, %v1759
    %v2299 = vpack.c.b16 %v1767, %v1760
    %v2300 = vpack.c.b16 %v1768, %v1761
    %v2301 = vpack.c.b16 %v1769, %v1762
    %v2302 = vpack.c.b16 %v1770, %v1763
    %v2303 = vpack.c.b16 %v1771, %v1764
    %v2304 = vpack.c.b16 %v1779, %v1772
    %v2305 = vpack.c.b16 %v1780, %v1773
    %v2306 = vpack.c.b16 %v1781, %v1774
    %v2307 = vpack.c.b16 %v1782, %v1775
    %v2308 = vpack.c.b16 %v1783, %v1776
    %v2309 = vpack.c.b16 %v1784, %v1777
    %v2310 = vpack.c.b16 %v1785, %v1778
    %v2311 = vpack.c.b16 %v1793, %v1786
    %v2312 = vpack.c.b16 %v1794, %v1787
    %v2313 = vpack.c.b16 %v1795, %v1788
    %v2314 = vpack.c.b16 %v1796, %v1789
    %v2315 = vpack.c.b16 %v1797, %v1790
    %v2316 = vpack.c.b16 %v1798, %v1791
    %v2317 = vpack.c.b16 %v1799, %v1792
    %v2318 = vpack.c.b16 %v1807, %v1800
    %v2319 = vpack.c.b16 %v1808, %v1801
    %v2320 = vpack.c.b16 %v1809, %v1802
    %v2321 = vpack.c.b16 %v1810, %v1803
    %v2322 = vpack.c.b16 %v1811, %v1804
    %v2323 = vpack.c.b16 %v1812, %v1805
    %v2324 = vpack.c.b16 %v1813, %v1806
    %v2325 = vpack.c.b16 %v1821, %v1814
    %v2326 = vpack.c.b16 %v1822, %v1815
    %v2327 = vpack.c.b16 %v1823, %v1816
    %v2328 = vpack.c.b16 %v1824, %v1817
    %v2329 = vpack.c.b16 %v1825, %v1818
    %v2330 = vpack.c.b16 %v1826, %v1819
    %v2331 = vpack.c.b16 %v1827, %v1820
    %v2332 = vpack.c.b16 %v1835, %v1828
    %v2333 = vpack.c.b16 %v1836, %v1829
    %v2334 = vpack.c.b16 %v1837, %v1830
    %v2335 = vpack.c.b16 %v1838, %v1831
    %v2336 = vpack.c.b16 %v1839, %v1832
    %v2337 = vpack.c.b16 %v1840, %v1833
    %v2338 = vpack.c.b16 %v1841, %v1834
    %v2339 = vpack.c.b16 %v1849, %v1842
    %v2340 = vpack.c.b16 %v1850, %v1843
    %v2341 = vpack.c.b16 %v1851, %v1844
    %v2342 = vpack.c.b16 %v1852, %v1845
    %v2343 = vpack.c.b16 %v1853, %v1846
    %v2344 = vpack.c.b16 %v1854, %v1847
    %v2345 = vpack.c.b16 %v1855, %v1848
    %v2346 = vpack.c.b16 %v1863, %v1856
    %v2347 = vpack.c.b16 %v1864, %v1857
    %v2348 = vpack.c.b16 %v1865, %v1858
    %v2349 = vpack.c.b16 %v1866, %v1859
    %v2350 = vpack.c.b16 %v1867, %v1860
    %v2351 = vpack.c.b16 %v1868, %v1861
    %v2352 = vpack.c.b16 %v1869, %v1862
    %v2353 = vpack.c.b16 %v1877, %v1870
    %v2354 = vpack.c.b16 %v1878, %v1871
    %v2355 = vpack.c.b16 %v1879, %v1872
    %v2356 = vpack.c.b16 %v1880, %v1873
    %v2357 = vpack.c.b16 %v1881, %v1874
    %v2358 = vpack.c.b16 %v1882, %v1875
    %v2359 = vpack.c.b16 %v1883, %v1876
    %v2360 = vpack.c.b16 %v1891, %v1884
    %v2361 = vpack.c.b16 %v1892, %v1885
    %v2362 = vpack.c.b16 %v1893, %v1886
    %v2363 = vpack.c.b16 %v1894, %v1887
    %v2364 = vpack.c.b16 %v1895, %v1888
    %v2365 = vpack.c.b16 %v1896, %v1889
    %v2366 = vpack.c.b16 %v1897, %v1890
    %v2367 = vpack.c.b16 %v1905, %v1898
    %v2368 = vpack.c.b16 %v1906, %v1899
    %v2369 = vpack.c.b16 %v1907, %v1900
    %v2370 = vpack.c.b16 %v1908, %v1901
    %v2371 = vpack.c.b16 %v1909, %v1902
    %v2372 = vpack.c.b16 %v1910, %v1903
    %v2373 = vpack.c.b16 %v1911, %v1904
    %v2374 = vpack.c.b16 %v1919, %v1912
    %v2375 = vpack.c.b16 %v1920, %v1913
    %v2376 = vpack.c.b16 %v1921, %v1914
    %v2377 = vpack.c.b16 %v1922, %v1915
    %v2378 = vpack.c.b16 %v1923, %v1916
    %v2379 = vpack.c.b16 %v1924, %v1917
    %v2380 = vpack.c.b16 %v1925, %v1918
    %v2381 = vpack.c.b16 %v1933, %v1926
    %v2382 = vpack.c.b16 %v1934, %v1927
    %v2383 = vpack.c.b16 %v1935, %v1928
    %v2384 = vpack.c.b16 %v1936, %v1929
    %v2385 = vpack.c.b16 %v1937, %v1930
    %v2386 = vpack.c.b16 %v1938, %v1931
    %v2387 = vpack.c.b16 %v1939, %v1932
    %v2388 = vpack.c.b16 %v1947, %v1940
    %v2389 = vpack.c.b16 %v1948, %v1941
    %v2390 = vpack.c.b16 %v1949, %v1942
    %v2391 = vpack.c.b16 %v1950, %v1943
    %v2392 = vpack.c.b16 %v1951, %v1944
    %v2393 = vpack.c.b16 %v1952, %v1945
    %v2394 = vpack.c.b16 %v1953, %v1946
    %v2395 = vpack.c.b16 %v1961, %v1954
    %v2396 = vpack.c.b16 %v1962, %v1955
    %v2397 = vpack.c.b16 %v1963, %v1956
    %v2398 = vpack.c.b16 %v1964, %v1957
    %v2399 = vpack.c.b16 %v1965, %v1958
    %v2400 = vpack.c.b16 %v1966, %v1959
    %v2401 = vpack.c.b16 %v1967, %v1960
    %v2402 = vpack.c.b16 %v1975, %v1968
    %v2403 = vpack.c.b16 %v1976, %v1969
    %v2404 = vpack.c.b16 %v1977, %v1970
    %v2405 = vpack.c.b16 %v1978, %v1971
    %v2406 = vpack.c.b16 %v1979, %v1972
    %v2407 = vpack.c.b16 %v1980, %v1973
    %v2408 = vpack.c.b16 %v1981, %v1974
    %v2409 = vpack.c.b16 %v1989, %v1982
    %v2410 = vpack.c.b16 %v1990, %v1983
    %v2411 = vpack.c.b16 %v1991, %v1984
    %v2412 = vpack.c.b16 %v1992, %v1985
    %v2413 = vpack.c.b16 %v1993, %v1986
    %v2414 = vpack.c.b16 %v1994, %v1987
    %v2415 = vpack.c.b16 %v1995, %v1988
    %v2416 = vpack.c.b16 %v2003, %v1996
    %v2417 = vpack.c.b16 %v2004, %v1997
    %v2418 = vpack.c.b16 %v2005, %v1998
    %v2419 = vpack.c.b16 %v2006, %v1999
    %v2420 = vpack.c.b16 %v2007, %v2000
    %v2421 = vpack.c.b16 %v2008, %v2001
    %v2422 = vpack.c.b16 %v2009, %v2002
    %v2423 = vpack.c.b16 %v2017, %v2010
    %v2424 = vpack.c.b16 %v2018, %v2011
    %v2425 = vpack.c.b16 %v2019, %v2012
    %v2426 = vpack.c.b16 %v2020, %v2013
    %v2427 = vpack.c.b16 %v2021, %v2014
    %v2428 = vpack.c.b16 %v2022, %v2015
    %v2429 = vpack.c.b16 %v2023, %v2016
    %v2430 = vpack.c.b16 %v2031, %v2024
    %v2431 = vpack.c.b16 %v2032, %v2025
    %v2432 = vpack.c.b16 %v2033, %v2026
    %v2433 = vpack.c.b16 %v2034, %v2027
    %v2434 = vpack.c.b16 %v2035, %v2028
    %v2435 = vpack.c.b16 %v2036, %v2029
    %v2436 = vpack.c.b16 %v2037, %v2030
    %v2437 = vpack.c.b16 %v2045, %v2038
    %v2438 = vpack.c.b16 %v2046, %v2039
    %v2439 = vpack.c.b16 %v2047, %v2040
    %v2440 = vpack.c.b16 %v2048, %v2041
    %v2441 = vpack.c.b16 %v2049, %v2042
    %v2442 = vpack.c.b16 %v2050, %v2043
    %v2443 = vpack.c.b16 %v2051, %v2044
    %v2444 = vpack.c.b16 %v2059, %v2052
    %v2445 = vpack.c.b16 %v2060, %v2053
    %v2446 = vpack.c.b16 %v2061, %v2054
    %v2447 = vpack.c.b16 %v2062, %v2055
    %v2448 = vpack.c.b16 %v2063, %v2056
    %v2449 = vpack.c.b16 %v2064, %v2057
    %v2450 = vpack.c.b16 %v2065, %v2058
    %v2451 = vpack.c.b16 %v2073, %v2066
    %v2452 = vpack.c.b16 %v2074, %v2067
    %v2453 = vpack.c.b16 %v2075, %v2068
    %v2454 = vpack.c.b16 %v2076, %v2069
    %v2455 = vpack.c.b16 %v2077, %v2070
    %v2456 = vpack.c.b16 %v2078, %v2071
    %v2457 = vpack.c.b16 %v2079, %v2072
    %v2458 = vpack.c.b16 %v2087, %v2080
    %v2459 = vpack.c.b16 %v2088, %v2081
    %v2460 = vpack.c.b16 %v2089, %v2082
    %v2461 = vpack.c.b16 %v2090, %v2083
    %v2462 = vpack.c.b16 %v2091, %v2084
    %v2463 = vpack.c.b16 %v2092, %v2085
    %v2464 = vpack.c.b16 %v2093, %v2086
    %v2465 = vpack.c.b16 %v2101, %v2094
    %v2466 = vpack.c.b16 %v2102, %v2095
    %v2467 = vpack.c.b16 %v2103, %v2096
    %v2468 = vpack.c.b16 %v2104, %v2097
    %v2469 = vpack.c.b16 %v2105, %v2098
    %v2470 = vpack.c.b16 %v2106, %v2099
    %v2471 = vpack.c.b16 %v2107, %v2100
    %v2472 = vpack.c.b16 %v2115, %v2108
    %v2473 = vpack.c.b16 %v2116, %v2109
    %v2474 = vpack.c.b16 %v2117, %v2110
    %v2475 = vpack.c.b16 %v2118, %v2111
    %v2476 = vpack.c.b16 %v2119, %v2112
    %v2477 = vpack.c.b16 %v2120, %v2113
    %v2478 = vpack.c.b16 %v2121, %v2114
    %v2479 = vpack.c.b16 %v2129, %v2122
    %v2480 = vpack.c.b16 %v2130, %v2123
    %v2481 = vpack.c.b16 %v2131, %v2124
    %v2482 = vpack.c.b16 %v2132, %v2125
    %v2483 = vpack.c.b16 %v2133, %v2126
    %v2484 = vpack.c.b16 %v2134, %v2127
    %v2485 = vpack.c.b16 %v2135, %v2128
    %v2486 = vpack.c.b16 %v2143, %v2136
    %v2487 = vpack.c.b16 %v2144, %v2137
    %v2488 = vpack.c.b16 %v2145, %v2138
    %v2489 = vpack.c.b16 %v2146, %v2139
    %v2490 = vpack.c.b16 %v2147, %v2140
    %v2491 = vpack.c.b16 %v2148, %v2141
    %v2492 = vpack.c.b16 %v2149, %v2142
    %vm2836 = vcmask 130048
    %v2838 = vsel %vm2836, %v642, 0
    %2840 = vmatprep.subr.bf16.mxu0 %v2151
    %2841 = vmatpush1.bf16.msra.mxu0 %v2150
    %2842 = vmatprep.subr.bf16.mxu0 %v2158
    %2843 = vmatpush1.bf16.msra.mxu0 %v2157
    %2844 = vmatprep.subr.bf16.mxu0 %v2165
    %2845 = vmatpush1.bf16.msra.mxu0 %v2164
    %2846 = vmatprep.subr.bf16.mxu0 %v2172
    %2847 = vmatpush1.bf16.msra.mxu0 %v2171
    %2848 = vmatprep.subr.bf16.mxu0 %v2179
    %2849 = vmatpush1.bf16.msra.mxu0 %v2178
    %2850 = vmatprep.subr.bf16.mxu0 %v2186
    %2851 = vmatpush1.bf16.msra.mxu0 %v2185
    %2852 = vmatprep.subr.bf16.mxu0 %v2193
    %2853 = vmatpush1.bf16.msra.mxu0 %v2192
    %2854 = vmatprep.subr.bf16.mxu0 %v2200
    %2855 = vmatpush1.bf16.msra.mxu0 %v2199
    %2856 = vmatprep.subr.bf16.mxu0 %v2207
    %2857 = vmatpush1.bf16.msra.mxu0 %v2206
    %2858 = vmatprep.subr.bf16.mxu0 %v2214
    %2859 = vmatpush1.bf16.msra.mxu0 %v2213
    %2860 = vmatprep.subr.bf16.mxu0 %v2221
    %2861 = vmatpush1.bf16.msra.mxu0 %v2220
    %2862 = vmatprep.subr.bf16.mxu0 %v2228
    %2863 = vmatpush1.bf16.msra.mxu0 %v2227
    %2864 = vmatprep.subr.bf16.mxu0 %v2235
    %2865 = vmatpush1.bf16.msra.mxu0 %v2234
    %2866 = vmatprep.subr.bf16.mxu0 %v2242
    %2867 = vmatpush1.bf16.msra.mxu0 %v2241
    %2868 = vmatprep.subr.bf16.mxu0 %v2249
    %2869 = vmatpush1.bf16.msra.mxu0 %v2248
    %2870 = vmatprep.subr.bf16.mxu0 %v2256
    %2871 = vmatpush1.bf16.msra.mxu0 %v2255
    %2872 = vmatprep.mubr.bf16.mxu0 %v637
    %2873 = vmatmul.mubr.bf16.gmra.mrb[0].mxu0 %v636
    %v2874 = vpop.f32.mrb[0].mxu0
    %v2875 = vadd.f32 %v1040, %v2874
    %v2876 = vpop.f32.mrb[0].mxu0
    %v2877 = vadd.f32 %v1044, %v2876
    %v2878 = vpop.f32.mrb[0].mxu0
    %v2879 = vpop.f32.mrb[0].mxu0
    %2880 = vdwg.mxu0
    %2881 = vmatprep.subr.bf16.mxu0 %v2263
    %2882 = vmatpush1.bf16.msra.mxu0 %v2262
    %2883 = vmatprep.subr.bf16.mxu0 %v2270
    %2884 = vmatpush1.bf16.msra.mxu0 %v2269
    %2885 = vmatprep.subr.bf16.mxu0 %v2277
    %2886 = vmatpush1.bf16.msra.mxu0 %v2276
    %2887 = vmatprep.subr.bf16.mxu0 %v2284
    %2888 = vmatpush1.bf16.msra.mxu0 %v2283
    %2889 = vmatprep.subr.bf16.mxu0 %v2291
    %2890 = vmatpush1.bf16.msra.mxu0 %v2290
    %2891 = vmatprep.subr.bf16.mxu0 %v2298
    %2892 = vmatpush1.bf16.msra.mxu0 %v2297
    %2893 = vmatprep.subr.bf16.mxu0 %v2305
    %2894 = vmatpush1.bf16.msra.mxu0 %v2304
    %2895 = vmatprep.subr.bf16.mxu0 %v2312
    %2896 = vmatpush1.bf16.msra.mxu0 %v2311
    %2897 = vmatprep.subr.bf16.mxu0 %v2319
    %2898 = vmatpush1.bf16.msra.mxu0 %v2318
    %2899 = vmatprep.subr.bf16.mxu0 %v2326
    %2900 = vmatpush1.bf16.msra.mxu0 %v2325
    %2901 = vmatprep.subr.bf16.mxu0 %v2333
    %2902 = vmatpush1.bf16.msra.mxu0 %v2332
    %2903 = vmatprep.subr.bf16.mxu0 %v2340
    %2904 = vmatpush1.bf16.msra.mxu0 %v2339
    %2905 = vmatprep.subr.bf16.mxu0 %v2347
    %2906 = vmatpush1.bf16.msra.mxu0 %v2346
    %2907 = vmatprep.subr.bf16.mxu0 %v2354
    %2908 = vmatpush1.bf16.msra.mxu0 %v2353
    %2909 = vmatprep.subr.bf16.mxu0 %v2361
    %2910 = vmatpush1.bf16.msra.mxu0 %v2360
    %2911 = vmatprep.subr.bf16.mxu0 %v2368
    %2912 = vmatpush1.bf16.msra.mxu0 %v2367
    %2913 = vmatprep.mubr.bf16.mxu0 %v639
    %2914 = vmatmul.mubr.bf16.gmra.mrb[0].mxu0 %v638
    %v2915 = vpop.f32.mrb[0].mxu0
    %v2916 = vadd.f32 %v2875, %v2915
    %v2917 = vpop.f32.mrb[0].mxu0
    %v2918 = vadd.f32 %v2877, %v2917
    %v2919 = vpop.f32.mrb[0].mxu0
    %v2920 = vpop.f32.mrb[0].mxu0
    %2921 = vdwg.mxu0
    %2922 = vmatprep.subr.bf16.mxu0 %v2375
    %2923 = vmatpush1.bf16.msra.mxu0 %v2374
    %2924 = vmatprep.subr.bf16.mxu0 %v2382
    %2925 = vmatpush1.bf16.msra.mxu0 %v2381
    %2926 = vmatprep.subr.bf16.mxu0 %v2389
    %2927 = vmatpush1.bf16.msra.mxu0 %v2388
    %2928 = vmatprep.subr.bf16.mxu0 %v2396
    %2929 = vmatpush1.bf16.msra.mxu0 %v2395
    %2930 = vmatprep.subr.bf16.mxu0 %v2403
    %2931 = vmatpush1.bf16.msra.mxu0 %v2402
    %2932 = vmatprep.subr.bf16.mxu0 %v2410
    %2933 = vmatpush1.bf16.msra.mxu0 %v2409
    %2934 = vmatprep.subr.bf16.mxu0 %v2417
    %2935 = vmatpush1.bf16.msra.mxu0 %v2416
    %2936 = vmatprep.subr.bf16.mxu0 %v2424
    %2937 = vmatpush1.bf16.msra.mxu0 %v2423
    %2938 = vmatprep.subr.bf16.mxu0 %v2431
    %2939 = vmatpush1.bf16.msra.mxu0 %v2430
    %2940 = vmatprep.subr.bf16.mxu0 %v2438
    %2941 = vmatpush1.bf16.msra.mxu0 %v2437
    %2942 = vmatprep.subr.bf16.mxu0 %v2445
    %2943 = vmatpush1.bf16.msra.mxu0 %v2444
    %2944 = vmatprep.subr.bf16.mxu0 %v2452
    %2945 = vmatpush1.bf16.msra.mxu0 %v2451
    %2946 = vmatprep.subr.bf16.mxu0 %v2459
    %2947 = vmatpush1.bf16.msra.mxu0 %v2458
    %2948 = vmatprep.subr.bf16.mxu0 %v2466
    %2949 = vmatpush1.bf16.msra.mxu0 %v2465
    %2950 = vmatprep.subr.bf16.mxu0 %v2473
    %2951 = vmatpush1.bf16.msra.mxu0 %v2472
    %2952 = vmatprep.subr.bf16.mxu0 %v2480
    %2953 = vmatpush1.bf16.msra.mxu0 %v2479
    %2954 = vmatprep.mubr.bf16.mxu0 %v641
    %2955 = vmatmul.mubr.bf16.gmra.mrb[0].mxu0 %v640
    %v2956 = vpop.f32.mrb[0].mxu0
    %v2957 = vadd.f32 %v2916, %v2956
    %v2958 = vpop.f32.mrb[0].mxu0
    %v2959 = vadd.f32 %v2918, %v2958
    %v2960 = vpop.f32.mrb[0].mxu0
    %v2961 = vpop.f32.mrb[0].mxu0
    %2962 = vdwg.mxu0
    %2963 = vmatprep.subr.bf16.mxu0 %v2487
    %2964 = vmatpush1.bf16.msra.mxu0 %v2486
    %2965 = vmatprep.subr.bf16.mxu0 0
    %2966 = vmatpush1.bf16.msra.mxu0 0
    %2967 = vmatprep.subr.bf16.mxu0 0
    %2968 = vmatpush1.bf16.msra.mxu0 0
    %2969 = vmatprep.subr.bf16.mxu0 0
    %2970 = vmatpush1.bf16.msra.mxu0 0
    %2971 = vmatprep.subr.bf16.mxu0 0
    %2972 = vmatpush1.bf16.msra.mxu0 0
    %2973 = vmatprep.subr.bf16.mxu0 0
    %2974 = vmatpush1.bf16.msra.mxu0 0
    %2975 = vmatprep.subr.bf16.mxu0 0
    %2976 = vmatpush1.bf16.msra.mxu0 0
    %2977 = vmatprep.subr.bf16.mxu0 0
    %2978 = vmatpush1.bf16.msra.mxu0 0
    %2979 = vmatprep.subr.bf16.mxu0 0
    %2980 = vmatpush1.bf16.msra.mxu0 0
    %2981 = vmatprep.subr.bf16.mxu0 0
    %2982 = vmatpush1.bf16.msra.mxu0 0
    %2983 = vmatprep.subr.bf16.mxu0 0
    %2984 = vmatpush1.bf16.msra.mxu0 0
    %2985 = vmatprep.subr.bf16.mxu0 0
    %2986 = vmatpush1.bf16.msra.mxu0 0
    %2987 = vmatprep.subr.bf16.mxu0 0
    %2988 = vmatpush1.bf16.msra.mxu0 0
    %2989 = vmatprep.subr.bf16.mxu0 0
    %2990 = vmatpush1.bf16.msra.mxu0 0
    %2991 = vmatprep.subr.bf16.mxu0 0
    %2992 = vmatpush1.bf16.msra.mxu0 0
    %2993 = vmatprep.subr.bf16.mxu0 0
    %2994 = vmatpush1.bf16.msra.mxu0 0
    %2995 = vmatprep.mubr.bf16.mxu0 0
    %2996 = vmatmul.mubr.bf16.gmra.mrb[0].mxu0 %v2838
    %v2997 = vpop.f32.mrb[0].mxu0
    %v2998 = vadd.f32 %v2957, %v2997
    %v2999 = vpop.f32.mrb[0].mxu0
    %v3000 = vadd.f32 %v2959, %v2999
    %v3001 = vpop.f32.mrb[0].mxu0
    %v3002 = vpop.f32.mrb[0].mxu0
    %3003 = vdwg.mxu0
    %3004 = vmatprep.subr.bf16.mxu0 %v2153
    %3005 = vmatpush1.bf16.msra.mxu0 %v2152
    %3006 = vmatprep.subr.bf16.mxu0 %v2160
    %3007 = vmatpush1.bf16.msra.mxu0 %v2159
    %3008 = vmatprep.subr.bf16.mxu0 %v2167
    %3009 = vmatpush1.bf16.msra.mxu0 %v2166
    %3010 = vmatprep.subr.bf16.mxu0 %v2174
    %3011 = vmatpush1.bf16.msra.mxu0 %v2173
    %3012 = vmatprep.subr.bf16.mxu0 %v2181
    %3013 = vmatpush1.bf16.msra.mxu0 %v2180
    %3014 = vmatprep.subr.bf16.mxu0 %v2188
    %3015 = vmatpush1.bf16.msra.mxu0 %v2187
    %3016 = vmatprep.subr.bf16.mxu0 %v2195
    %3017 = vmatpush1.bf16.msra.mxu0 %v2194
    %3018 = vmatprep.subr.bf16.mxu0 %v2202
    %3019 = vmatpush1.bf16.msra.mxu0 %v2201
    %3020 = vmatprep.subr.bf16.mxu0 %v2209
    %3021 = vmatpush1.bf16.msra.mxu0 %v2208
    %3022 = vmatprep.subr.bf16.mxu0 %v2216
    %3023 = vmatpush1.bf16.msra.mxu0 %v2215
    %3024 = vmatprep.subr.bf16.mxu0 %v2223
    %3025 = vmatpush1.bf16.msra.mxu0 %v2222
    %3026 = vmatprep.subr.bf16.mxu0 %v2230
    %3027 = vmatpush1.bf16.msra.mxu0 %v2229
    %3028 = vmatprep.subr.bf16.mxu0 %v2237
    %3029 = vmatpush1.bf16.msra.mxu0 %v2236
    %3030 = vmatprep.subr.bf16.mxu0 %v2244
    %3031 = vmatpush1.bf16.msra.mxu0 %v2243
    %3032 = vmatprep.subr.bf16.mxu0 %v2251
    %3033 = vmatpush1.bf16.msra.mxu0 %v2250
    %3034 = vmatprep.subr.bf16.mxu0 %v2258
    %3035 = vmatpush1.bf16.msra.mxu0 %v2257
    %3036 = vmatprep.mubr.bf16.mxu0 %v637
    %3037 = vmatmul.mubr.bf16.gmra.mrb[0].mxu0 %v636
    %v3038 = vpop.f32.mrb[0].mxu0
    %v3039 = vadd.f32 %v1048, %v3038
    %v3040 = vpop.f32.mrb[0].mxu0
    %v3041 = vadd.f32 %v1052, %v3040
    %v3042 = vpop.f32.mrb[0].mxu0
    %v3043 = vpop.f32.mrb[0].mxu0
    %3044 = vdwg.mxu0
    %3045 = vmatprep.subr.bf16.mxu0 %v2265
    %3046 = vmatpush1.bf16.msra.mxu0 %v2264
    %3047 = vmatprep.subr.bf16.mxu0 %v2272
    %3048 = vmatpush1.bf16.msra.mxu0 %v2271
    %3049 = vmatprep.subr.bf16.mxu0 %v2279
    %3050 = vmatpush1.bf16.msra.mxu0 %v2278
    %3051 = vmatprep.subr.bf16.mxu0 %v2286
    %3052 = vmatpush1.bf16.msra.mxu0 %v2285
    %3053 = vmatprep.subr.bf16.mxu0 %v2293
    %3054 = vmatpush1.bf16.msra.mxu0 %v2292
    %3055 = vmatprep.subr.bf16.mxu0 %v2300
    %3056 = vmatpush1.bf16.msra.mxu0 %v2299
    %3057 = vmatprep.subr.bf16.mxu0 %v2307
    %3058 = vmatpush1.bf16.msra.mxu0 %v2306
    %3059 = vmatprep.subr.bf16.mxu0 %v2314
    %3060 = vmatpush1.bf16.msra.mxu0 %v2313
    %3061 = vmatprep.subr.bf16.mxu0 %v2321
    %3062 = vmatpush1.bf16.msra.mxu0 %v2320
    %3063 = vmatprep.subr.bf16.mxu0 %v2328
    %3064 = vmatpush1.bf16.msra.mxu0 %v2327
    %3065 = vmatprep.subr.bf16.mxu0 %v2335
    %3066 = vmatpush1.bf16.msra.mxu0 %v2334
    %3067 = vmatprep.subr.bf16.mxu0 %v2342
    %3068 = vmatpush1.bf16.msra.mxu0 %v2341
    %3069 = vmatprep.subr.bf16.mxu0 %v2349
    %3070 = vmatpush1.bf16.msra.mxu0 %v2348
    %3071 = vmatprep.subr.bf16.mxu0 %v2356
    %3072 = vmatpush1.bf16.msra.mxu0 %v2355
    %3073 = vmatprep.subr.bf16.mxu0 %v2363
    %3074 = vmatpush1.bf16.msra.mxu0 %v2362
    %3075 = vmatprep.subr.bf16.mxu0 %v2370
    %3076 = vmatpush1.bf16.msra.mxu0 %v2369
    %3077 = vmatprep.mubr.bf16.mxu0 %v639
    %3078 = vmatmul.mubr.bf16.gmra.mrb[0].mxu0 %v638
    %v3079 = vpop.f32.mrb[0].mxu0
    %v3080 = vadd.f32 %v3039, %v3079
    %v3081 = vpop.f32.mrb[0].mxu0
    %v3082 = vadd.f32 %v3041, %v3081
    %v3083 = vpop.f32.mrb[0].mxu0
    %v3084 = vpop.f32.mrb[0].mxu0
    %3085 = vdwg.mxu0
    %3086 = vmatprep.subr.bf16.mxu0 %v2377
    %3087 = vmatpush1.bf16.msra.mxu0 %v2376
    %3088 = vmatprep.subr.bf16.mxu0 %v2384
    %3089 = vmatpush1.bf16.msra.mxu0 %v2383
    %3090 = vmatprep.subr.bf16.mxu0 %v2391
    %3091 = vmatpush1.bf16.msra.mxu0 %v2390
    %3092 = vmatprep.subr.bf16.mxu0 %v2398
    %3093 = vmatpush1.bf16.msra.mxu0 %v2397
    %3094 = vmatprep.subr.bf16.mxu0 %v2405
    %3095 = vmatpush1.bf16.msra.mxu0 %v2404
    %3096 = vmatprep.subr.bf16.mxu0 %v2412
    %3097 = vmatpush1.bf16.msra.mxu0 %v2411
    %3098 = vmatprep.subr.bf16.mxu0 %v2419
    %3099 = vmatpush1.bf16.msra.mxu0 %v2418
    %3100 = vmatprep.subr.bf16.mxu0 %v2426
    %3101 = vmatpush1.bf16.msra.mxu0 %v2425
    %3102 = vmatprep.subr.bf16.mxu0 %v2433
    %3103 = vmatpush1.bf16.msra.mxu0 %v2432
    %3104 = vmatprep.subr.bf16.mxu0 %v2440
    %3105 = vmatpush1.bf16.msra.mxu0 %v2439
    %3106 = vmatprep.subr.bf16.mxu0 %v2447
    %3107 = vmatpush1.bf16.msra.mxu0 %v2446
    %3108 = vmatprep.subr.bf16.mxu0 %v2454
    %3109 = vmatpush1.bf16.msra.mxu0 %v2453
    %3110 = vmatprep.subr.bf16.mxu0 %v2461
    %3111 = vmatpush1.bf16.msra.mxu0 %v2460
    %3112 = vmatprep.subr.bf16.mxu0 %v2468
    %3113 = vmatpush1.bf16.msra.mxu0 %v2467
    %3114 = vmatprep.subr.bf16.mxu0 %v2475
    %3115 = vmatpush1.bf16.msra.mxu0 %v2474
    %3116 = vmatprep.subr.bf16.mxu0 %v2482
    %3117 = vmatpush1.bf16.msra.mxu0 %v2481
    %3118 = vmatprep.mubr.bf16.mxu0 %v641
    %3119 = vmatmul.mubr.bf16.gmra.mrb[0].mxu0 %v640
    %v3120 = vpop.f32.mrb[0].mxu0
    %v3121 = vadd.f32 %v3080, %v3120
    %v3122 = vpop.f32.mrb[0].mxu0
    %v3123 = vadd.f32 %v3082, %v3122
    %v3124 = vpop.f32.mrb[0].mxu0
    %v3125 = vpop.f32.mrb[0].mxu0
    %3126 = vdwg.mxu0
    %3127 = vmatprep.subr.bf16.mxu0 %v2489
    %3128 = vmatpush1.bf16.msra.mxu0 %v2488
    %3129 = vmatprep.subr.bf16.mxu0 0
    %3130 = vmatpush1.bf16.msra.mxu0 0
    %3131 = vmatprep.subr.bf16.mxu0 0
    %3132 = vmatpush1.bf16.msra.mxu0 0
    %3133 = vmatprep.subr.bf16.mxu0 0
    %3134 = vmatpush1.bf16.msra.mxu0 0
    %3135 = vmatprep.subr.bf16.mxu0 0
    %3136 = vmatpush1.bf16.msra.mxu0 0
    %3137 = vmatprep.subr.bf16.mxu0 0
    %3138 = vmatpush1.bf16.msra.mxu0 0
    %3139 = vmatprep.subr.bf16.mxu0 0
    %3140 = vmatpush1.bf16.msra.mxu0 0
    %3141 = vmatprep.subr.bf16.mxu0 0
    %3142 = vmatpush1.bf16.msra.mxu0 0
    %3143 = vmatprep.subr.bf16.mxu0 0
    %3144 = vmatpush1.bf16.msra.mxu0 0
    %3145 = vmatprep.subr.bf16.mxu0 0
    %3146 = vmatpush1.bf16.msra.mxu0 0
    %3147 = vmatprep.subr.bf16.mxu0 0
    %3148 = vmatpush1.bf16.msra.mxu0 0
    %3149 = vmatprep.subr.bf16.mxu0 0
    %3150 = vmatpush1.bf16.msra.mxu0 0
    %3151 = vmatprep.subr.bf16.mxu0 0
    %3152 = vmatpush1.bf16.msra.mxu0 0
    %3153 = vmatprep.subr.bf16.mxu0 0
    %3154 = vmatpush1.bf16.msra.mxu0 0
    %3155 = vmatprep.subr.bf16.mxu0 0
    %3156 = vmatpush1.bf16.msra.mxu0 0
    %3157 = vmatprep.subr.bf16.mxu0 0
    %3158 = vmatpush1.bf16.msra.mxu0 0
    %3159 = vmatprep.mubr.bf16.mxu0 0
    %3160 = vmatmul.mubr.bf16.gmra.mrb[0].mxu0 %v2838
    %v3161 = vpop.f32.mrb[0].mxu0
    %v3162 = vadd.f32 %v3121, %v3161
    %v3163 = vpop.f32.mrb[0].mxu0
    %v3164 = vadd.f32 %v3123, %v3163
    %v3165 = vpop.f32.mrb[0].mxu0
    %v3166 = vpop.f32.mrb[0].mxu0
    %3167 = vdwg.mxu0
    %3168 = vmatprep.subr.bf16.mxu0 %v2155
    %3169 = vmatpush1.bf16.msra.mxu0 %v2154
    %3170 = vmatprep.subr.bf16.mxu0 %v2162
    %3171 = vmatpush1.bf16.msra.mxu0 %v2161
    %3172 = vmatprep.subr.bf16.mxu0 %v2169
    %3173 = vmatpush1.bf16.msra.mxu0 %v2168
    %3174 = vmatprep.subr.bf16.mxu0 %v2176
    %3175 = vmatpush1.bf16.msra.mxu0 %v2175
    %3176 = vmatprep.subr.bf16.mxu0 %v2183
    %3177 = vmatpush1.bf16.msra.mxu0 %v2182
    %3178 = vmatprep.subr.bf16.mxu0 %v2190
    %3179 = vmatpush1.bf16.msra.mxu0 %v2189
    %3180 = vmatprep.subr.bf16.mxu0 %v2197
    %3181 = vmatpush1.bf16.msra.mxu0 %v2196
    %3182 = vmatprep.subr.bf16.mxu0 %v2204
    %3183 = vmatpush1.bf16.msra.mxu0 %v2203
    %3184 = vmatprep.subr.bf16.mxu0 %v2211
    %3185 = vmatpush1.bf16.msra.mxu0 %v2210
    %3186 = vmatprep.subr.bf16.mxu0 %v2218
    %3187 = vmatpush1.bf16.msra.mxu0 %v2217
    %3188 = vmatprep.subr.bf16.mxu0 %v2225
    %3189 = vmatpush1.bf16.msra.mxu0 %v2224
    %3190 = vmatprep.subr.bf16.mxu0 %v2232
    %3191 = vmatpush1.bf16.msra.mxu0 %v2231
    %3192 = vmatprep.subr.bf16.mxu0 %v2239
    %3193 = vmatpush1.bf16.msra.mxu0 %v2238
    %3194 = vmatprep.subr.bf16.mxu0 %v2246
    %3195 = vmatpush1.bf16.msra.mxu0 %v2245
    %3196 = vmatprep.subr.bf16.mxu0 %v2253
    %3197 = vmatpush1.bf16.msra.mxu0 %v2252
    %3198 = vmatprep.subr.bf16.mxu0 %v2260
    %3199 = vmatpush1.bf16.msra.mxu0 %v2259
    %3200 = vmatprep.mubr.bf16.mxu0 %v637
    %3201 = vmatmul.mubr.bf16.gmra.mrb[0].mxu0 %v636
    %v3202 = vpop.f32.mrb[0].mxu0
    %v3203 = vadd.f32 %v1056, %v3202
    %v3204 = vpop.f32.mrb[0].mxu0
    %v3205 = vadd.f32 %v1060, %v3204
    %v3206 = vpop.f32.mrb[0].mxu0
    %v3207 = vpop.f32.mrb[0].mxu0
    %3208 = vdwg.mxu0
    %3209 = vmatprep.subr.bf16.mxu0 %v2267
    %3210 = vmatpush1.bf16.msra.mxu0 %v2266
    %3211 = vmatprep.subr.bf16.mxu0 %v2274
    %3212 = vmatpush1.bf16.msra.mxu0 %v2273
    %3213 = vmatprep.subr.bf16.mxu0 %v2281
    %3214 = vmatpush1.bf16.msra.mxu0 %v2280
    %3215 = vmatprep.subr.bf16.mxu0 %v2288
    %3216 = vmatpush1.bf16.msra.mxu0 %v2287
    %3217 = vmatprep.subr.bf16.mxu0 %v2295
    %3218 = vmatpush1.bf16.msra.mxu0 %v2294
    %3219 = vmatprep.subr.bf16.mxu0 %v2302
    %3220 = vmatpush1.bf16.msra.mxu0 %v2301
    %3221 = vmatprep.subr.bf16.mxu0 %v2309
    %3222 = vmatpush1.bf16.msra.mxu0 %v2308
    %3223 = vmatprep.subr.bf16.mxu0 %v2316
    %3224 = vmatpush1.bf16.msra.mxu0 %v2315
    %3225 = vmatprep.subr.bf16.mxu0 %v2323
    %3226 = vmatpush1.bf16.msra.mxu0 %v2322
    %3227 = vmatprep.subr.bf16.mxu0 %v2330
    %3228 = vmatpush1.bf16.msra.mxu0 %v2329
    %3229 = vmatprep.subr.bf16.mxu0 %v2337
    %3230 = vmatpush1.bf16.msra.mxu0 %v2336
    %3231 = vmatprep.subr.bf16.mxu0 %v2344
    %3232 = vmatpush1.bf16.msra.mxu0 %v2343
    %3233 = vmatprep.subr.bf16.mxu0 %v2351
    %3234 = vmatpush1.bf16.msra.mxu0 %v2350
    %3235 = vmatprep.subr.bf16.mxu0 %v2358
    %3236 = vmatpush1.bf16.msra.mxu0 %v2357
    %3237 = vmatprep.subr.bf16.mxu0 %v2365
    %3238 = vmatpush1.bf16.msra.mxu0 %v2364
    %3239 = vmatprep.subr.bf16.mxu0 %v2372
    %3240 = vmatpush1.bf16.msra.mxu0 %v2371
    %3241 = vmatprep.mubr.bf16.mxu0 %v639
    %3242 = vmatmul.mubr.bf16.gmra.mrb[0].mxu0 %v638
    %v3243 = vpop.f32.mrb[0].mxu0
    %v3244 = vadd.f32 %v3203, %v3243
    %v3245 = vpop.f32.mrb[0].mxu0
    %v3246 = vadd.f32 %v3205, %v3245
    %v3247 = vpop.f32.mrb[0].mxu0
    %v3248 = vpop.f32.mrb[0].mxu0
    %3249 = vdwg.mxu0
    %3250 = vmatprep.subr.bf16.mxu0 %v2379
    %3251 = vmatpush1.bf16.msra.mxu0 %v2378
    %3252 = vmatprep.subr.bf16.mxu0 %v2386
    %3253 = vmatpush1.bf16.msra.mxu0 %v2385
    %3254 = vmatprep.subr.bf16.mxu0 %v2393
    %3255 = vmatpush1.bf16.msra.mxu0 %v2392
    %3256 = vmatprep.subr.bf16.mxu0 %v2400
    %3257 = vmatpush1.bf16.msra.mxu0 %v2399
    %3258 = vmatprep.subr.bf16.mxu0 %v2407
    %3259 = vmatpush1.bf16.msra.mxu0 %v2406
    %3260 = vmatprep.subr.bf16.mxu0 %v2414
    %3261 = vmatpush1.bf16.msra.mxu0 %v2413
    %3262 = vmatprep.subr.bf16.mxu0 %v2421
    %3263 = vmatpush1.bf16.msra.mxu0 %v2420
    %3264 = vmatprep.subr.bf16.mxu0 %v2428
    %3265 = vmatpush1.bf16.msra.mxu0 %v2427
    %3266 = vmatprep.subr.bf16.mxu0 %v2435
    %3267 = vmatpush1.bf16.msra.mxu0 %v2434
    %3268 = vmatprep.subr.bf16.mxu0 %v2442
    %3269 = vmatpush1.bf16.msra.mxu0 %v2441
    %3270 = vmatprep.subr.bf16.mxu0 %v2449
    %3271 = vmatpush1.bf16.msra.mxu0 %v2448
    %3272 = vmatprep.subr.bf16.mxu0 %v2456
    %3273 = vmatpush1.bf16.msra.mxu0 %v2455
    %3274 = vmatprep.subr.bf16.mxu0 %v2463
    %3275 = vmatpush1.bf16.msra.mxu0 %v2462
    %3276 = vmatprep.subr.bf16.mxu0 %v2470
    %3277 = vmatpush1.bf16.msra.mxu0 %v2469
    %3278 = vmatprep.subr.bf16.mxu0 %v2477
    %3279 = vmatpush1.bf16.msra.mxu0 %v2476
    %3280 = vmatprep.subr.bf16.mxu0 %v2484
    %3281 = vmatpush1.bf16.msra.mxu0 %v2483
    %3282 = vmatprep.mubr.bf16.mxu0 %v641
    %3283 = vmatmul.mubr.bf16.gmra.mrb[0].mxu0 %v640
    %v3284 = vpop.f32.mrb[0].mxu0
    %v3285 = vadd.f32 %v3244, %v3284
    %v3286 = vpop.f32.mrb[0].mxu0
    %v3287 = vadd.f32 %v3246, %v3286
    %v3288 = vpop.f32.mrb[0].mxu0
    %v3289 = vpop.f32.mrb[0].mxu0
    %3290 = vdwg.mxu0
    %3291 = vmatprep.subr.bf16.mxu0 %v2491
    %3292 = vmatpush1.bf16.msra.mxu0 %v2490
    %3293 = vmatprep.subr.bf16.mxu0 0
    %3294 = vmatpush1.bf16.msra.mxu0 0
    %3295 = vmatprep.subr.bf16.mxu0 0
    %3296 = vmatpush1.bf16.msra.mxu0 0
    %3297 = vmatprep.subr.bf16.mxu0 0
    %3298 = vmatpush1.bf16.msra.mxu0 0
    %3299 = vmatprep.subr.bf16.mxu0 0
    %3300 = vmatpush1.bf16.msra.mxu0 0
    %3301 = vmatprep.subr.bf16.mxu0 0
    %3302 = vmatpush1.bf16.msra.mxu0 0
    %3303 = vmatprep.subr.bf16.mxu0 0
    %3304 = vmatpush1.bf16.msra.mxu0 0
    %3305 = vmatprep.subr.bf16.mxu0 0
    %3306 = vmatpush1.bf16.msra.mxu0 0
    %3307 = vmatprep.subr.bf16.mxu0 0
    %3308 = vmatpush1.bf16.msra.mxu0 0
    %3309 = vmatprep.subr.bf16.mxu0 0
    %3310 = vmatpush1.bf16.msra.mxu0 0
    %3311 = vmatprep.subr.bf16.mxu0 0
    %3312 = vmatpush1.bf16.msra.mxu0 0
    %3313 = vmatprep.subr.bf16.mxu0 0
    %3314 = vmatpush1.bf16.msra.mxu0 0
    %3315 = vmatprep.subr.bf16.mxu0 0
    %3316 = vmatpush1.bf16.msra.mxu0 0
    %3317 = vmatprep.subr.bf16.mxu0 0
    %3318 = vmatpush1.bf16.msra.mxu0 0
    %3319 = vmatprep.subr.bf16.mxu0 0
    %3320 = vmatpush1.bf16.msra.mxu0 0
    %3321 = vmatprep.subr.bf16.mxu0 0
    %3322 = vmatpush1.bf16.msra.mxu0 0
    %3323 = vmatprep.mubr.bf16.mxu0 0
    %3324 = vmatmul.mubr.bf16.gmra.mrb[0].mxu0 %v2838
    %v3325 = vpop.f32.mrb[0].mxu0
    %v3326 = vadd.f32 %v3285, %v3325
    %v3327 = vpop.f32.mrb[0].mxu0
    %v3328 = vadd.f32 %v3287, %v3327
    %v3329 = vpop.f32.mrb[0].mxu0
    %v3330 = vpop.f32.mrb[0].mxu0
    %3331 = vdwg.mxu0
    %3332 = vmatprep.subr.bf16.mxu0 0
    %3333 = vmatpush1.bf16.msra.mxu0 %v2156
    %3334 = vmatprep.subr.bf16.mxu0 0
    %3335 = vmatpush1.bf16.msra.mxu0 %v2163
    %3336 = vmatprep.subr.bf16.mxu0 0
    %3337 = vmatpush1.bf16.msra.mxu0 %v2170
    %3338 = vmatprep.subr.bf16.mxu0 0
    %3339 = vmatpush1.bf16.msra.mxu0 %v2177
    %3340 = vmatprep.subr.bf16.mxu0 0
    %3341 = vmatpush1.bf16.msra.mxu0 %v2184
    %3342 = vmatprep.subr.bf16.mxu0 0
    %3343 = vmatpush1.bf16.msra.mxu0 %v2191
    %3344 = vmatprep.subr.bf16.mxu0 0
    %3345 = vmatpush1.bf16.msra.mxu0 %v2198
    %3346 = vmatprep.subr.bf16.mxu0 0
    %3347 = vmatpush1.bf16.msra.mxu0 %v2205
    %3348 = vmatprep.subr.bf16.mxu0 0
    %3349 = vmatpush1.bf16.msra.mxu0 %v2212
    %3350 = vmatprep.subr.bf16.mxu0 0
    %3351 = vmatpush1.bf16.msra.mxu0 %v2219
    %3352 = vmatprep.subr.bf16.mxu0 0
    %3353 = vmatpush1.bf16.msra.mxu0 %v2226
    %3354 = vmatprep.subr.bf16.mxu0 0
    %3355 = vmatpush1.bf16.msra.mxu0 %v2233
    %3356 = vmatprep.subr.bf16.mxu0 0
    %3357 = vmatpush1.bf16.msra.mxu0 %v2240
    %3358 = vmatprep.subr.bf16.mxu0 0
    %3359 = vmatpush1.bf16.msra.mxu0 %v2247
    %3360 = vmatprep.subr.bf16.mxu0 0
    %3361 = vmatpush1.bf16.msra.mxu0 %v2254
    %3362 = vmatprep.subr.bf16.mxu0 0
    %3363 = vmatpush1.bf16.msra.mxu0 %v2261
    %3364 = vmatprep.mubr.bf16.mxu0 %v637
    %3365 = vmatmul.mubr.bf16.gmra.mrb[0].mxu0 %v636
    %v3366 = vpop.f32.mrb[0].mxu0
    %v3367 = vadd.f32 %v1064, %v3366
    %v3368 = vpop.f32.mrb[0].mxu0
    %v3369 = vpop.f32.mrb[0].mxu0
    %v3370 = vpop.f32.mrb[0].mxu0
    %3371 = vdwg.mxu0
    %3372 = vmatprep.subr.bf16.mxu0 0
    %3373 = vmatpush1.bf16.msra.mxu0 %v2268
    %3374 = vmatprep.subr.bf16.mxu0 0
    %3375 = vmatpush1.bf16.msra.mxu0 %v2275
    %3376 = vmatprep.subr.bf16.mxu0 0
    %3377 = vmatpush1.bf16.msra.mxu0 %v2282
    %3378 = vmatprep.subr.bf16.mxu0 0
    %3379 = vmatpush1.bf16.msra.mxu0 %v2289
    %3380 = vmatprep.subr.bf16.mxu0 0
    %3381 = vmatpush1.bf16.msra.mxu0 %v2296
    %3382 = vmatprep.subr.bf16.mxu0 0
    %3383 = vmatpush1.bf16.msra.mxu0 %v2303
    %3384 = vmatprep.subr.bf16.mxu0 0
    %3385 = vmatpush1.bf16.msra.mxu0 %v2310
    %3386 = vmatprep.subr.bf16.mxu0 0
    %3387 = vmatpush1.bf16.msra.mxu0 %v2317
    %3388 = vmatprep.subr.bf16.mxu0 0
    %3389 = vmatpush1.bf16.msra.mxu0 %v2324
    %3390 = vmatprep.subr.bf16.mxu0 0
    %3391 = vmatpush1.bf16.msra.mxu0 %v2331
    %3392 = vmatprep.subr.bf16.mxu0 0
    %3393 = vmatpush1.bf16.msra.mxu0 %v2338
    %3394 = vmatprep.subr.bf16.mxu0 0
    %3395 = vmatpush1.bf16.msra.mxu0 %v2345
    %3396 = vmatprep.subr.bf16.mxu0 0
    %3397 = vmatpush1.bf16.msra.mxu0 %v2352
    %3398 = vmatprep.subr.bf16.mxu0 0
    %3399 = vmatpush1.bf16.msra.mxu0 %v2359
    %3400 = vmatprep.subr.bf16.mxu0 0
    %3401 = vmatpush1.bf16.msra.mxu0 %v2366
    %3402 = vmatprep.subr.bf16.mxu0 0
    %3403 = vmatpush1.bf16.msra.mxu0 %v2373
    %3404 = vmatprep.mubr.bf16.mxu0 %v639
    %3405 = vmatmul.mubr.bf16.gmra.mrb[0].mxu0 %v638
    %v3406 = vpop.f32.mrb[0].mxu0
    %v3407 = vadd.f32 %v3367, %v3406
    %v3408 = vpop.f32.mrb[0].mxu0
    %v3409 = vpop.f32.mrb[0].mxu0
    %v3410 = vpop.f32.mrb[0].mxu0
    %3411 = vdwg.mxu0
    %3412 = vmatprep.subr.bf16.mxu0 0
    %3413 = vmatpush1.bf16.msra.mxu0 %v2380
    %3414 = vmatprep.subr.bf16.mxu0 0
    %3415 = vmatpush1.bf16.msra.mxu0 %v2387
    %3416 = vmatprep.subr.bf16.mxu0 0
    %3417 = vmatpush1.bf16.msra.mxu0 %v2394
    %3418 = vmatprep.subr.bf16.mxu0 0
    %3419 = vmatpush1.bf16.msra.mxu0 %v2401
    %3420 = vmatprep.subr.bf16.mxu0 0
    %3421 = vmatpush1.bf16.msra.mxu0 %v2408
    %3422 = vmatprep.subr.bf16.mxu0 0
    %3423 = vmatpush1.bf16.msra.mxu0 %v2415
    %3424 = vmatprep.subr.bf16.mxu0 0
    %3425 = vmatpush1.bf16.msra.mxu0 %v2422
    %3426 = vmatprep.subr.bf16.mxu0 0
    %3427 = vmatpush1.bf16.msra.mxu0 %v2429
    %3428 = vmatprep.subr.bf16.mxu0 0
    %3429 = vmatpush1.bf16.msra.mxu0 %v2436
    %3430 = vmatprep.subr.bf16.mxu0 0
    %3431 = vmatpush1.bf16.msra.mxu0 %v2443
    %3432 = vmatprep.subr.bf16.mxu0 0
    %3433 = vmatpush1.bf16.msra.mxu0 %v2450
    %3434 = vmatprep.subr.bf16.mxu0 0
    %3435 = vmatpush1.bf16.msra.mxu0 %v2457
    %3436 = vmatprep.subr.bf16.mxu0 0
    %3437 = vmatpush1.bf16.msra.mxu0 %v2464
    %3438 = vmatprep.subr.bf16.mxu0 0
    %3439 = vmatpush1.bf16.msra.mxu0 %v2471
    %3440 = vmatprep.subr.bf16.mxu0 0
    %3441 = vmatpush1.bf16.msra.mxu0 %v2478
    %3442 = vmatprep.subr.bf16.mxu0 0
    %3443 = vmatpush1.bf16.msra.mxu0 %v2485
    %3444 = vmatprep.mubr.bf16.mxu0 %v641
    %3445 = vmatmul.mubr.bf16.gmra.mrb[0].mxu0 %v640
    %v3446 = vpop.f32.mrb[0].mxu0
    %v3447 = vadd.f32 %v3407, %v3446
    %v3448 = vpop.f32.mrb[0].mxu0
    %v3449 = vpop.f32.mrb[0].mxu0
    %v3450 = vpop.f32.mrb[0].mxu0
    %3451 = vdwg.mxu0
    %3452 = vmatprep.subr.bf16.mxu0 0
    %3453 = vmatpush1.bf16.msra.mxu0 %v2492
    %3454 = vmatprep.subr.bf16.mxu0 0
    %3455 = vmatpush1.bf16.msra.mxu0 0
    %3456 = vmatprep.subr.bf16.mxu0 0
    %3457 = vmatpush1.bf16.msra.mxu0 0
    %3458 = vmatprep.subr.bf16.mxu0 0
    %3459 = vmatpush1.bf16.msra.mxu0 0
    %3460 = vmatprep.subr.bf16.mxu0 0
    %3461 = vmatpush1.bf16.msra.mxu0 0
    %3462 = vmatprep.subr.bf16.mxu0 0
    %3463 = vmatpush1.bf16.msra.mxu0 0
    %3464 = vmatprep.subr.bf16.mxu0 0
    %3465 = vmatpush1.bf16.msra.mxu0 0
    %3466 = vmatprep.subr.bf16.mxu0 0
    %3467 = vmatpush1.bf16.msra.mxu0 0
    %3468 = vmatprep.subr.bf16.mxu0 0
    %3469 = vmatpush1.bf16.msra.mxu0 0
    %3470 = vmatprep.subr.bf16.mxu0 0
    %3471 = vmatpush1.bf16.msra.mxu0 0
    %3472 = vmatprep.subr.bf16.mxu0 0
    %3473 = vmatpush1.bf16.msra.mxu0 0
    %3474 = vmatprep.subr.bf16.mxu0 0
    %3475 = vmatpush1.bf16.msra.mxu0 0
    %3476 = vmatprep.subr.bf16.mxu0 0
    %3477 = vmatpush1.bf16.msra.mxu0 0
    %3478 = vmatprep.subr.bf16.mxu0 0
    %3479 = vmatpush1.bf16.msra.mxu0 0
    %3480 = vmatprep.subr.bf16.mxu0 0
    %3481 = vmatpush1.bf16.msra.mxu0 0
    %3482 = vmatprep.subr.bf16.mxu0 0
    %3483 = vmatpush1.bf16.msra.mxu0 0
    %3484 = vmatprep.mubr.bf16.mxu0 0
    %3485 = vmatmul.mubr.bf16.gmra.mrb[0].mxu0 %v2838
    %v3486 = vpop.f32.mrb[0].mxu0
    %v3487 = vadd.f32 %v3447, %v3486
    %v3488 = vpop.f32.mrb[0].mxu0
    %v3489 = vpop.f32.mrb[0].mxu0
    %v3490 = vpop.f32.mrb[0].mxu0
    %3491 = vdwg.mxu0
    %v3492 = vmax.f32 %v2998, 0.0
    %v3493 = vmax.f32 %v3000, 0.0
    %v3494 = vmax.f32 %v3162, 0.0
    %v3495 = vmax.f32 %v3164, 0.0
    %v3496 = vmax.f32 %v3326, 0.0
    %v3497 = vmax.f32 %v3328, 0.0
    %v3498 = vmax.f32 %v3487, 0.0
    %v3499 = vpack.c.bf16 %v3492, %v3492
    %v3500 = vpack.c.bf16 %v3493, %v3493
    %v3501 = vpack.c.bf16 %v3494, %v3494
    %v3502 = vpack.c.bf16 %v3495, %v3495
    %v3503 = vpack.c.bf16 %v3496, %v3496
    %v3504 = vpack.c.bf16 %v3497, %v3497
    %v3505 = vpack.c.bf16 %v3498, %v3498
    %v3506 = vld [vmem:[#allocation11] sm:$0xff]
    %v3507 = vld [vmem:[#allocation11 + $0x8] sm:$0xff]
    %v3508 = vld [vmem:[#allocation11 + $0x10] sm:$0xff]
    %v3509 = vld [vmem:[#allocation11 + $0x18] sm:$0xf]
    %v3510 = vld [vmem:[#allocation11 + $0x1c] sm:$0xff]
    %v3511 = vld [vmem:[#allocation11 + $0x24] sm:$0xff]
    %v3512 = vld [vmem:[#allocation11 + $0x2c] sm:$0xff]
    %v3513 = vld [vmem:[#allocation11 + $0x34] sm:$0xf]
    %v3514 = vld [vmem:[#allocation11 + $0x38] sm:$0xff]
    %v3515 = vld [vmem:[#allocation11 + $0x40] sm:$0xff]
    %v3516 = vld [vmem:[#allocation11 + $0x48] sm:$0xff]
    %v3517 = vld [vmem:[#allocation11 + $0x50] sm:$0xf]
    %v3518 = vld [vmem:[#allocation11 + $0x54] sm:$0xff]
    %v3519 = vld [vmem:[#allocation11 + $0x5c] sm:$0xff]
    %v3520 = vld [vmem:[#allocation11 + $0x64] sm:$0xff]
    %v3521 = vld [vmem:[#allocation11 + $0x6c] sm:$0xf]
    %v3522 = vld [vmem:[#allocation11 + $0x70] sm:$0xff]
    %v3523 = vld [vmem:[#allocation11 + $0x78] sm:$0xff]
    %v3524 = vld [vmem:[#allocation11 + $0x80] sm:$0xff]
    %v3525 = vld [vmem:[#allocation11 + $0x88] sm:$0xf]
    %v3526 = vld [vmem:[#allocation11 + $0x8c] sm:$0xff]
    %v3527 = vld [vmem:[#allocation11 + $0x94] sm:$0xff]
    %v3528 = vld [vmem:[#allocation11 + $0x9c] sm:$0xff]
    %v3529 = vld [vmem:[#allocation11 + $0xa4] sm:$0xf]
    %v3530 = vld [vmem:[#allocation11 + $0xa8] sm:$0xff]
    %v3531 = vld [vmem:[#allocation11 + $0xb0] sm:$0xff]
    %v3532 = vld [vmem:[#allocation11 + $0xb8] sm:$0xff]
    %v3533 = vld [vmem:[#allocation11 + $0xc0] sm:$0xf]
    %v3534 = vld [vmem:[#allocation11 + $0xc4] sm:$0xff]
    %v3535 = vld [vmem:[#allocation11 + $0xcc] sm:$0xff]
    %v3536 = vld [vmem:[#allocation11 + $0xd4] sm:$0xff]
    %v3537 = vld [vmem:[#allocation11 + $0xdc] sm:$0xf]
    %v3538 = vld [vmem:[#allocation11 + $0xe0] sm:$0xff]
    %v3539 = vld [vmem:[#allocation11 + $0xe8] sm:$0xff]
    %v3540 = vld [vmem:[#allocation11 + $0xf0] sm:$0xff]
    %v3541 = vld [vmem:[#allocation11 + $0xf8] sm:$0xf]
    %v3542 = vld [vmem:[#allocation11 + $0xfc] sm:$0xff]
    %v3543 = vld [vmem:[#allocation11 + $0x104] sm:$0xff]
    %v3544 = vld [vmem:[#allocation11 + $0x10c] sm:$0xff]
    %v3545 = vld [vmem:[#allocation11 + $0x114] sm:$0xf]
    %v3546 = vld [vmem:[#allocation11 + $0x118] sm:$0xff]
    %v3547 = vld [vmem:[#allocation11 + $0x120] sm:$0xff]
    %v3548 = vld [vmem:[#allocation11 + $0x128] sm:$0xff]
    %v3549 = vld [vmem:[#allocation11 + $0x130] sm:$0xf]
    %v3550 = vld [vmem:[#allocation11 + $0x134] sm:$0xff]
    %v3551 = vld [vmem:[#allocation11 + $0x13c] sm:$0xff]
    %v3552 = vld [vmem:[#allocation11 + $0x144] sm:$0xff]
    %v3553 = vld [vmem:[#allocation11 + $0x14c] sm:$0xf]
    %v3554 = vld [vmem:[#allocation11 + $0x150] sm:$0xff]
    %v3555 = vld [vmem:[#allocation11 + $0x158] sm:$0xff]
    %v3556 = vld [vmem:[#allocation11 + $0x160] sm:$0xff]
    %v3557 = vld [vmem:[#allocation11 + $0x168] sm:$0xf]
    %v3558 = vld [vmem:[#allocation11 + $0x16c] sm:$0xff]
    %v3559 = vld [vmem:[#allocation11 + $0x174] sm:$0xff]
    %v3560 = vld [vmem:[#allocation11 + $0x17c] sm:$0xff]
    %v3561 = vld [vmem:[#allocation11 + $0x184] sm:$0xf]
    %v3562 = vld [vmem:[#allocation11 + $0x188] sm:$0xff]
    %v3563 = vld [vmem:[#allocation11 + $0x190] sm:$0xff]
    %v3564 = vld [vmem:[#allocation11 + $0x198] sm:$0xff]
    %v3565 = vld [vmem:[#allocation11 + $0x1a0] sm:$0xf]
    %v3566 = vld [vmem:[#allocation11 + $0x1a4] sm:$0xff]
    %v3567 = vld [vmem:[#allocation11 + $0x1ac] sm:$0xff]
    %v3568 = vld [vmem:[#allocation11 + $0x1b4] sm:$0xff]
    %v3569 = vld [vmem:[#allocation11 + $0x1bc] sm:$0xf]
    %v3570 = vld [vmem:[#allocation11 + $0x1c0] sm:$0xff]
    %v3571 = vld [vmem:[#allocation11 + $0x1c8] sm:$0xff]
    %v3572 = vld [vmem:[#allocation11 + $0x1d0] sm:$0xff]
    %v3573 = vld [vmem:[#allocation11 + $0x1d8] sm:$0xf]
    %v3574 = vld [vmem:[#allocation11 + $0x1dc] sm:$0xff]
    %v3575 = vld [vmem:[#allocation11 + $0x1e4] sm:$0xff]
    %v3576 = vld [vmem:[#allocation11 + $0x1ec] sm:$0xff]
    %v3577 = vld [vmem:[#allocation11 + $0x1f4] sm:$0xf]
    %v3578 = vld [vmem:[#allocation11 + $0x1f8] sm:$0xff]
    %v3579 = vld [vmem:[#allocation11 + $0x200] sm:$0xff]
    %v3580 = vld [vmem:[#allocation11 + $0x208] sm:$0xff]
    %v3581 = vld [vmem:[#allocation11 + $0x210] sm:$0xf]
    %v3582 = vld [vmem:[#allocation11 + $0x214] sm:$0xff]
    %v3583 = vld [vmem:[#allocation11 + $0x21c] sm:$0xff]
    %v3584 = vld [vmem:[#allocation11 + $0x224] sm:$0xff]
    %v3585 = vld [vmem:[#allocation11 + $0x22c] sm:$0xf]
    %v3586 = vld [vmem:[#allocation11 + $0x230] sm:$0xff]
    %v3587 = vld [vmem:[#allocation11 + $0x238] sm:$0xff]
    %v3588 = vld [vmem:[#allocation11 + $0x240] sm:$0xff]
    %v3589 = vld [vmem:[#allocation11 + $0x248] sm:$0xf]
    %v3590 = vld [vmem:[#allocation11 + $0x24c] sm:$0xff]
    %v3591 = vld [vmem:[#allocation11 + $0x254] sm:$0xff]
    %v3592 = vld [vmem:[#allocation11 + $0x25c] sm:$0xff]
    %v3593 = vld [vmem:[#allocation11 + $0x264] sm:$0xf]
    %v3594 = vld [vmem:[#allocation11 + $0x268] sm:$0xff]
    %v3595 = vld [vmem:[#allocation11 + $0x270] sm:$0xff]
    %v3596 = vld [vmem:[#allocation11 + $0x278] sm:$0xff]
    %v3597 = vld [vmem:[#allocation11 + $0x280] sm:$0xf]
    %v3598 = vld [vmem:[#allocation11 + $0x284] sm:$0xff]
    %v3599 = vld [vmem:[#allocation11 + $0x28c] sm:$0xff]
    %v3600 = vld [vmem:[#allocation11 + $0x294] sm:$0xff]
    %v3601 = vld [vmem:[#allocation11 + $0x29c] sm:$0xf]
    %v3602 = vld [vmem:[#allocation11 + $0x2a0] sm:$0xff]
    %v3603 = vld [vmem:[#allocation11 + $0x2a8] sm:$0xff]
    %v3604 = vld [vmem:[#allocation11 + $0x2b0] sm:$0xff]
    %v3605 = vld [vmem:[#allocation11 + $0x2b8] sm:$0xf]
    %v3606 = vld [vmem:[#allocation11 + $0x2bc] sm:$0xff]
    %v3607 = vld [vmem:[#allocation11 + $0x2c4] sm:$0xff]
    %v3608 = vld [vmem:[#allocation11 + $0x2cc] sm:$0xff]
    %v3609 = vld [vmem:[#allocation11 + $0x2d4] sm:$0xf]
    %v3610 = vld [vmem:[#allocation11 + $0x2d8] sm:$0xff]
    %v3611 = vld [vmem:[#allocation11 + $0x2e0] sm:$0xff]
    %v3612 = vld [vmem:[#allocation11 + $0x2e8] sm:$0xff]
    %v3613 = vld [vmem:[#allocation11 + $0x2f0] sm:$0xf]
    %v3614 = vld [vmem:[#allocation11 + $0x2f4] sm:$0xff]
    %v3615 = vld [vmem:[#allocation11 + $0x2fc] sm:$0xff]
    %v3616 = vld [vmem:[#allocation11 + $0x304] sm:$0xff]
    %v3617 = vld [vmem:[#allocation11 + $0x30c] sm:$0xf]
    %v3618 = vld [vmem:[#allocation11 + $0x310] sm:$0xff]
    %v3619 = vld [vmem:[#allocation11 + $0x318] sm:$0xff]
    %v3620 = vld [vmem:[#allocation11 + $0x320] sm:$0xff]
    %v3621 = vld [vmem:[#allocation11 + $0x328] sm:$0xf]
    %v3622 = vld [vmem:[#allocation11 + $0x32c] sm:$0xff]
    %v3623 = vld [vmem:[#allocation11 + $0x334] sm:$0xff]
    %v3624 = vld [vmem:[#allocation11 + $0x33c] sm:$0xff]
    %v3625 = vld [vmem:[#allocation11 + $0x344] sm:$0xf]
    %v3626 = vld [vmem:[#allocation11 + $0x348] sm:$0xff]
    %v3627 = vld [vmem:[#allocation11 + $0x350] sm:$0xff]
    %v3628 = vld [vmem:[#allocation11 + $0x358] sm:$0xff]
    %v3629 = vld [vmem:[#allocation11 + $0x360] sm:$0xf]
    %v3630 = vld [vmem:[#allocation11 + $0x364] sm:$0xff]
    %v3631 = vld [vmem:[#allocation11 + $0x36c] sm:$0xff]
    %v3632 = vld [vmem:[#allocation11 + $0x374] sm:$0xff]
    %v3633 = vld [vmem:[#allocation11 + $0x37c] sm:$0xf]
    %v3634 = vld [vmem:[#allocation11 + $0x380] sm:$0xff]
    %v3635 = vld [vmem:[#allocation11 + $0x388] sm:$0xff]
    %v3636 = vld [vmem:[#allocation11 + $0x390] sm:$0xff]
    %v3637 = vld [vmem:[#allocation11 + $0x398] sm:$0xf]
    %v3638 = vld [vmem:[#allocation11 + $0x39c] sm:$0xff]
    %v3639 = vld [vmem:[#allocation11 + $0x3a4] sm:$0xff]
    %v3640 = vld [vmem:[#allocation11 + $0x3ac] sm:$0xff]
    %v3641 = vld [vmem:[#allocation11 + $0x3b4] sm:$0xf]
    %v3642 = vld [vmem:[#allocation11 + $0x3b8] sm:$0xff]
    %v3643 = vld [vmem:[#allocation11 + $0x3c0] sm:$0xff]
    %v3644 = vld [vmem:[#allocation11 + $0x3c8] sm:$0xff]
    %v3645 = vld [vmem:[#allocation11 + $0x3d0] sm:$0xf]
    %v3646 = vld [vmem:[#allocation11 + $0x3d4] sm:$0xff]
    %v3647 = vld [vmem:[#allocation11 + $0x3dc] sm:$0xff]
    %v3648 = vld [vmem:[#allocation11 + $0x3e4] sm:$0xff]
    %v3649 = vld [vmem:[#allocation11 + $0x3ec] sm:$0xf]
    %v3650 = vld [vmem:[#allocation11 + $0x3f0] sm:$0xff]
    %v3651 = vld [vmem:[#allocation11 + $0x3f8] sm:$0xff]
    %v3652 = vld [vmem:[#allocation11 + $0x400] sm:$0xff]
    %v3653 = vld [vmem:[#allocation11 + $0x408] sm:$0xf]
    %v3654 = vld [vmem:[#allocation11 + $0x40c] sm:$0xff]
    %v3655 = vld [vmem:[#allocation11 + $0x414] sm:$0xff]
    %v3656 = vld [vmem:[#allocation11 + $0x41c] sm:$0xff]
    %v3657 = vld [vmem:[#allocation11 + $0x424] sm:$0xf]
    %v3658 = vld [vmem:[#allocation11 + $0x428] sm:$0xff]
    %v3659 = vld [vmem:[#allocation11 + $0x430] sm:$0xff]
    %v3660 = vld [vmem:[#allocation11 + $0x438] sm:$0xff]
    %v3661 = vld [vmem:[#allocation11 + $0x440] sm:$0xf]
    %v3662 = vld [vmem:[#allocation11 + $0x444] sm:$0xff]
    %v3663 = vld [vmem:[#allocation11 + $0x44c] sm:$0xff]
    %v3664 = vld [vmem:[#allocation11 + $0x454] sm:$0xff]
    %v3665 = vld [vmem:[#allocation11 + $0x45c] sm:$0xf]
    %v3666 = vld [vmem:[#allocation11 + $0x460] sm:$0xff]
    %v3667 = vld [vmem:[#allocation11 + $0x468] sm:$0xff]
    %v3668 = vld [vmem:[#allocation11 + $0x470] sm:$0xff]
    %v3669 = vld [vmem:[#allocation11 + $0x478] sm:$0xf]
    %v3670 = vld [vmem:[#allocation11 + $0x47c] sm:$0xff]
    %v3671 = vld [vmem:[#allocation11 + $0x484] sm:$0xff]
    %v3672 = vld [vmem:[#allocation11 + $0x48c] sm:$0xff]
    %v3673 = vld [vmem:[#allocation11 + $0x494] sm:$0xf]
    %v3674 = vld [vmem:[#allocation11 + $0x498] sm:$0xff]
    %v3675 = vld [vmem:[#allocation11 + $0x4a0] sm:$0xff]
    %v3676 = vld [vmem:[#allocation11 + $0x4a8] sm:$0xff]
    %v3677 = vld [vmem:[#allocation11 + $0x4b0] sm:$0xf]
    %v3678 = vld [vmem:[#allocation11 + $0x4b4] sm:$0xff]
    %v3679 = vld [vmem:[#allocation11 + $0x4bc] sm:$0xff]
    %v3680 = vld [vmem:[#allocation11 + $0x4c4] sm:$0xff]
    %v3681 = vld [vmem:[#allocation11 + $0x4cc] sm:$0xf]
    %v3682 = vld [vmem:[#allocation11 + $0x4d0] sm:$0xff]
    %v3683 = vld [vmem:[#allocation11 + $0x4d8] sm:$0xff]
    %v3684 = vld [vmem:[#allocation11 + $0x4e0] sm:$0xff]
    %v3685 = vld [vmem:[#allocation11 + $0x4e8] sm:$0xf]
    %v3686 = vld [vmem:[#allocation11 + $0x4ec] sm:$0xff]
    %v3687 = vld [vmem:[#allocation11 + $0x4f4] sm:$0xff]
    %v3688 = vld [vmem:[#allocation11 + $0x4fc] sm:$0xff]
    %v3689 = vld [vmem:[#allocation11 + $0x504] sm:$0xf]
    %v3690 = vld [vmem:[#allocation11 + $0x508] sm:$0xff]
    %v3691 = vld [vmem:[#allocation11 + $0x510] sm:$0xff]
    %v3692 = vld [vmem:[#allocation11 + $0x518] sm:$0xff]
    %v3693 = vld [vmem:[#allocation11 + $0x520] sm:$0xf]
    %v3694 = vld [vmem:[#allocation11 + $0x524] sm:$0xff]
    %v3695 = vld [vmem:[#allocation11 + $0x52c] sm:$0xff]
    %v3696 = vld [vmem:[#allocation11 + $0x534] sm:$0xff]
    %v3697 = vld [vmem:[#allocation11 + $0x53c] sm:$0xf]
    %v3698 = vld [vmem:[#allocation11 + $0x540] sm:$0xff]
    %v3699 = vld [vmem:[#allocation11 + $0x548] sm:$0xff]
    %v3700 = vld [vmem:[#allocation11 + $0x550] sm:$0xff]
    %v3701 = vld [vmem:[#allocation11 + $0x558] sm:$0xf]
    %v3702 = vld [vmem:[#allocation11 + $0x55c] sm:$0xff]
    %v3703 = vld [vmem:[#allocation11 + $0x564] sm:$0xff]
    %v3704 = vld [vmem:[#allocation11 + $0x56c] sm:$0xff]
    %v3705 = vld [vmem:[#allocation11 + $0x574] sm:$0xf]
    %v3706 = vld [vmem:[#allocation11 + $0x578] sm:$0xff]
    %v3707 = vld [vmem:[#allocation11 + $0x580] sm:$0xff]
    %v3708 = vld [vmem:[#allocation11 + $0x588] sm:$0xff]
    %v3709 = vld [vmem:[#allocation11 + $0x590] sm:$0xf]
    %v3710 = vld [vmem:[#allocation11 + $0x594] sm:$0xff]
    %v3711 = vld [vmem:[#allocation11 + $0x59c] sm:$0xff]
    %v3712 = vld [vmem:[#allocation11 + $0x5a4] sm:$0xff]
    %v3713 = vld [vmem:[#allocation11 + $0x5ac] sm:$0xf]
    %v3714 = vld [vmem:[#allocation11 + $0x5b0] sm:$0xff]
    %v3715 = vld [vmem:[#allocation11 + $0x5b8] sm:$0xff]
    %v3716 = vld [vmem:[#allocation11 + $0x5c0] sm:$0xff]
    %v3717 = vld [vmem:[#allocation11 + $0x5c8] sm:$0xf]
    %v3718 = vld [vmem:[#allocation11 + $0x5cc] sm:$0xff]
    %v3719 = vld [vmem:[#allocation11 + $0x5d4] sm:$0xff]
    %v3720 = vld [vmem:[#allocation11 + $0x5dc] sm:$0xff]
    %v3721 = vld [vmem:[#allocation11 + $0x5e4] sm:$0xf]
    %v3722 = vld [vmem:[#allocation11 + $0x5e8] sm:$0xff]
    %v3723 = vld [vmem:[#allocation11 + $0x5f0] sm:$0xff]
    %v3724 = vld [vmem:[#allocation11 + $0x5f8] sm:$0xff]
    %v3725 = vld [vmem:[#allocation11 + $0x600] sm:$0xf]
    %v3726 = vld [vmem:[#allocation11 + $0x604] sm:$0xff]
    %v3727 = vld [vmem:[#allocation11 + $0x60c] sm:$0xff]
    %v3728 = vld [vmem:[#allocation11 + $0x614] sm:$0xff]
    %v3729 = vld [vmem:[#allocation11 + $0x61c] sm:$0xf]
    %v3730 = vld [vmem:[#allocation11 + $0x620] sm:$0xff]
    %v3731 = vld [vmem:[#allocation11 + $0x628] sm:$0xff]
    %v3732 = vld [vmem:[#allocation11 + $0x630] sm:$0xff]
    %v3733 = vld [vmem:[#allocation11 + $0x638] sm:$0xf]
    %v3734 = vld [vmem:[#allocation11 + $0x63c] sm:$0xff]
    %v3735 = vld [vmem:[#allocation11 + $0x644] sm:$0xff]
    %v3736 = vld [vmem:[#allocation11 + $0x64c] sm:$0xff]
    %v3737 = vld [vmem:[#allocation11 + $0x654] sm:$0xf]
    %v3738 = vld [vmem:[#allocation11 + $0x658] sm:$0xff]
    %v3739 = vld [vmem:[#allocation11 + $0x660] sm:$0xff]
    %v3740 = vld [vmem:[#allocation11 + $0x668] sm:$0xff]
    %v3741 = vld [vmem:[#allocation11 + $0x670] sm:$0xf]
    %v3742 = vld [vmem:[#allocation11 + $0x674] sm:$0xff]
    %v3743 = vld [vmem:[#allocation11 + $0x67c] sm:$0xff]
    %v3744 = vld [vmem:[#allocation11 + $0x684] sm:$0xff]
    %v3745 = vld [vmem:[#allocation11 + $0x68c] sm:$0xf]
    %v3746 = vld [vmem:[#allocation11 + $0x690] sm:$0xff]
    %v3747 = vld [vmem:[#allocation11 + $0x698] sm:$0xff]
    %v3748 = vld [vmem:[#allocation11 + $0x6a0] sm:$0xff]
    %v3749 = vld [vmem:[#allocation11 + $0x6a8] sm:$0xf]
    %v3750 = vld [vmem:[#allocation11 + $0x6ac] sm:$0xff]
    %v3751 = vld [vmem:[#allocation11 + $0x6b4] sm:$0xff]
    %v3752 = vld [vmem:[#allocation11 + $0x6bc] sm:$0xff]
    %v3753 = vld [vmem:[#allocation11 + $0x6c4] sm:$0xf]
    %v3754 = vld [vmem:[#allocation11 + $0x6c8] sm:$0xff]
    %v3755 = vld [vmem:[#allocation11 + $0x6d0] sm:$0xff]
    %v3756 = vld [vmem:[#allocation11 + $0x6d8] sm:$0xff]
    %v3757 = vld [vmem:[#allocation11 + $0x6e0] sm:$0xf]
    %v3758 = vld [vmem:[#allocation11 + $0x6e4] sm:$0xff]
    %v3759 = vld [vmem:[#allocation11 + $0x6ec] sm:$0xff]
    %v3760 = vld [vmem:[#allocation11 + $0x6f4] sm:$0xff]
    %v3761 = vld [vmem:[#allocation11 + $0x6fc] sm:$0xf]
    %v3762 = vld [vmem:[#allocation11 + $0x700] sm:$0xff]
    %v3763 = vld [vmem:[#allocation11 + $0x708] sm:$0xff]
    %v3764 = vld [vmem:[#allocation11 + $0x710] sm:$0xff]
    %v3765 = vld [vmem:[#allocation11 + $0x718] sm:$0xf]
    %v3766 = vld [vmem:[#allocation11 + $0x71c] sm:$0xff]
    %v3767 = vld [vmem:[#allocation11 + $0x724] sm:$0xff]
    %v3768 = vld [vmem:[#allocation11 + $0x72c] sm:$0xff]
    %v3769 = vld [vmem:[#allocation11 + $0x734] sm:$0xf]
    %v3770 = vld [vmem:[#allocation11 + $0x738] sm:$0xff]
    %v3771 = vld [vmem:[#allocation11 + $0x740] sm:$0xff]
    %v3772 = vld [vmem:[#allocation11 + $0x748] sm:$0xff]
    %v3773 = vld [vmem:[#allocation11 + $0x750] sm:$0xf]
    %v3774 = vld [vmem:[#allocation11 + $0x754] sm:$0xff]
    %v3775 = vld [vmem:[#allocation11 + $0x75c] sm:$0xff]
    %v3776 = vld [vmem:[#allocation11 + $0x764] sm:$0xff]
    %v3777 = vld [vmem:[#allocation11 + $0x76c] sm:$0xf]
    %v3778 = vld [vmem:[#allocation11 + $0x770] sm:$0xff]
    %v3779 = vld [vmem:[#allocation11 + $0x778] sm:$0xff]
    %v3780 = vld [vmem:[#allocation11 + $0x780] sm:$0xff]
    %v3781 = vld [vmem:[#allocation11 + $0x788] sm:$0xf]
    %v3782 = vld [vmem:[#allocation11 + $0x78c] sm:$0xff]
    %v3783 = vld [vmem:[#allocation11 + $0x794] sm:$0xff]
    %v3784 = vld [vmem:[#allocation11 + $0x79c] sm:$0xff]
    %v3785 = vld [vmem:[#allocation11 + $0x7a4] sm:$0xf]
    %v3786 = vld [vmem:[#allocation11 + $0x7a8] sm:$0xff]
    %v3787 = vld [vmem:[#allocation11 + $0x7b0] sm:$0xff]
    %v3788 = vld [vmem:[#allocation11 + $0x7b8] sm:$0xff]
    %v3789 = vld [vmem:[#allocation11 + $0x7c0] sm:$0xf]
    %v3790 = vld [vmem:[#allocation11 + $0x7c4] sm:$0xff]
    %v3791 = vld [vmem:[#allocation11 + $0x7cc] sm:$0xff]
    %v3792 = vld [vmem:[#allocation11 + $0x7d4] sm:$0xff]
    %v3793 = vld [vmem:[#allocation11 + $0x7dc] sm:$0xf]
    %v3794 = vld [vmem:[#allocation11 + $0x7e0] sm:$0xff]
    %v3795 = vld [vmem:[#allocation11 + $0x7e8] sm:$0xff]
    %v3796 = vld [vmem:[#allocation11 + $0x7f0] sm:$0xff]
    %v3797 = vld [vmem:[#allocation11 + $0x7f8] sm:$0xf]
    %v3798 = vld [vmem:[#allocation11 + $0x7fc] sm:$0xff]
    %v3799 = vld [vmem:[#allocation11 + $0x804] sm:$0xff]
    %v3800 = vld [vmem:[#allocation11 + $0x80c] sm:$0xff]
    %v3801 = vld [vmem:[#allocation11 + $0x814] sm:$0xf]
    %v3802 = vld [vmem:[#allocation11 + $0x818] sm:$0xff]
    %v3803 = vld [vmem:[#allocation11 + $0x820] sm:$0xff]
    %v3804 = vld [vmem:[#allocation11 + $0x828] sm:$0xff]
    %v3805 = vld [vmem:[#allocation11 + $0x830] sm:$0xf]
    %v3806 = vld [vmem:[#allocation11 + $0x834] sm:$0xff]
    %v3807 = vld [vmem:[#allocation11 + $0x83c] sm:$0xff]
    %v3808 = vld [vmem:[#allocation11 + $0x844] sm:$0xff]
    %v3809 = vld [vmem:[#allocation11 + $0x84c] sm:$0xf]
    %v3810 = vld [vmem:[#allocation11 + $0x850] sm:$0xff]
    %v3811 = vld [vmem:[#allocation11 + $0x858] sm:$0xff]
    %v3812 = vld [vmem:[#allocation11 + $0x860] sm:$0xff]
    %v3813 = vld [vmem:[#allocation11 + $0x868] sm:$0xf]
    %v3814 = vld [vmem:[#allocation11 + $0x86c] sm:$0xff]
    %v3815 = vld [vmem:[#allocation11 + $0x874] sm:$0xff]
    %v3816 = vld [vmem:[#allocation11 + $0x87c] sm:$0xff]
    %v3817 = vld [vmem:[#allocation11 + $0x884] sm:$0xf]
    %v3818 = vld [vmem:[#allocation11 + $0x888] sm:$0xff]
    %v3819 = vld [vmem:[#allocation11 + $0x890] sm:$0xff]
    %v3820 = vld [vmem:[#allocation11 + $0x898] sm:$0xff]
    %v3821 = vld [vmem:[#allocation11 + $0x8a0] sm:$0xf]
    %v3822 = vld [vmem:[#allocation11 + $0x8a4] sm:$0xff]
    %v3823 = vld [vmem:[#allocation11 + $0x8ac] sm:$0xff]
    %v3824 = vld [vmem:[#allocation11 + $0x8b4] sm:$0xff]
    %v3825 = vld [vmem:[#allocation11 + $0x8bc] sm:$0xf]
    %v3826 = vld [vmem:[#allocation11 + $0x8c0] sm:$0xff]
    %v3827 = vld [vmem:[#allocation11 + $0x8c8] sm:$0xff]
    %v3828 = vld [vmem:[#allocation11 + $0x8d0] sm:$0xff]
    %v3829 = vld [vmem:[#allocation11 + $0x8d8] sm:$0xf]
    %v3830 = vld [vmem:[#allocation11 + $0x8dc] sm:$0xff]
    %v3831 = vld [vmem:[#allocation11 + $0x8e4] sm:$0xff]
    %v3832 = vld [vmem:[#allocation11 + $0x8ec] sm:$0xff]
    %v3833 = vld [vmem:[#allocation11 + $0x8f4] sm:$0xf]
    %v3834 = vld [vmem:[#allocation11 + $0x8f8] sm:$0xff]
    %v3835 = vld [vmem:[#allocation11 + $0x900] sm:$0xff]
    %v3836 = vld [vmem:[#allocation11 + $0x908] sm:$0xff]
    %v3837 = vld [vmem:[#allocation11 + $0x910] sm:$0xf]
    %v3838 = vld [vmem:[#allocation11 + $0x914] sm:$0xff]
    %v3839 = vld [vmem:[#allocation11 + $0x91c] sm:$0xff]
    %v3840 = vld [vmem:[#allocation11 + $0x924] sm:$0xff]
    %v3841 = vld [vmem:[#allocation11 + $0x92c] sm:$0xf]
    %v3842 = vld [vmem:[#allocation11 + $0x930] sm:$0xff]
    %v3843 = vld [vmem:[#allocation11 + $0x938] sm:$0xff]
    %v3844 = vld [vmem:[#allocation11 + $0x940] sm:$0xff]
    %v3845 = vld [vmem:[#allocation11 + $0x948] sm:$0xf]
    %v3846 = vld [vmem:[#allocation11 + $0x94c] sm:$0xff]
    %v3847 = vld [vmem:[#allocation11 + $0x954] sm:$0xff]
    %v3848 = vld [vmem:[#allocation11 + $0x95c] sm:$0xff]
    %v3849 = vld [vmem:[#allocation11 + $0x964] sm:$0xf]
    %v3850 = vld [vmem:[#allocation11 + $0x968] sm:$0xff]
    %v3851 = vld [vmem:[#allocation11 + $0x970] sm:$0xff]
    %v3852 = vld [vmem:[#allocation11 + $0x978] sm:$0xff]
    %v3853 = vld [vmem:[#allocation11 + $0x980] sm:$0xf]
    %v3854 = vld [vmem:[#allocation11 + $0x984] sm:$0xff]
    %v3855 = vld [vmem:[#allocation11 + $0x98c] sm:$0xff]
    %v3856 = vld [vmem:[#allocation11 + $0x994] sm:$0xff]
    %v3857 = vld [vmem:[#allocation11 + $0x99c] sm:$0xf]
    %v3858 = vld [vmem:[#allocation11 + $0x9a0] sm:$0xff]
    %v3859 = vld [vmem:[#allocation11 + $0x9a8] sm:$0xff]
    %v3860 = vld [vmem:[#allocation11 + $0x9b0] sm:$0xff]
    %v3861 = vld [vmem:[#allocation11 + $0x9b8] sm:$0xf]
    %v3862 = vld [vmem:[#allocation11 + $0x9bc] sm:$0xff]
    %v3863 = vld [vmem:[#allocation11 + $0x9c4] sm:$0xff]
    %v3864 = vld [vmem:[#allocation11 + $0x9cc] sm:$0xff]
    %v3865 = vld [vmem:[#allocation11 + $0x9d4] sm:$0xf]
    %v3866 = vld [vmem:[#allocation11 + $0x9d8] sm:$0xff]
    %v3867 = vld [vmem:[#allocation11 + $0x9e0] sm:$0xff]
    %v3868 = vld [vmem:[#allocation11 + $0x9e8] sm:$0xff]
    %v3869 = vld [vmem:[#allocation11 + $0x9f0] sm:$0xf]
    %v3870 = vld [vmem:[#allocation11 + $0x9f4] sm:$0xff]
    %v3871 = vld [vmem:[#allocation11 + $0x9fc] sm:$0xff]
    %v3872 = vld [vmem:[#allocation11 + $0xa04] sm:$0xff]
    %v3873 = vld [vmem:[#allocation11 + $0xa0c] sm:$0xf]
    %v3874 = vld [vmem:[#allocation11 + $0xa10] sm:$0xff]
    %v3875 = vld [vmem:[#allocation11 + $0xa18] sm:$0xff]
    %v3876 = vld [vmem:[#allocation11 + $0xa20] sm:$0xff]
    %v3877 = vld [vmem:[#allocation11 + $0xa28] sm:$0xf]
    %v3878 = vld [vmem:[#allocation11 + $0xa2c] sm:$0xff]
    %v3879 = vld [vmem:[#allocation11 + $0xa34] sm:$0xff]
    %v3880 = vld [vmem:[#allocation11 + $0xa3c] sm:$0xff]
    %v3881 = vld [vmem:[#allocation11 + $0xa44] sm:$0xf]
    %v3882 = vld [vmem:[#allocation11 + $0xa48] sm:$0xff]
    %v3883 = vld [vmem:[#allocation11 + $0xa50] sm:$0xff]
    %v3884 = vld [vmem:[#allocation11 + $0xa58] sm:$0xff]
    %v3885 = vld [vmem:[#allocation11 + $0xa60] sm:$0xf]
    %v3886 = vld [vmem:[#allocation11 + $0xa64] sm:$0xff]
    %v3887 = vld [vmem:[#allocation11 + $0xa6c] sm:$0xff]
    %v3888 = vld [vmem:[#allocation11 + $0xa74] sm:$0xff]
    %v3889 = vld [vmem:[#allocation11 + $0xa7c] sm:$0xf]
    %v3890 = vld [vmem:[#allocation11 + $0xa80] sm:$0xff]
    %v3891 = vld [vmem:[#allocation11 + $0xa88] sm:$0xff]
    %v3892 = vld [vmem:[#allocation11 + $0xa90] sm:$0xff]
    %v3893 = vld [vmem:[#allocation11 + $0xa98] sm:$0xf]
    %v3894 = vld [vmem:[#allocation11 + $0xa9c] sm:$0xff]
    %v3895 = vld [vmem:[#allocation11 + $0xaa4] sm:$0xff]
    %v3896 = vld [vmem:[#allocation11 + $0xaac] sm:$0xff]
    %v3897 = vld [vmem:[#allocation11 + $0xab4] sm:$0xf]
    %v3898 = vld [vmem:[#allocation13] sm:$0x7f]
    %v3900 = vlaneseq
    %v3901 = vshrl.u32 %v3900, 7
    %v3902 = vsub.s32 0, %v3901
    %v3903 = vrot.slane %v3898, %v3902
    %v3904 = vlaneseq
    %v3905 = vshrl.u32 %v3904, 7
    %v3906 = vsub.s32 1, %v3905
    %v3907 = vrot.slane %v3898, %v3906
    %v3908 = vlaneseq
    %v3909 = vshrl.u32 %v3908, 7
    %v3910 = vsub.s32 2, %v3909
    %v3911 = vrot.slane %v3898, %v3910
    %v3912 = vlaneseq
    %v3913 = vshrl.u32 %v3912, 7
    %v3914 = vsub.s32 3, %v3913
    %v3915 = vrot.slane %v3898, %v3914
    %v3916 = vlaneseq
    %v3917 = vshrl.u32 %v3916, 7
    %v3918 = vsub.s32 4, %v3917
    %v3919 = vrot.slane %v3898, %v3918
    %v3920 = vlaneseq
    %v3921 = vshrl.u32 %v3920, 7
    %v3922 = vsub.s32 5, %v3921
    %v3923 = vrot.slane %v3898, %v3922
    %v3924 = vlaneseq
    %v3925 = vshrl.u32 %v3924, 7
    %v3926 = vsub.s32 6, %v3925
    %v3927 = vrot.slane %v3898, %v3926
    %v4327 = vunpack.c.l.b16 %v3506
    %v4328 = vunpack.c.h.b16 %v3506
    %v4329 = vunpack.c.l.b16 %v3507
    %v4330 = vunpack.c.h.b16 %v3507
    %v4331 = vunpack.c.l.b16 %v3508
    %v4332 = vunpack.c.h.b16 %v3508
    %v4333 = vunpack.c.l.b16 %v3509
    %v4334 = vunpack.c.l.b16 %v3510
    %v4335 = vunpack.c.h.b16 %v3510
    %v4336 = vunpack.c.l.b16 %v3511
    %v4337 = vunpack.c.h.b16 %v3511
    %v4338 = vunpack.c.l.b16 %v3512
    %v4339 = vunpack.c.h.b16 %v3512
    %v4340 = vunpack.c.l.b16 %v3513
    %v4341 = vunpack.c.l.b16 %v3514
    %v4342 = vunpack.c.h.b16 %v3514
    %v4343 = vunpack.c.l.b16 %v3515
    %v4344 = vunpack.c.h.b16 %v3515
    %v4345 = vunpack.c.l.b16 %v3516
    %v4346 = vunpack.c.h.b16 %v3516
    %v4347 = vunpack.c.l.b16 %v3517
    %v4348 = vunpack.c.l.b16 %v3518
    %v4349 = vunpack.c.h.b16 %v3518
    %v4350 = vunpack.c.l.b16 %v3519
    %v4351 = vunpack.c.h.b16 %v3519
    %v4352 = vunpack.c.l.b16 %v3520
    %v4353 = vunpack.c.h.b16 %v3520
    %v4354 = vunpack.c.l.b16 %v3521
    %v4355 = vunpack.c.l.b16 %v3522
    %v4356 = vunpack.c.h.b16 %v3522
    %v4357 = vunpack.c.l.b16 %v3523
    %v4358 = vunpack.c.h.b16 %v3523
    %v4359 = vunpack.c.l.b16 %v3524
    %v4360 = vunpack.c.h.b16 %v3524
    %v4361 = vunpack.c.l.b16 %v3525
    %v4362 = vunpack.c.l.b16 %v3526
    %v4363 = vunpack.c.h.b16 %v3526
    %v4364 = vunpack.c.l.b16 %v3527
    %v4365 = vunpack.c.h.b16 %v3527
    %v4366 = vunpack.c.l.b16 %v3528
    %v4367 = vunpack.c.h.b16 %v3528
    %v4368 = vunpack.c.l.b16 %v3529
    %v4369 = vunpack.c.l.b16 %v3530
    %v4370 = vunpack.c.h.b16 %v3530
    %v4371 = vunpack.c.l.b16 %v3531
    %v4372 = vunpack.c.h.b16 %v3531
    %v4373 = vunpack.c.l.b16 %v3532
    %v4374 = vunpack.c.h.b16 %v3532
    %v4375 = vunpack.c.l.b16 %v3533
    %v4376 = vunpack.c.l.b16 %v3534
    %v4377 = vunpack.c.h.b16 %v3534
    %v4378 = vunpack.c.l.b16 %v3535
    %v4379 = vunpack.c.h.b16 %v3535
    %v4380 = vunpack.c.l.b16 %v3536
    %v4381 = vunpack.c.h.b16 %v3536
    %v4382 = vunpack.c.l.b16 %v3537
    %v4383 = vunpack.c.l.b16 %v3538
    %v4384 = vunpack.c.h.b16 %v3538
    %v4385 = vunpack.c.l.b16 %v3539
    %v4386 = vunpack.c.h.b16 %v3539
    %v4387 = vunpack.c.l.b16 %v3540
    %v4388 = vunpack.c.h.b16 %v3540
    %v4389 = vunpack.c.l.b16 %v3541
    %v4390 = vunpack.c.l.b16 %v3542
    %v4391 = vunpack.c.h.b16 %v3542
    %v4392 = vunpack.c.l.b16 %v3543
    %v4393 = vunpack.c.h.b16 %v3543
    %v4394 = vunpack.c.l.b16 %v3544
    %v4395 = vunpack.c.h.b16 %v3544
    %v4396 = vunpack.c.l.b16 %v3545
    %v4397 = vunpack.c.l.b16 %v3546
    %v4398 = vunpack.c.h.b16 %v3546
    %v4399 = vunpack.c.l.b16 %v3547
    %v4400 = vunpack.c.h.b16 %v3547
    %v4401 = vunpack.c.l.b16 %v3548
    %v4402 = vunpack.c.h.b16 %v3548
    %v4403 = vunpack.c.l.b16 %v3549
    %v4404 = vunpack.c.l.b16 %v3550
    %v4405 = vunpack.c.h.b16 %v3550
    %v4406 = vunpack.c.l.b16 %v3551
    %v4407 = vunpack.c.h.b16 %v3551
    %v4408 = vunpack.c.l.b16 %v3552
    %v4409 = vunpack.c.h.b16 %v3552
    %v4410 = vunpack.c.l.b16 %v3553
    %v4411 = vunpack.c.l.b16 %v3554
    %v4412 = vunpack.c.h.b16 %v3554
    %v4413 = vunpack.c.l.b16 %v3555
    %v4414 = vunpack.c.h.b16 %v3555
    %v4415 = vunpack.c.l.b16 %v3556
    %v4416 = vunpack.c.h.b16 %v3556
    %v4417 = vunpack.c.l.b16 %v3557
    %v4418 = vunpack.c.l.b16 %v3558
    %v4419 = vunpack.c.h.b16 %v3558
    %v4420 = vunpack.c.l.b16 %v3559
    %v4421 = vunpack.c.h.b16 %v3559
    %v4422 = vunpack.c.l.b16 %v3560
    %v4423 = vunpack.c.h.b16 %v3560
    %v4424 = vunpack.c.l.b16 %v3561
    %v4425 = vunpack.c.l.b16 %v3562
    %v4426 = vunpack.c.h.b16 %v3562
    %v4427 = vunpack.c.l.b16 %v3563
    %v4428 = vunpack.c.h.b16 %v3563
    %v4429 = vunpack.c.l.b16 %v3564
    %v4430 = vunpack.c.h.b16 %v3564
    %v4431 = vunpack.c.l.b16 %v3565
    %v4432 = vunpack.c.l.b16 %v3566
    %v4433 = vunpack.c.h.b16 %v3566
    %v4434 = vunpack.c.l.b16 %v3567
    %v4435 = vunpack.c.h.b16 %v3567
    %v4436 = vunpack.c.l.b16 %v3568
    %v4437 = vunpack.c.h.b16 %v3568
    %v4438 = vunpack.c.l.b16 %v3569
    %v4439 = vunpack.c.l.b16 %v3570
    %v4440 = vunpack.c.h.b16 %v3570
    %v4441 = vunpack.c.l.b16 %v3571
    %v4442 = vunpack.c.h.b16 %v3571
    %v4443 = vunpack.c.l.b16 %v3572
    %v4444 = vunpack.c.h.b16 %v3572
    %v4445 = vunpack.c.l.b16 %v3573
    %v4446 = vunpack.c.l.b16 %v3574
    %v4447 = vunpack.c.h.b16 %v3574
    %v4448 = vunpack.c.l.b16 %v3575
    %v4449 = vunpack.c.h.b16 %v3575
    %v4450 = vunpack.c.l.b16 %v3576
    %v4451 = vunpack.c.h.b16 %v3576
    %v4452 = vunpack.c.l.b16 %v3577
    %v4453 = vunpack.c.l.b16 %v3578
    %v4454 = vunpack.c.h.b16 %v3578
    %v4455 = vunpack.c.l.b16 %v3579
    %v4456 = vunpack.c.h.b16 %v3579
    %v4457 = vunpack.c.l.b16 %v3580
    %v4458 = vunpack.c.h.b16 %v3580
    %v4459 = vunpack.c.l.b16 %v3581
    %v4460 = vunpack.c.l.b16 %v3582
    %v4461 = vunpack.c.h.b16 %v3582
    %v4462 = vunpack.c.l.b16 %v3583
    %v4463 = vunpack.c.h.b16 %v3583
    %v4464 = vunpack.c.l.b16 %v3584
    %v4465 = vunpack.c.h.b16 %v3584
    %v4466 = vunpack.c.l.b16 %v3585
    %v4467 = vunpack.c.l.b16 %v3586
    %v4468 = vunpack.c.h.b16 %v3586
    %v4469 = vunpack.c.l.b16 %v3587
    %v4470 = vunpack.c.h.b16 %v3587
    %v4471 = vunpack.c.l.b16 %v3588
    %v4472 = vunpack.c.h.b16 %v3588
    %v4473 = vunpack.c.l.b16 %v3589
    %v4474 = vunpack.c.l.b16 %v3590
    %v4475 = vunpack.c.h.b16 %v3590
    %v4476 = vunpack.c.l.b16 %v3591
    %v4477 = vunpack.c.h.b16 %v3591
    %v4478 = vunpack.c.l.b16 %v3592
    %v4479 = vunpack.c.h.b16 %v3592
    %v4480 = vunpack.c.l.b16 %v3593
    %v4481 = vunpack.c.l.b16 %v3594
    %v4482 = vunpack.c.h.b16 %v3594
    %v4483 = vunpack.c.l.b16 %v3595
    %v4484 = vunpack.c.h.b16 %v3595
    %v4485 = vunpack.c.l.b16 %v3596
    %v4486 = vunpack.c.h.b16 %v3596
    %v4487 = vunpack.c.l.b16 %v3597
    %v4488 = vunpack.c.l.b16 %v3598
    %v4489 = vunpack.c.h.b16 %v3598
    %v4490 = vunpack.c.l.b16 %v3599
    %v4491 = vunpack.c.h.b16 %v3599
    %v4492 = vunpack.c.l.b16 %v3600
    %v4493 = vunpack.c.h.b16 %v3600
    %v4494 = vunpack.c.l.b16 %v3601
    %v4495 = vunpack.c.l.b16 %v3602
    %v4496 = vunpack.c.h.b16 %v3602
    %v4497 = vunpack.c.l.b16 %v3603
    %v4498 = vunpack.c.h.b16 %v3603
    %v4499 = vunpack.c.l.b16 %v3604
    %v4500 = vunpack.c.h.b16 %v3604
    %v4501 = vunpack.c.l.b16 %v3605
    %v4502 = vunpack.c.l.b16 %v3606
    %v4503 = vunpack.c.h.b16 %v3606
    %v4504 = vunpack.c.l.b16 %v3607
    %v4505 = vunpack.c.h.b16 %v3607
    %v4506 = vunpack.c.l.b16 %v3608
    %v4507 = vunpack.c.h.b16 %v3608
    %v4508 = vunpack.c.l.b16 %v3609
    %v4509 = vunpack.c.l.b16 %v3610
    %v4510 = vunpack.c.h.b16 %v3610
    %v4511 = vunpack.c.l.b16 %v3611
    %v4512 = vunpack.c.h.b16 %v3611
    %v4513 = vunpack.c.l.b16 %v3612
    %v4514 = vunpack.c.h.b16 %v3612
    %v4515 = vunpack.c.l.b16 %v3613
    %v4516 = vunpack.c.l.b16 %v3614
    %v4517 = vunpack.c.h.b16 %v3614
    %v4518 = vunpack.c.l.b16 %v3615
    %v4519 = vunpack.c.h.b16 %v3615
    %v4520 = vunpack.c.l.b16 %v3616
    %v4521 = vunpack.c.h.b16 %v3616
    %v4522 = vunpack.c.l.b16 %v3617
    %v4523 = vunpack.c.l.b16 %v3618
    %v4524 = vunpack.c.h.b16 %v3618
    %v4525 = vunpack.c.l.b16 %v3619
    %v4526 = vunpack.c.h.b16 %v3619
    %v4527 = vunpack.c.l.b16 %v3620
    %v4528 = vunpack.c.h.b16 %v3620
    %v4529 = vunpack.c.l.b16 %v3621
    %v4530 = vunpack.c.l.b16 %v3622
    %v4531 = vunpack.c.h.b16 %v3622
    %v4532 = vunpack.c.l.b16 %v3623
    %v4533 = vunpack.c.h.b16 %v3623
    %v4534 = vunpack.c.l.b16 %v3624
    %v4535 = vunpack.c.h.b16 %v3624
    %v4536 = vunpack.c.l.b16 %v3625
    %v4537 = vunpack.c.l.b16 %v3626
    %v4538 = vunpack.c.h.b16 %v3626
    %v4539 = vunpack.c.l.b16 %v3627
    %v4540 = vunpack.c.h.b16 %v3627
    %v4541 = vunpack.c.l.b16 %v3628
    %v4542 = vunpack.c.h.b16 %v3628
    %v4543 = vunpack.c.l.b16 %v3629
    %v4544 = vunpack.c.l.b16 %v3630
    %v4545 = vunpack.c.h.b16 %v3630
    %v4546 = vunpack.c.l.b16 %v3631
    %v4547 = vunpack.c.h.b16 %v3631
    %v4548 = vunpack.c.l.b16 %v3632
    %v4549 = vunpack.c.h.b16 %v3632
    %v4550 = vunpack.c.l.b16 %v3633
    %v4551 = vunpack.c.l.b16 %v3634
    %v4552 = vunpack.c.h.b16 %v3634
    %v4553 = vunpack.c.l.b16 %v3635
    %v4554 = vunpack.c.h.b16 %v3635
    %v4555 = vunpack.c.l.b16 %v3636
    %v4556 = vunpack.c.h.b16 %v3636
    %v4557 = vunpack.c.l.b16 %v3637
    %v4558 = vunpack.c.l.b16 %v3638
    %v4559 = vunpack.c.h.b16 %v3638
    %v4560 = vunpack.c.l.b16 %v3639
    %v4561 = vunpack.c.h.b16 %v3639
    %v4562 = vunpack.c.l.b16 %v3640
    %v4563 = vunpack.c.h.b16 %v3640
    %v4564 = vunpack.c.l.b16 %v3641
    %v4565 = vunpack.c.l.b16 %v3642
    %v4566 = vunpack.c.h.b16 %v3642
    %v4567 = vunpack.c.l.b16 %v3643
    %v4568 = vunpack.c.h.b16 %v3643
    %v4569 = vunpack.c.l.b16 %v3644
    %v4570 = vunpack.c.h.b16 %v3644
    %v4571 = vunpack.c.l.b16 %v3645
    %v4572 = vunpack.c.l.b16 %v3646
    %v4573 = vunpack.c.h.b16 %v3646
    %v4574 = vunpack.c.l.b16 %v3647
    %v4575 = vunpack.c.h.b16 %v3647
    %v4576 = vunpack.c.l.b16 %v3648
    %v4577 = vunpack.c.h.b16 %v3648
    %v4578 = vunpack.c.l.b16 %v3649
    %v4579 = vunpack.c.l.b16 %v3650
    %v4580 = vunpack.c.h.b16 %v3650
    %v4581 = vunpack.c.l.b16 %v3651
    %v4582 = vunpack.c.h.b16 %v3651
    %v4583 = vunpack.c.l.b16 %v3652
    %v4584 = vunpack.c.h.b16 %v3652
    %v4585 = vunpack.c.l.b16 %v3653
    %v4586 = vunpack.c.l.b16 %v3654
    %v4587 = vunpack.c.h.b16 %v3654
    %v4588 = vunpack.c.l.b16 %v3655
    %v4589 = vunpack.c.h.b16 %v3655
    %v4590 = vunpack.c.l.b16 %v3656
    %v4591 = vunpack.c.h.b16 %v3656
    %v4592 = vunpack.c.l.b16 %v3657
    %v4593 = vunpack.c.l.b16 %v3658
    %v4594 = vunpack.c.h.b16 %v3658
    %v4595 = vunpack.c.l.b16 %v3659
    %v4596 = vunpack.c.h.b16 %v3659
    %v4597 = vunpack.c.l.b16 %v3660
    %v4598 = vunpack.c.h.b16 %v3660
    %v4599 = vunpack.c.l.b16 %v3661
    %v4600 = vunpack.c.l.b16 %v3662
    %v4601 = vunpack.c.h.b16 %v3662
    %v4602 = vunpack.c.l.b16 %v3663
    %v4603 = vunpack.c.h.b16 %v3663
    %v4604 = vunpack.c.l.b16 %v3664
    %v4605 = vunpack.c.h.b16 %v3664
    %v4606 = vunpack.c.l.b16 %v3665
    %v4607 = vunpack.c.l.b16 %v3666
    %v4608 = vunpack.c.h.b16 %v3666
    %v4609 = vunpack.c.l.b16 %v3667
    %v4610 = vunpack.c.h.b16 %v3667
    %v4611 = vunpack.c.l.b16 %v3668
    %v4612 = vunpack.c.h.b16 %v3668
    %v4613 = vunpack.c.l.b16 %v3669
    %v4614 = vunpack.c.l.b16 %v3670
    %v4615 = vunpack.c.h.b16 %v3670
    %v4616 = vunpack.c.l.b16 %v3671
    %v4617 = vunpack.c.h.b16 %v3671
    %v4618 = vunpack.c.l.b16 %v3672
    %v4619 = vunpack.c.h.b16 %v3672
    %v4620 = vunpack.c.l.b16 %v3673
    %v4621 = vunpack.c.l.b16 %v3674
    %v4622 = vunpack.c.h.b16 %v3674
    %v4623 = vunpack.c.l.b16 %v3675
    %v4624 = vunpack.c.h.b16 %v3675
    %v4625 = vunpack.c.l.b16 %v3676
    %v4626 = vunpack.c.h.b16 %v3676
    %v4627 = vunpack.c.l.b16 %v3677
    %v4628 = vunpack.c.l.b16 %v3678
    %v4629 = vunpack.c.h.b16 %v3678
    %v4630 = vunpack.c.l.b16 %v3679
    %v4631 = vunpack.c.h.b16 %v3679
    %v4632 = vunpack.c.l.b16 %v3680
    %v4633 = vunpack.c.h.b16 %v3680
    %v4634 = vunpack.c.l.b16 %v3681
    %v4635 = vunpack.c.l.b16 %v3682
    %v4636 = vunpack.c.h.b16 %v3682
    %v4637 = vunpack.c.l.b16 %v3683
    %v4638 = vunpack.c.h.b16 %v3683
    %v4639 = vunpack.c.l.b16 %v3684
    %v4640 = vunpack.c.h.b16 %v3684
    %v4641 = vunpack.c.l.b16 %v3685
    %v4642 = vunpack.c.l.b16 %v3686
    %v4643 = vunpack.c.h.b16 %v3686
    %v4644 = vunpack.c.l.b16 %v3687
    %v4645 = vunpack.c.h.b16 %v3687
    %v4646 = vunpack.c.l.b16 %v3688
    %v4647 = vunpack.c.h.b16 %v3688
    %v4648 = vunpack.c.l.b16 %v3689
    %v4649 = vunpack.c.l.b16 %v3690
    %v4650 = vunpack.c.h.b16 %v3690
    %v4651 = vunpack.c.l.b16 %v3691
    %v4652 = vunpack.c.h.b16 %v3691
    %v4653 = vunpack.c.l.b16 %v3692
    %v4654 = vunpack.c.h.b16 %v3692
    %v4655 = vunpack.c.l.b16 %v3693
    %v4656 = vunpack.c.l.b16 %v3694
    %v4657 = vunpack.c.h.b16 %v3694
    %v4658 = vunpack.c.l.b16 %v3695
    %v4659 = vunpack.c.h.b16 %v3695
    %v4660 = vunpack.c.l.b16 %v3696
    %v4661 = vunpack.c.h.b16 %v3696
    %v4662 = vunpack.c.l.b16 %v3697
    %v4663 = vunpack.c.l.b16 %v3698
    %v4664 = vunpack.c.h.b16 %v3698
    %v4665 = vunpack.c.l.b16 %v3699
    %v4666 = vunpack.c.h.b16 %v3699
    %v4667 = vunpack.c.l.b16 %v3700
    %v4668 = vunpack.c.h.b16 %v3700
    %v4669 = vunpack.c.l.b16 %v3701
    %v4670 = vunpack.c.l.b16 %v3702
    %v4671 = vunpack.c.h.b16 %v3702
    %v4672 = vunpack.c.l.b16 %v3703
    %v4673 = vunpack.c.h.b16 %v3703
    %v4674 = vunpack.c.l.b16 %v3704
    %v4675 = vunpack.c.h.b16 %v3704
    %v4676 = vunpack.c.l.b16 %v3705
    %v4677 = vunpack.c.l.b16 %v3706
    %v4678 = vunpack.c.h.b16 %v3706
    %v4679 = vunpack.c.l.b16 %v3707
    %v4680 = vunpack.c.h.b16 %v3707
    %v4681 = vunpack.c.l.b16 %v3708
    %v4682 = vunpack.c.h.b16 %v3708
    %v4683 = vunpack.c.l.b16 %v3709
    %v4684 = vunpack.c.l.b16 %v3710
    %v4685 = vunpack.c.h.b16 %v3710
    %v4686 = vunpack.c.l.b16 %v3711
    %v4687 = vunpack.c.h.b16 %v3711
    %v4688 = vunpack.c.l.b16 %v3712
    %v4689 = vunpack.c.h.b16 %v3712
    %v4690 = vunpack.c.l.b16 %v3713
    %v4691 = vunpack.c.l.b16 %v3714
    %v4692 = vunpack.c.h.b16 %v3714
    %v4693 = vunpack.c.l.b16 %v3715
    %v4694 = vunpack.c.h.b16 %v3715
    %v4695 = vunpack.c.l.b16 %v3716
    %v4696 = vunpack.c.h.b16 %v3716
    %v4697 = vunpack.c.l.b16 %v3717
    %v4698 = vunpack.c.l.b16 %v3718
    %v4699 = vunpack.c.h.b16 %v3718
    %v4700 = vunpack.c.l.b16 %v3719
    %v4701 = vunpack.c.h.b16 %v3719
    %v4702 = vunpack.c.l.b16 %v3720
    %v4703 = vunpack.c.h.b16 %v3720
    %v4704 = vunpack.c.l.b16 %v3721
    %v4705 = vunpack.c.l.b16 %v3722
    %v4706 = vunpack.c.h.b16 %v3722
    %v4707 = vunpack.c.l.b16 %v3723
    %v4708 = vunpack.c.h.b16 %v3723
    %v4709 = vunpack.c.l.b16 %v3724
    %v4710 = vunpack.c.h.b16 %v3724
    %v4711 = vunpack.c.l.b16 %v3725
    %v4712 = vunpack.c.l.b16 %v3726
    %v4713 = vunpack.c.h.b16 %v3726
    %v4714 = vunpack.c.l.b16 %v3727
    %v4715 = vunpack.c.h.b16 %v3727
    %v4716 = vunpack.c.l.b16 %v3728
    %v4717 = vunpack.c.h.b16 %v3728
    %v4718 = vunpack.c.l.b16 %v3729
    %v4719 = vunpack.c.l.b16 %v3730
    %v4720 = vunpack.c.h.b16 %v3730
    %v4721 = vunpack.c.l.b16 %v3731
    %v4722 = vunpack.c.h.b16 %v3731
    %v4723 = vunpack.c.l.b16 %v3732
    %v4724 = vunpack.c.h.b16 %v3732
    %v4725 = vunpack.c.l.b16 %v3733
    %v4726 = vunpack.c.l.b16 %v3734
    %v4727 = vunpack.c.h.b16 %v3734
    %v4728 = vunpack.c.l.b16 %v3735
    %v4729 = vunpack.c.h.b16 %v3735
    %v4730 = vunpack.c.l.b16 %v3736
    %v4731 = vunpack.c.h.b16 %v3736
    %v4732 = vunpack.c.l.b16 %v3737
    %v4733 = vunpack.c.l.b16 %v3738
    %v4734 = vunpack.c.h.b16 %v3738
    %v4735 = vunpack.c.l.b16 %v3739
    %v4736 = vunpack.c.h.b16 %v3739
    %v4737 = vunpack.c.l.b16 %v3740
    %v4738 = vunpack.c.h.b16 %v3740
    %v4739 = vunpack.c.l.b16 %v3741
    %v4740 = vunpack.c.l.b16 %v3742
    %v4741 = vunpack.c.h.b16 %v3742
    %v4742 = vunpack.c.l.b16 %v3743
    %v4743 = vunpack.c.h.b16 %v3743
    %v4744 = vunpack.c.l.b16 %v3744
    %v4745 = vunpack.c.h.b16 %v3744
    %v4746 = vunpack.c.l.b16 %v3745
    %v4747 = vunpack.c.l.b16 %v3746
    %v4748 = vunpack.c.h.b16 %v3746
    %v4749 = vunpack.c.l.b16 %v3747
    %v4750 = vunpack.c.h.b16 %v3747
    %v4751 = vunpack.c.l.b16 %v3748
    %v4752 = vunpack.c.h.b16 %v3748
    %v4753 = vunpack.c.l.b16 %v3749
    %v4754 = vunpack.c.l.b16 %v3750
    %v4755 = vunpack.c.h.b16 %v3750
    %v4756 = vunpack.c.l.b16 %v3751
    %v4757 = vunpack.c.h.b16 %v3751
    %v4758 = vunpack.c.l.b16 %v3752
    %v4759 = vunpack.c.h.b16 %v3752
    %v4760 = vunpack.c.l.b16 %v3753
    %v4761 = vunpack.c.l.b16 %v3754
    %v4762 = vunpack.c.h.b16 %v3754
    %v4763 = vunpack.c.l.b16 %v3755
    %v4764 = vunpack.c.h.b16 %v3755
    %v4765 = vunpack.c.l.b16 %v3756
    %v4766 = vunpack.c.h.b16 %v3756
    %v4767 = vunpack.c.l.b16 %v3757
    %v4768 = vunpack.c.l.b16 %v3758
    %v4769 = vunpack.c.h.b16 %v3758
    %v4770 = vunpack.c.l.b16 %v3759
    %v4771 = vunpack.c.h.b16 %v3759
    %v4772 = vunpack.c.l.b16 %v3760
    %v4773 = vunpack.c.h.b16 %v3760
    %v4774 = vunpack.c.l.b16 %v3761
    %v4775 = vunpack.c.l.b16 %v3762
    %v4776 = vunpack.c.h.b16 %v3762
    %v4777 = vunpack.c.l.b16 %v3763
    %v4778 = vunpack.c.h.b16 %v3763
    %v4779 = vunpack.c.l.b16 %v3764
    %v4780 = vunpack.c.h.b16 %v3764
    %v4781 = vunpack.c.l.b16 %v3765
    %v4782 = vunpack.c.l.b16 %v3766
    %v4783 = vunpack.c.h.b16 %v3766
    %v4784 = vunpack.c.l.b16 %v3767
    %v4785 = vunpack.c.h.b16 %v3767
    %v4786 = vunpack.c.l.b16 %v3768
    %v4787 = vunpack.c.h.b16 %v3768
    %v4788 = vunpack.c.l.b16 %v3769
    %v4789 = vunpack.c.l.b16 %v3770
    %v4790 = vunpack.c.h.b16 %v3770
    %v4791 = vunpack.c.l.b16 %v3771
    %v4792 = vunpack.c.h.b16 %v3771
    %v4793 = vunpack.c.l.b16 %v3772
    %v4794 = vunpack.c.h.b16 %v3772
    %v4795 = vunpack.c.l.b16 %v3773
    %v4796 = vunpack.c.l.b16 %v3774
    %v4797 = vunpack.c.h.b16 %v3774
    %v4798 = vunpack.c.l.b16 %v3775
    %v4799 = vunpack.c.h.b16 %v3775
    %v4800 = vunpack.c.l.b16 %v3776
    %v4801 = vunpack.c.h.b16 %v3776
    %v4802 = vunpack.c.l.b16 %v3777
    %v4803 = vunpack.c.l.b16 %v3778
    %v4804 = vunpack.c.h.b16 %v3778
    %v4805 = vunpack.c.l.b16 %v3779
    %v4806 = vunpack.c.h.b16 %v3779
    %v4807 = vunpack.c.l.b16 %v3780
    %v4808 = vunpack.c.h.b16 %v3780
    %v4809 = vunpack.c.l.b16 %v3781
    %v4810 = vunpack.c.l.b16 %v3782
    %v4811 = vunpack.c.h.b16 %v3782
    %v4812 = vunpack.c.l.b16 %v3783
    %v4813 = vunpack.c.h.b16 %v3783
    %v4814 = vunpack.c.l.b16 %v3784
    %v4815 = vunpack.c.h.b16 %v3784
    %v4816 = vunpack.c.l.b16 %v3785
    %v4817 = vunpack.c.l.b16 %v3786
    %v4818 = vunpack.c.h.b16 %v3786
    %v4819 = vunpack.c.l.b16 %v3787
    %v4820 = vunpack.c.h.b16 %v3787
    %v4821 = vunpack.c.l.b16 %v3788
    %v4822 = vunpack.c.h.b16 %v3788
    %v4823 = vunpack.c.l.b16 %v3789
    %v4824 = vunpack.c.l.b16 %v3790
    %v4825 = vunpack.c.h.b16 %v3790
    %v4826 = vunpack.c.l.b16 %v3791
    %v4827 = vunpack.c.h.b16 %v3791
    %v4828 = vunpack.c.l.b16 %v3792
    %v4829 = vunpack.c.h.b16 %v3792
    %v4830 = vunpack.c.l.b16 %v3793
    %v4831 = vunpack.c.l.b16 %v3794
    %v4832 = vunpack.c.h.b16 %v3794
    %v4833 = vunpack.c.l.b16 %v3795
    %v4834 = vunpack.c.h.b16 %v3795
    %v4835 = vunpack.c.l.b16 %v3796
    %v4836 = vunpack.c.h.b16 %v3796
    %v4837 = vunpack.c.l.b16 %v3797
    %v4838 = vunpack.c.l.b16 %v3798
    %v4839 = vunpack.c.h.b16 %v3798
    %v4840 = vunpack.c.l.b16 %v3799
    %v4841 = vunpack.c.h.b16 %v3799
    %v4842 = vunpack.c.l.b16 %v3800
    %v4843 = vunpack.c.h.b16 %v3800
    %v4844 = vunpack.c.l.b16 %v3801
    %v4845 = vunpack.c.l.b16 %v3802
    %v4846 = vunpack.c.h.b16 %v3802
    %v4847 = vunpack.c.l.b16 %v3803
    %v4848 = vunpack.c.h.b16 %v3803
    %v4849 = vunpack.c.l.b16 %v3804
    %v4850 = vunpack.c.h.b16 %v3804
    %v4851 = vunpack.c.l.b16 %v3805
    %v4852 = vunpack.c.l.b16 %v3806
    %v4853 = vunpack.c.h.b16 %v3806
    %v4854 = vunpack.c.l.b16 %v3807
    %v4855 = vunpack.c.h.b16 %v3807
    %v4856 = vunpack.c.l.b16 %v3808
    %v4857 = vunpack.c.h.b16 %v3808
    %v4858 = vunpack.c.l.b16 %v3809
    %v4859 = vunpack.c.l.b16 %v3810
    %v4860 = vunpack.c.h.b16 %v3810
    %v4861 = vunpack.c.l.b16 %v3811
    %v4862 = vunpack.c.h.b16 %v3811
    %v4863 = vunpack.c.l.b16 %v3812
    %v4864 = vunpack.c.h.b16 %v3812
    %v4865 = vunpack.c.l.b16 %v3813
    %v4866 = vunpack.c.l.b16 %v3814
    %v4867 = vunpack.c.h.b16 %v3814
    %v4868 = vunpack.c.l.b16 %v3815
    %v4869 = vunpack.c.h.b16 %v3815
    %v4870 = vunpack.c.l.b16 %v3816
    %v4871 = vunpack.c.h.b16 %v3816
    %v4872 = vunpack.c.l.b16 %v3817
    %v4873 = vunpack.c.l.b16 %v3818
    %v4874 = vunpack.c.h.b16 %v3818
    %v4875 = vunpack.c.l.b16 %v3819
    %v4876 = vunpack.c.h.b16 %v3819
    %v4877 = vunpack.c.l.b16 %v3820
    %v4878 = vunpack.c.h.b16 %v3820
    %v4879 = vunpack.c.l.b16 %v3821
    %v4880 = vunpack.c.l.b16 %v3822
    %v4881 = vunpack.c.h.b16 %v3822
    %v4882 = vunpack.c.l.b16 %v3823
    %v4883 = vunpack.c.h.b16 %v3823
    %v4884 = vunpack.c.l.b16 %v3824
    %v4885 = vunpack.c.h.b16 %v3824
    %v4886 = vunpack.c.l.b16 %v3825
    %v4887 = vunpack.c.l.b16 %v3826
    %v4888 = vunpack.c.h.b16 %v3826
    %v4889 = vunpack.c.l.b16 %v3827
    %v4890 = vunpack.c.h.b16 %v3827
    %v4891 = vunpack.c.l.b16 %v3828
    %v4892 = vunpack.c.h.b16 %v3828
    %v4893 = vunpack.c.l.b16 %v3829
    %v4894 = vunpack.c.l.b16 %v3830
    %v4895 = vunpack.c.h.b16 %v3830
    %v4896 = vunpack.c.l.b16 %v3831
    %v4897 = vunpack.c.h.b16 %v3831
    %v4898 = vunpack.c.l.b16 %v3832
    %v4899 = vunpack.c.h.b16 %v3832
    %v4900 = vunpack.c.l.b16 %v3833
    %v4901 = vunpack.c.l.b16 %v3834
    %v4902 = vunpack.c.h.b16 %v3834
    %v4903 = vunpack.c.l.b16 %v3835
    %v4904 = vunpack.c.h.b16 %v3835
    %v4905 = vunpack.c.l.b16 %v3836
    %v4906 = vunpack.c.h.b16 %v3836
    %v4907 = vunpack.c.l.b16 %v3837
    %v4908 = vunpack.c.l.b16 %v3838
    %v4909 = vunpack.c.h.b16 %v3838
    %v4910 = vunpack.c.l.b16 %v3839
    %v4911 = vunpack.c.h.b16 %v3839
    %v4912 = vunpack.c.l.b16 %v3840
    %v4913 = vunpack.c.h.b16 %v3840
    %v4914 = vunpack.c.l.b16 %v3841
    %v4915 = vunpack.c.l.b16 %v3842
    %v4916 = vunpack.c.h.b16 %v3842
    %v4917 = vunpack.c.l.b16 %v3843
    %v4918 = vunpack.c.h.b16 %v3843
    %v4919 = vunpack.c.l.b16 %v3844
    %v4920 = vunpack.c.h.b16 %v3844
    %v4921 = vunpack.c.l.b16 %v3845
    %v4922 = vunpack.c.l.b16 %v3846
    %v4923 = vunpack.c.h.b16 %v3846
    %v4924 = vunpack.c.l.b16 %v3847
    %v4925 = vunpack.c.h.b16 %v3847
    %v4926 = vunpack.c.l.b16 %v3848
    %v4927 = vunpack.c.h.b16 %v3848
    %v4928 = vunpack.c.l.b16 %v3849
    %v4929 = vunpack.c.l.b16 %v3850
    %v4930 = vunpack.c.h.b16 %v3850
    %v4931 = vunpack.c.l.b16 %v3851
    %v4932 = vunpack.c.h.b16 %v3851
    %v4933 = vunpack.c.l.b16 %v3852
    %v4934 = vunpack.c.h.b16 %v3852
    %v4935 = vunpack.c.l.b16 %v3853
    %v4936 = vunpack.c.l.b16 %v3854
    %v4937 = vunpack.c.h.b16 %v3854
    %v4938 = vunpack.c.l.b16 %v3855
    %v4939 = vunpack.c.h.b16 %v3855
    %v4940 = vunpack.c.l.b16 %v3856
    %v4941 = vunpack.c.h.b16 %v3856
    %v4942 = vunpack.c.l.b16 %v3857
    %v4943 = vunpack.c.l.b16 %v3858
    %v4944 = vunpack.c.h.b16 %v3858
    %v4945 = vunpack.c.l.b16 %v3859
    %v4946 = vunpack.c.h.b16 %v3859
    %v4947 = vunpack.c.l.b16 %v3860
    %v4948 = vunpack.c.h.b16 %v3860
    %v4949 = vunpack.c.l.b16 %v3861
    %v4950 = vunpack.c.l.b16 %v3862
    %v4951 = vunpack.c.h.b16 %v3862
    %v4952 = vunpack.c.l.b16 %v3863
    %v4953 = vunpack.c.h.b16 %v3863
    %v4954 = vunpack.c.l.b16 %v3864
    %v4955 = vunpack.c.h.b16 %v3864
    %v4956 = vunpack.c.l.b16 %v3865
    %v4957 = vunpack.c.l.b16 %v3866
    %v4958 = vunpack.c.h.b16 %v3866
    %v4959 = vunpack.c.l.b16 %v3867
    %v4960 = vunpack.c.h.b16 %v3867
    %v4961 = vunpack.c.l.b16 %v3868
    %v4962 = vunpack.c.h.b16 %v3868
    %v4963 = vunpack.c.l.b16 %v3869
    %v4964 = vunpack.c.l.b16 %v3870
    %v4965 = vunpack.c.h.b16 %v3870
    %v4966 = vunpack.c.l.b16 %v3871
    %v4967 = vunpack.c.h.b16 %v3871
    %v4968 = vunpack.c.l.b16 %v3872
    %v4969 = vunpack.c.h.b16 %v3872
    %v4970 = vunpack.c.l.b16 %v3873
    %v4971 = vunpack.c.l.b16 %v3874
    %v4972 = vunpack.c.h.b16 %v3874
    %v4973 = vunpack.c.l.b16 %v3875
    %v4974 = vunpack.c.h.b16 %v3875
    %v4975 = vunpack.c.l.b16 %v3876
    %v4976 = vunpack.c.h.b16 %v3876
    %v4977 = vunpack.c.l.b16 %v3877
    %v4978 = vunpack.c.l.b16 %v3878
    %v4979 = vunpack.c.h.b16 %v3878
    %v4980 = vunpack.c.l.b16 %v3879
    %v4981 = vunpack.c.h.b16 %v3879
    %v4982 = vunpack.c.l.b16 %v3880
    %v4983 = vunpack.c.h.b16 %v3880
    %v4984 = vunpack.c.l.b16 %v3881
    %v4985 = vunpack.c.l.b16 %v3882
    %v4986 = vunpack.c.h.b16 %v3882
    %v4987 = vunpack.c.l.b16 %v3883
    %v4988 = vunpack.c.h.b16 %v3883
    %v4989 = vunpack.c.l.b16 %v3884
    %v4990 = vunpack.c.h.b16 %v3884
    %v4991 = vunpack.c.l.b16 %v3885
    %v4992 = vunpack.c.l.b16 %v3886
    %v4993 = vunpack.c.h.b16 %v3886
    %v4994 = vunpack.c.l.b16 %v3887
    %v4995 = vunpack.c.h.b16 %v3887
    %v4996 = vunpack.c.l.b16 %v3888
    %v4997 = vunpack.c.h.b16 %v3888
    %v4998 = vunpack.c.l.b16 %v3889
    %v4999 = vunpack.c.l.b16 %v3890
    %v5000 = vunpack.c.h.b16 %v3890
    %v5001 = vunpack.c.l.b16 %v3891
    %v5002 = vunpack.c.h.b16 %v3891
    %v5003 = vunpack.c.l.b16 %v3892
    %v5004 = vunpack.c.h.b16 %v3892
    %v5005 = vunpack.c.l.b16 %v3893
    %v5006 = vunpack.c.l.b16 %v3894
    %v5007 = vunpack.c.h.b16 %v3894
    %v5008 = vunpack.c.l.b16 %v3895
    %v5009 = vunpack.c.h.b16 %v3895
    %v5010 = vunpack.c.l.b16 %v3896
    %v5011 = vunpack.c.h.b16 %v3896
    %v5012 = vunpack.c.l.b16 %v3897
    %v5013 = vpack.c.b16 %v4334, %v4327
    %v5014 = vpack.c.b16 %v4335, %v4328
    %v5015 = vpack.c.b16 %v4336, %v4329
    %v5016 = vpack.c.b16 %v4337, %v4330
    %v5017 = vpack.c.b16 %v4338, %v4331
    %v5018 = vpack.c.b16 %v4339, %v4332
    %v5019 = vpack.c.b16 %v4340, %v4333
    %v5020 = vpack.c.b16 %v4348, %v4341
    %v5021 = vpack.c.b16 %v4349, %v4342
    %v5022 = vpack.c.b16 %v4350, %v4343
    %v5023 = vpack.c.b16 %v4351, %v4344
    %v5024 = vpack.c.b16 %v4352, %v4345
    %v5025 = vpack.c.b16 %v4353, %v4346
    %v5026 = vpack.c.b16 %v4354, %v4347
    %v5027 = vpack.c.b16 %v4362, %v4355
    %v5028 = vpack.c.b16 %v4363, %v4356
    %v5029 = vpack.c.b16 %v4364, %v4357
    %v5030 = vpack.c.b16 %v4365, %v4358
    %v5031 = vpack.c.b16 %v4366, %v4359
    %v5032 = vpack.c.b16 %v4367, %v4360
    %v5033 = vpack.c.b16 %v4368, %v4361
    %v5034 = vpack.c.b16 %v4376, %v4369
    %v5035 = vpack.c.b16 %v4377, %v4370
    %v5036 = vpack.c.b16 %v4378, %v4371
    %v5037 = vpack.c.b16 %v4379, %v4372
    %v5038 = vpack.c.b16 %v4380, %v4373
    %v5039 = vpack.c.b16 %v4381, %v4374
    %v5040 = vpack.c.b16 %v4382, %v4375
    %v5041 = vpack.c.b16 %v4390, %v4383
    %v5042 = vpack.c.b16 %v4391, %v4384
    %v5043 = vpack.c.b16 %v4392, %v4385
    %v5044 = vpack.c.b16 %v4393, %v4386
    %v5045 = vpack.c.b16 %v4394, %v4387
    %v5046 = vpack.c.b16 %v4395, %v4388
    %v5047 = vpack.c.b16 %v4396, %v4389
    %v5048 = vpack.c.b16 %v4404, %v4397
    %v5049 = vpack.c.b16 %v4405, %v4398
    %v5050 = vpack.c.b16 %v4406, %v4399
    %v5051 = vpack.c.b16 %v4407, %v4400
    %v5052 = vpack.c.b16 %v4408, %v4401
    %v5053 = vpack.c.b16 %v4409, %v4402
    %v5054 = vpack.c.b16 %v4410, %v4403
    %v5055 = vpack.c.b16 %v4418, %v4411
    %v5056 = vpack.c.b16 %v4419, %v4412
    %v5057 = vpack.c.b16 %v4420, %v4413
    %v5058 = vpack.c.b16 %v4421, %v4414
    %v5059 = vpack.c.b16 %v4422, %v4415
    %v5060 = vpack.c.b16 %v4423, %v4416
    %v5061 = vpack.c.b16 %v4424, %v4417
    %v5062 = vpack.c.b16 %v4432, %v4425
    %v5063 = vpack.c.b16 %v4433, %v4426
    %v5064 = vpack.c.b16 %v4434, %v4427
    %v5065 = vpack.c.b16 %v4435, %v4428
    %v5066 = vpack.c.b16 %v4436, %v4429
    %v5067 = vpack.c.b16 %v4437, %v4430
    %v5068 = vpack.c.b16 %v4438, %v4431
    %v5069 = vpack.c.b16 %v4446, %v4439
    %v5070 = vpack.c.b16 %v4447, %v4440
    %v5071 = vpack.c.b16 %v4448, %v4441
    %v5072 = vpack.c.b16 %v4449, %v4442
    %v5073 = vpack.c.b16 %v4450, %v4443
    %v5074 = vpack.c.b16 %v4451, %v4444
    %v5075 = vpack.c.b16 %v4452, %v4445
    %v5076 = vpack.c.b16 %v4460, %v4453
    %v5077 = vpack.c.b16 %v4461, %v4454
    %v5078 = vpack.c.b16 %v4462, %v4455
    %v5079 = vpack.c.b16 %v4463, %v4456
    %v5080 = vpack.c.b16 %v4464, %v4457
    %v5081 = vpack.c.b16 %v4465, %v4458
    %v5082 = vpack.c.b16 %v4466, %v4459
    %v5083 = vpack.c.b16 %v4474, %v4467
    %v5084 = vpack.c.b16 %v4475, %v4468
    %v5085 = vpack.c.b16 %v4476, %v4469
    %v5086 = vpack.c.b16 %v4477, %v4470
    %v5087 = vpack.c.b16 %v4478, %v4471
    %v5088 = vpack.c.b16 %v4479, %v4472
    %v5089 = vpack.c.b16 %v4480, %v4473
    %v5090 = vpack.c.b16 %v4488, %v4481
    %v5091 = vpack.c.b16 %v4489, %v4482
    %v5092 = vpack.c.b16 %v4490, %v4483
    %v5093 = vpack.c.b16 %v4491, %v4484
    %v5094 = vpack.c.b16 %v4492, %v4485
    %v5095 = vpack.c.b16 %v4493, %v4486
    %v5096 = vpack.c.b16 %v4494, %v4487
    %v5097 = vpack.c.b16 %v4502, %v4495
    %v5098 = vpack.c.b16 %v4503, %v4496
    %v5099 = vpack.c.b16 %v4504, %v4497
    %v5100 = vpack.c.b16 %v4505, %v4498
    %v5101 = vpack.c.b16 %v4506, %v4499
    %v5102 = vpack.c.b16 %v4507, %v4500
    %v5103 = vpack.c.b16 %v4508, %v4501
    %v5104 = vpack.c.b16 %v4516, %v4509
    %v5105 = vpack.c.b16 %v4517, %v4510
    %v5106 = vpack.c.b16 %v4518, %v4511
    %v5107 = vpack.c.b16 %v4519, %v4512
    %v5108 = vpack.c.b16 %v4520, %v4513
    %v5109 = vpack.c.b16 %v4521, %v4514
    %v5110 = vpack.c.b16 %v4522, %v4515
    %v5111 = vpack.c.b16 %v4530, %v4523
    %v5112 = vpack.c.b16 %v4531, %v4524
    %v5113 = vpack.c.b16 %v4532, %v4525
    %v5114 = vpack.c.b16 %v4533, %v4526
    %v5115 = vpack.c.b16 %v4534, %v4527
    %v5116 = vpack.c.b16 %v4535, %v4528
    %v5117 = vpack.c.b16 %v4536, %v4529
    %v5118 = vpack.c.b16 %v4544, %v4537
    %v5119 = vpack.c.b16 %v4545, %v4538
    %v5120 = vpack.c.b16 %v4546, %v4539
    %v5121 = vpack.c.b16 %v4547, %v4540
    %v5122 = vpack.c.b16 %v4548, %v4541
    %v5123 = vpack.c.b16 %v4549, %v4542
    %v5124 = vpack.c.b16 %v4550, %v4543
    %v5125 = vpack.c.b16 %v4558, %v4551
    %v5126 = vpack.c.b16 %v4559, %v4552
    %v5127 = vpack.c.b16 %v4560, %v4553
    %v5128 = vpack.c.b16 %v4561, %v4554
    %v5129 = vpack.c.b16 %v4562, %v4555
    %v5130 = vpack.c.b16 %v4563, %v4556
    %v5131 = vpack.c.b16 %v4564, %v4557
    %v5132 = vpack.c.b16 %v4572, %v4565
    %v5133 = vpack.c.b16 %v4573, %v4566
    %v5134 = vpack.c.b16 %v4574, %v4567
    %v5135 = vpack.c.b16 %v4575, %v4568
    %v5136 = vpack.c.b16 %v4576, %v4569
    %v5137 = vpack.c.b16 %v4577, %v4570
    %v5138 = vpack.c.b16 %v4578, %v4571
    %v5139 = vpack.c.b16 %v4586, %v4579
    %v5140 = vpack.c.b16 %v4587, %v4580
    %v5141 = vpack.c.b16 %v4588, %v4581
    %v5142 = vpack.c.b16 %v4589, %v4582
    %v5143 = vpack.c.b16 %v4590, %v4583
    %v5144 = vpack.c.b16 %v4591, %v4584
    %v5145 = vpack.c.b16 %v4592, %v4585
    %v5146 = vpack.c.b16 %v4600, %v4593
    %v5147 = vpack.c.b16 %v4601, %v4594
    %v5148 = vpack.c.b16 %v4602, %v4595
    %v5149 = vpack.c.b16 %v4603, %v4596
    %v5150 = vpack.c.b16 %v4604, %v4597
    %v5151 = vpack.c.b16 %v4605, %v4598
    %v5152 = vpack.c.b16 %v4606, %v4599
    %v5153 = vpack.c.b16 %v4614, %v4607
    %v5154 = vpack.c.b16 %v4615, %v4608
    %v5155 = vpack.c.b16 %v4616, %v4609
    %v5156 = vpack.c.b16 %v4617, %v4610
    %v5157 = vpack.c.b16 %v4618, %v4611
    %v5158 = vpack.c.b16 %v4619, %v4612
    %v5159 = vpack.c.b16 %v4620, %v4613
    %v5160 = vpack.c.b16 %v4628, %v4621
    %v5161 = vpack.c.b16 %v4629, %v4622
    %v5162 = vpack.c.b16 %v4630, %v4623
    %v5163 = vpack.c.b16 %v4631, %v4624
    %v5164 = vpack.c.b16 %v4632, %v4625
    %v5165 = vpack.c.b16 %v4633, %v4626
    %v5166 = vpack.c.b16 %v4634, %v4627
    %v5167 = vpack.c.b16 %v4642, %v4635
    %v5168 = vpack.c.b16 %v4643, %v4636
    %v5169 = vpack.c.b16 %v4644, %v4637
    %v5170 = vpack.c.b16 %v4645, %v4638
    %v5171 = vpack.c.b16 %v4646, %v4639
    %v5172 = vpack.c.b16 %v4647, %v4640
    %v5173 = vpack.c.b16 %v4648, %v4641
    %v5174 = vpack.c.b16 %v4656, %v4649
    %v5175 = vpack.c.b16 %v4657, %v4650
    %v5176 = vpack.c.b16 %v4658, %v4651
    %v5177 = vpack.c.b16 %v4659, %v4652
    %v5178 = vpack.c.b16 %v4660, %v4653
    %v5179 = vpack.c.b16 %v4661, %v4654
    %v5180 = vpack.c.b16 %v4662, %v4655
    %v5181 = vpack.c.b16 %v4670, %v4663
    %v5182 = vpack.c.b16 %v4671, %v4664
    %v5183 = vpack.c.b16 %v4672, %v4665
    %v5184 = vpack.c.b16 %v4673, %v4666
    %v5185 = vpack.c.b16 %v4674, %v4667
    %v5186 = vpack.c.b16 %v4675, %v4668
    %v5187 = vpack.c.b16 %v4676, %v4669
    %v5188 = vpack.c.b16 %v4684, %v4677
    %v5189 = vpack.c.b16 %v4685, %v4678
    %v5190 = vpack.c.b16 %v4686, %v4679
    %v5191 = vpack.c.b16 %v4687, %v4680
    %v5192 = vpack.c.b16 %v4688, %v4681
    %v5193 = vpack.c.b16 %v4689, %v4682
    %v5194 = vpack.c.b16 %v4690, %v4683
    %v5195 = vpack.c.b16 %v4698, %v4691
    %v5196 = vpack.c.b16 %v4699, %v4692
    %v5197 = vpack.c.b16 %v4700, %v4693
    %v5198 = vpack.c.b16 %v4701, %v4694
    %v5199 = vpack.c.b16 %v4702, %v4695
    %v5200 = vpack.c.b16 %v4703, %v4696
    %v5201 = vpack.c.b16 %v4704, %v4697
    %v5202 = vpack.c.b16 %v4712, %v4705
    %v5203 = vpack.c.b16 %v4713, %v4706
    %v5204 = vpack.c.b16 %v4714, %v4707
    %v5205 = vpack.c.b16 %v4715, %v4708
    %v5206 = vpack.c.b16 %v4716, %v4709
    %v5207 = vpack.c.b16 %v4717, %v4710
    %v5208 = vpack.c.b16 %v4718, %v4711
    %v5209 = vpack.c.b16 %v4726, %v4719
    %v5210 = vpack.c.b16 %v4727, %v4720
    %v5211 = vpack.c.b16 %v4728, %v4721
    %v5212 = vpack.c.b16 %v4729, %v4722
    %v5213 = vpack.c.b16 %v4730, %v4723
    %v5214 = vpack.c.b16 %v4731, %v4724
    %v5215 = vpack.c.b16 %v4732, %v4725
    %v5216 = vpack.c.b16 %v4740, %v4733
    %v5217 = vpack.c.b16 %v4741, %v4734
    %v5218 = vpack.c.b16 %v4742, %v4735
    %v5219 = vpack.c.b16 %v4743, %v4736
    %v5220 = vpack.c.b16 %v4744, %v4737
    %v5221 = vpack.c.b16 %v4745, %v4738
    %v5222 = vpack.c.b16 %v4746, %v4739
    %v5223 = vpack.c.b16 %v4754, %v4747
    %v5224 = vpack.c.b16 %v4755, %v4748
    %v5225 = vpack.c.b16 %v4756, %v4749
    %v5226 = vpack.c.b16 %v4757, %v4750
    %v5227 = vpack.c.b16 %v4758, %v4751
    %v5228 = vpack.c.b16 %v4759, %v4752
    %v5229 = vpack.c.b16 %v4760, %v4753
    %v5230 = vpack.c.b16 %v4768, %v4761
    %v5231 = vpack.c.b16 %v4769, %v4762
    %v5232 = vpack.c.b16 %v4770, %v4763
    %v5233 = vpack.c.b16 %v4771, %v4764
    %v5234 = vpack.c.b16 %v4772, %v4765
    %v5235 = vpack.c.b16 %v4773, %v4766
    %v5236 = vpack.c.b16 %v4774, %v4767
    %v5237 = vpack.c.b16 %v4782, %v4775
    %v5238 = vpack.c.b16 %v4783, %v4776
    %v5239 = vpack.c.b16 %v4784, %v4777
    %v5240 = vpack.c.b16 %v4785, %v4778
    %v5241 = vpack.c.b16 %v4786, %v4779
    %v5242 = vpack.c.b16 %v4787, %v4780
    %v5243 = vpack.c.b16 %v4788, %v4781
    %v5244 = vpack.c.b16 %v4796, %v4789
    %v5245 = vpack.c.b16 %v4797, %v4790
    %v5246 = vpack.c.b16 %v4798, %v4791
    %v5247 = vpack.c.b16 %v4799, %v4792
    %v5248 = vpack.c.b16 %v4800, %v4793
    %v5249 = vpack.c.b16 %v4801, %v4794
    %v5250 = vpack.c.b16 %v4802, %v4795
    %v5251 = vpack.c.b16 %v4810, %v4803
    %v5252 = vpack.c.b16 %v4811, %v4804
    %v5253 = vpack.c.b16 %v4812, %v4805
    %v5254 = vpack.c.b16 %v4813, %v4806
    %v5255 = vpack.c.b16 %v4814, %v4807
    %v5256 = vpack.c.b16 %v4815, %v4808
    %v5257 = vpack.c.b16 %v4816, %v4809
    %v5258 = vpack.c.b16 %v4824, %v4817
    %v5259 = vpack.c.b16 %v4825, %v4818
    %v5260 = vpack.c.b16 %v4826, %v4819
    %v5261 = vpack.c.b16 %v4827, %v4820
    %v5262 = vpack.c.b16 %v4828, %v4821
    %v5263 = vpack.c.b16 %v4829, %v4822
    %v5264 = vpack.c.b16 %v4830, %v4823
    %v5265 = vpack.c.b16 %v4838, %v4831
    %v5266 = vpack.c.b16 %v4839, %v4832
    %v5267 = vpack.c.b16 %v4840, %v4833
    %v5268 = vpack.c.b16 %v4841, %v4834
    %v5269 = vpack.c.b16 %v4842, %v4835
    %v5270 = vpack.c.b16 %v4843, %v4836
    %v5271 = vpack.c.b16 %v4844, %v4837
    %v5272 = vpack.c.b16 %v4852, %v4845
    %v5273 = vpack.c.b16 %v4853, %v4846
    %v5274 = vpack.c.b16 %v4854, %v4847
    %v5275 = vpack.c.b16 %v4855, %v4848
    %v5276 = vpack.c.b16 %v4856, %v4849
    %v5277 = vpack.c.b16 %v4857, %v4850
    %v5278 = vpack.c.b16 %v4858, %v4851
    %v5279 = vpack.c.b16 %v4866, %v4859
    %v5280 = vpack.c.b16 %v4867, %v4860
    %v5281 = vpack.c.b16 %v4868, %v4861
    %v5282 = vpack.c.b16 %v4869, %v4862
    %v5283 = vpack.c.b16 %v4870, %v4863
    %v5284 = vpack.c.b16 %v4871, %v4864
    %v5285 = vpack.c.b16 %v4872, %v4865
    %v5286 = vpack.c.b16 %v4880, %v4873
    %v5287 = vpack.c.b16 %v4881, %v4874
    %v5288 = vpack.c.b16 %v4882, %v4875
    %v5289 = vpack.c.b16 %v4883, %v4876
    %v5290 = vpack.c.b16 %v4884, %v4877
    %v5291 = vpack.c.b16 %v4885, %v4878
    %v5292 = vpack.c.b16 %v4886, %v4879
    %v5293 = vpack.c.b16 %v4894, %v4887
    %v5294 = vpack.c.b16 %v4895, %v4888
    %v5295 = vpack.c.b16 %v4896, %v4889
    %v5296 = vpack.c.b16 %v4897, %v4890
    %v5297 = vpack.c.b16 %v4898, %v4891
    %v5298 = vpack.c.b16 %v4899, %v4892
    %v5299 = vpack.c.b16 %v4900, %v4893
    %v5300 = vpack.c.b16 %v4908, %v4901
    %v5301 = vpack.c.b16 %v4909, %v4902
    %v5302 = vpack.c.b16 %v4910, %v4903
    %v5303 = vpack.c.b16 %v4911, %v4904
    %v5304 = vpack.c.b16 %v4912, %v4905
    %v5305 = vpack.c.b16 %v4913, %v4906
    %v5306 = vpack.c.b16 %v4914, %v4907
    %v5307 = vpack.c.b16 %v4922, %v4915
    %v5308 = vpack.c.b16 %v4923, %v4916
    %v5309 = vpack.c.b16 %v4924, %v4917
    %v5310 = vpack.c.b16 %v4925, %v4918
    %v5311 = vpack.c.b16 %v4926, %v4919
    %v5312 = vpack.c.b16 %v4927, %v4920
    %v5313 = vpack.c.b16 %v4928, %v4921
    %v5314 = vpack.c.b16 %v4936, %v4929
    %v5315 = vpack.c.b16 %v4937, %v4930
    %v5316 = vpack.c.b16 %v4938, %v4931
    %v5317 = vpack.c.b16 %v4939, %v4932
    %v5318 = vpack.c.b16 %v4940, %v4933
    %v5319 = vpack.c.b16 %v4941, %v4934
    %v5320 = vpack.c.b16 %v4942, %v4935
    %v5321 = vpack.c.b16 %v4950, %v4943
    %v5322 = vpack.c.b16 %v4951, %v4944
    %v5323 = vpack.c.b16 %v4952, %v4945
    %v5324 = vpack.c.b16 %v4953, %v4946
    %v5325 = vpack.c.b16 %v4954, %v4947
    %v5326 = vpack.c.b16 %v4955, %v4948
    %v5327 = vpack.c.b16 %v4956, %v4949
    %v5328 = vpack.c.b16 %v4964, %v4957
    %v5329 = vpack.c.b16 %v4965, %v4958
    %v5330 = vpack.c.b16 %v4966, %v4959
    %v5331 = vpack.c.b16 %v4967, %v4960
    %v5332 = vpack.c.b16 %v4968, %v4961
    %v5333 = vpack.c.b16 %v4969, %v4962
    %v5334 = vpack.c.b16 %v4970, %v4963
    %v5335 = vpack.c.b16 %v4978, %v4971
    %v5336 = vpack.c.b16 %v4979, %v4972
    %v5337 = vpack.c.b16 %v4980, %v4973
    %v5338 = vpack.c.b16 %v4981, %v4974
    %v5339 = vpack.c.b16 %v4982, %v4975
    %v5340 = vpack.c.b16 %v4983, %v4976
    %v5341 = vpack.c.b16 %v4984, %v4977
    %v5342 = vpack.c.b16 %v4992, %v4985
    %v5343 = vpack.c.b16 %v4993, %v4986
    %v5344 = vpack.c.b16 %v4994, %v4987
    %v5345 = vpack.c.b16 %v4995, %v4988
    %v5346 = vpack.c.b16 %v4996, %v4989
    %v5347 = vpack.c.b16 %v4997, %v4990
    %v5348 = vpack.c.b16 %v4998, %v4991
    %v5349 = vpack.c.b16 %v5006, %v4999
    %v5350 = vpack.c.b16 %v5007, %v5000
    %v5351 = vpack.c.b16 %v5008, %v5001
    %v5352 = vpack.c.b16 %v5009, %v5002
    %v5353 = vpack.c.b16 %v5010, %v5003
    %v5354 = vpack.c.b16 %v5011, %v5004
    %v5355 = vpack.c.b16 %v5012, %v5005
    %v5700 = vsel %vm2836, %v3505, 0
    %5702 = vmatprep.subr.bf16.mxu0 %v5014
    %5703 = vmatpush1.bf16.msra.mxu0 %v5013
    %5704 = vmatprep.subr.bf16.mxu0 %v5021
    %5705 = vmatpush1.bf16.msra.mxu0 %v5020
    %5706 = vmatprep.subr.bf16.mxu0 %v5028
    %5707 = vmatpush1.bf16.msra.mxu0 %v5027
    %5708 = vmatprep.subr.bf16.mxu0 %v5035
    %5709 = vmatpush1.bf16.msra.mxu0 %v5034
    %5710 = vmatprep.subr.bf16.mxu0 %v5042
    %5711 = vmatpush1.bf16.msra.mxu0 %v5041
    %5712 = vmatprep.subr.bf16.mxu0 %v5049
    %5713 = vmatpush1.bf16.msra.mxu0 %v5048
    %5714 = vmatprep.subr.bf16.mxu0 %v5056
    %5715 = vmatpush1.bf16.msra.mxu0 %v5055
    %5716 = vmatprep.subr.bf16.mxu0 %v5063
    %5717 = vmatpush1.bf16.msra.mxu0 %v5062
    %5718 = vmatprep.subr.bf16.mxu0 %v5070
    %5719 = vmatpush1.bf16.msra.mxu0 %v5069
    %5720 = vmatprep.subr.bf16.mxu0 %v5077
    %5721 = vmatpush1.bf16.msra.mxu0 %v5076
    %5722 = vmatprep.subr.bf16.mxu0 %v5084
    %5723 = vmatpush1.bf16.msra.mxu0 %v5083
    %5724 = vmatprep.subr.bf16.mxu0 %v5091
    %5725 = vmatpush1.bf16.msra.mxu0 %v5090
    %5726 = vmatprep.subr.bf16.mxu0 %v5098
    %5727 = vmatpush1.bf16.msra.mxu0 %v5097
    %5728 = vmatprep.subr.bf16.mxu0 %v5105
    %5729 = vmatpush1.bf16.msra.mxu0 %v5104
    %5730 = vmatprep.subr.bf16.mxu0 %v5112
    %5731 = vmatpush1.bf16.msra.mxu0 %v5111
    %5732 = vmatprep.subr.bf16.mxu0 %v5119
    %5733 = vmatpush1.bf16.msra.mxu0 %v5118
    %5734 = vmatprep.mubr.bf16.mxu0 %v3500
    %5735 = vmatmul.mubr.bf16.gmra.mrb[0].mxu0 %v3499
    %v5736 = vpop.f32.mrb[0].mxu0
    %v5737 = vadd.f32 %v3903, %v5736
    %v5738 = vpop.f32.mrb[0].mxu0
    %v5739 = vadd.f32 %v3907, %v5738
    %v5740 = vpop.f32.mrb[0].mxu0
    %v5741 = vpop.f32.mrb[0].mxu0
    %5742 = vdwg.mxu0
    %5743 = vmatprep.subr.bf16.mxu0 %v5126
    %5744 = vmatpush1.bf16.msra.mxu0 %v5125
    %5745 = vmatprep.subr.bf16.mxu0 %v5133
    %5746 = vmatpush1.bf16.msra.mxu0 %v5132
    %5747 = vmatprep.subr.bf16.mxu0 %v5140
    %5748 = vmatpush1.bf16.msra.mxu0 %v5139
    %5749 = vmatprep.subr.bf16.mxu0 %v5147
    %5750 = vmatpush1.bf16.msra.mxu0 %v5146
    %5751 = vmatprep.subr.bf16.mxu0 %v5154
    %5752 = vmatpush1.bf16.msra.mxu0 %v5153
    %5753 = vmatprep.subr.bf16.mxu0 %v5161
    %5754 = vmatpush1.bf16.msra.mxu0 %v5160
    %5755 = vmatprep.subr.bf16.mxu0 %v5168
    %5756 = vmatpush1.bf16.msra.mxu0 %v5167
    %5757 = vmatprep.subr.bf16.mxu0 %v5175
    %5758 = vmatpush1.bf16.msra.mxu0 %v5174
    %5759 = vmatprep.subr.bf16.mxu0 %v5182
    %5760 = vmatpush1.bf16.msra.mxu0 %v5181
    %5761 = vmatprep.subr.bf16.mxu0 %v5189
    %5762 = vmatpush1.bf16.msra.mxu0 %v5188
    %5763 = vmatprep.subr.bf16.mxu0 %v5196
    %5764 = vmatpush1.bf16.msra.mxu0 %v5195
    %5765 = vmatprep.subr.bf16.mxu0 %v5203
    %5766 = vmatpush1.bf16.msra.mxu0 %v5202
    %5767 = vmatprep.subr.bf16.mxu0 %v5210
    %5768 = vmatpush1.bf16.msra.mxu0 %v5209
    %5769 = vmatprep.subr.bf16.mxu0 %v5217
    %5770 = vmatpush1.bf16.msra.mxu0 %v5216
    %5771 = vmatprep.subr.bf16.mxu0 %v5224
    %5772 = vmatpush1.bf16.msra.mxu0 %v5223
    %5773 = vmatprep.subr.bf16.mxu0 %v5231
    %5774 = vmatpush1.bf16.msra.mxu0 %v5230
    %5775 = vmatprep.mubr.bf16.mxu0 %v3502
    %5776 = vmatmul.mubr.bf16.gmra.mrb[0].mxu0 %v3501
    %v5777 = vpop.f32.mrb[0].mxu0
    %v5778 = vadd.f32 %v5737, %v5777
    %v5779 = vpop.f32.mrb[0].mxu0
    %v5780 = vadd.f32 %v5739, %v5779
    %v5781 = vpop.f32.mrb[0].mxu0
    %v5782 = vpop.f32.mrb[0].mxu0
    %5783 = vdwg.mxu0
    %5784 = vmatprep.subr.bf16.mxu0 %v5238
    %5785 = vmatpush1.bf16.msra.mxu0 %v5237
    %5786 = vmatprep.subr.bf16.mxu0 %v5245
    %5787 = vmatpush1.bf16.msra.mxu0 %v5244
    %5788 = vmatprep.subr.bf16.mxu0 %v5252
    %5789 = vmatpush1.bf16.msra.mxu0 %v5251
    %5790 = vmatprep.subr.bf16.mxu0 %v5259
    %5791 = vmatpush1.bf16.msra.mxu0 %v5258
    %5792 = vmatprep.subr.bf16.mxu0 %v5266
    %5793 = vmatpush1.bf16.msra.mxu0 %v5265
    %5794 = vmatprep.subr.bf16.mxu0 %v5273
    %5795 = vmatpush1.bf16.msra.mxu0 %v5272
    %5796 = vmatprep.subr.bf16.mxu0 %v5280
    %5797 = vmatpush1.bf16.msra.mxu0 %v5279
    %5798 = vmatprep.subr.bf16.mxu0 %v5287
    %5799 = vmatpush1.bf16.msra.mxu0 %v5286
    %5800 = vmatprep.subr.bf16.mxu0 %v5294
    %5801 = vmatpush1.bf16.msra.mxu0 %v5293
    %5802 = vmatprep.subr.bf16.mxu0 %v5301
    %5803 = vmatpush1.bf16.msra.mxu0 %v5300
    %5804 = vmatprep.subr.bf16.mxu0 %v5308
    %5805 = vmatpush1.bf16.msra.mxu0 %v5307
    %5806 = vmatprep.subr.bf16.mxu0 %v5315
    %5807 = vmatpush1.bf16.msra.mxu0 %v5314
    %5808 = vmatprep.subr.bf16.mxu0 %v5322
    %5809 = vmatpush1.bf16.msra.mxu0 %v5321
    %5810 = vmatprep.subr.bf16.mxu0 %v5329
    %5811 = vmatpush1.bf16.msra.mxu0 %v5328
    %5812 = vmatprep.subr.bf16.mxu0 %v5336
    %5813 = vmatpush1.bf16.msra.mxu0 %v5335
    %5814 = vmatprep.subr.bf16.mxu0 %v5343
    %5815 = vmatpush1.bf16.msra.mxu0 %v5342
    %5816 = vmatprep.mubr.bf16.mxu0 %v3504
    %5817 = vmatmul.mubr.bf16.gmra.mrb[0].mxu0 %v3503
    %v5818 = vpop.f32.mrb[0].mxu0
    %v5819 = vadd.f32 %v5778, %v5818
    %v5820 = vpop.f32.mrb[0].mxu0
    %v5821 = vadd.f32 %v5780, %v5820
    %v5822 = vpop.f32.mrb[0].mxu0
    %v5823 = vpop.f32.mrb[0].mxu0
    %5824 = vdwg.mxu0
    %5825 = vmatprep.subr.bf16.mxu0 %v5350
    %5826 = vmatpush1.bf16.msra.mxu0 %v5349
    %5827 = vmatprep.subr.bf16.mxu0 0
    %5828 = vmatpush1.bf16.msra.mxu0 0
    %5829 = vmatprep.subr.bf16.mxu0 0
    %5830 = vmatpush1.bf16.msra.mxu0 0
    %5831 = vmatprep.subr.bf16.mxu0 0
    %5832 = vmatpush1.bf16.msra.mxu0 0
    %5833 = vmatprep.subr.bf16.mxu0 0
    %5834 = vmatpush1.bf16.msra.mxu0 0
    %5835 = vmatprep.subr.bf16.mxu0 0
    %5836 = vmatpush1.bf16.msra.mxu0 0
    %5837 = vmatprep.subr.bf16.mxu0 0
    %5838 = vmatpush1.bf16.msra.mxu0 0
    %5839 = vmatprep.subr.bf16.mxu0 0
    %5840 = vmatpush1.bf16.msra.mxu0 0
    %5841 = vmatprep.subr.bf16.mxu0 0
    %5842 = vmatpush1.bf16.msra.mxu0 0
    %5843 = vmatprep.subr.bf16.mxu0 0
    %5844 = vmatpush1.bf16.msra.mxu0 0
    %5845 = vmatprep.subr.bf16.mxu0 0
    %5846 = vmatpush1.bf16.msra.mxu0 0
    %5847 = vmatprep.subr.bf16.mxu0 0
    %5848 = vmatpush1.bf16.msra.mxu0 0
    %5849 = vmatprep.subr.bf16.mxu0 0
    %5850 = vmatpush1.bf16.msra.mxu0 0
    %5851 = vmatprep.subr.bf16.mxu0 0
    %5852 = vmatpush1.bf16.msra.mxu0 0
    %5853 = vmatprep.subr.bf16.mxu0 0
    %5854 = vmatpush1.bf16.msra.mxu0 0
    %5855 = vmatprep.subr.bf16.mxu0 0
    %5856 = vmatpush1.bf16.msra.mxu0 0
    %5857 = vmatprep.mubr.bf16.mxu0 0
    %5858 = vmatmul.mubr.bf16.gmra.mrb[0].mxu0 %v5700
    %v5859 = vpop.f32.mrb[0].mxu0
    %v5860 = vadd.f32 %v5819, %v5859
    %v5861 = vpop.f32.mrb[0].mxu0
    %v5862 = vadd.f32 %v5821, %v5861
    %v5863 = vpop.f32.mrb[0].mxu0
    %v5864 = vpop.f32.mrb[0].mxu0
    %5865 = vdwg.mxu0
    %5866 = vmatprep.subr.bf16.mxu0 %v5016
    %5867 = vmatpush1.bf16.msra.mxu0 %v5015
    %5868 = vmatprep.subr.bf16.mxu0 %v5023
    %5869 = vmatpush1.bf16.msra.mxu0 %v5022
    %5870 = vmatprep.subr.bf16.mxu0 %v5030
    %5871 = vmatpush1.bf16.msra.mxu0 %v5029
    %5872 = vmatprep.subr.bf16.mxu0 %v5037
    %5873 = vmatpush1.bf16.msra.mxu0 %v5036
    %5874 = vmatprep.subr.bf16.mxu0 %v5044
    %5875 = vmatpush1.bf16.msra.mxu0 %v5043
    %5876 = vmatprep.subr.bf16.mxu0 %v5051
    %5877 = vmatpush1.bf16.msra.mxu0 %v5050
    %5878 = vmatprep.subr.bf16.mxu0 %v5058
    %5879 = vmatpush1.bf16.msra.mxu0 %v5057
    %5880 = vmatprep.subr.bf16.mxu0 %v5065
    %5881 = vmatpush1.bf16.msra.mxu0 %v5064
    %5882 = vmatprep.subr.bf16.mxu0 %v5072
    %5883 = vmatpush1.bf16.msra.mxu0 %v5071
    %5884 = vmatprep.subr.bf16.mxu0 %v5079
    %5885 = vmatpush1.bf16.msra.mxu0 %v5078
    %5886 = vmatprep.subr.bf16.mxu0 %v5086
    %5887 = vmatpush1.bf16.msra.mxu0 %v5085
    %5888 = vmatprep.subr.bf16.mxu0 %v5093
    %5889 = vmatpush1.bf16.msra.mxu0 %v5092
    %5890 = vmatprep.subr.bf16.mxu0 %v5100
    %5891 = vmatpush1.bf16.msra.mxu0 %v5099
    %5892 = vmatprep.subr.bf16.mxu0 %v5107
    %5893 = vmatpush1.bf16.msra.mxu0 %v5106
    %5894 = vmatprep.subr.bf16.mxu0 %v5114
    %5895 = vmatpush1.bf16.msra.mxu0 %v5113
    %5896 = vmatprep.subr.bf16.mxu0 %v5121
    %5897 = vmatpush1.bf16.msra.mxu0 %v5120
    %5898 = vmatprep.mubr.bf16.mxu0 %v3500
    %5899 = vmatmul.mubr.bf16.gmra.mrb[0].mxu0 %v3499
    %v5900 = vpop.f32.mrb[0].mxu0
    %v5901 = vadd.f32 %v3911, %v5900
    %v5902 = vpop.f32.mrb[0].mxu0
    %v5903 = vadd.f32 %v3915, %v5902
    %v5904 = vpop.f32.mrb[0].mxu0
    %v5905 = vpop.f32.mrb[0].mxu0
    %5906 = vdwg.mxu0
    %5907 = vmatprep.subr.bf16.mxu0 %v5128
    %5908 = vmatpush1.bf16.msra.mxu0 %v5127
    %5909 = vmatprep.subr.bf16.mxu0 %v5135
    %5910 = vmatpush1.bf16.msra.mxu0 %v5134
    %5911 = vmatprep.subr.bf16.mxu0 %v5142
    %5912 = vmatpush1.bf16.msra.mxu0 %v5141
    %5913 = vmatprep.subr.bf16.mxu0 %v5149
    %5914 = vmatpush1.bf16.msra.mxu0 %v5148
    %5915 = vmatprep.subr.bf16.mxu0 %v5156
    %5916 = vmatpush1.bf16.msra.mxu0 %v5155
    %5917 = vmatprep.subr.bf16.mxu0 %v5163
    %5918 = vmatpush1.bf16.msra.mxu0 %v5162
    %5919 = vmatprep.subr.bf16.mxu0 %v5170
    %5920 = vmatpush1.bf16.msra.mxu0 %v5169
    %5921 = vmatprep.subr.bf16.mxu0 %v5177
    %5922 = vmatpush1.bf16.msra.mxu0 %v5176
    %5923 = vmatprep.subr.bf16.mxu0 %v5184
    %5924 = vmatpush1.bf16.msra.mxu0 %v5183
    %5925 = vmatprep.subr.bf16.mxu0 %v5191
    %5926 = vmatpush1.bf16.msra.mxu0 %v5190
    %5927 = vmatprep.subr.bf16.mxu0 %v5198
    %5928 = vmatpush1.bf16.msra.mxu0 %v5197
    %5929 = vmatprep.subr.bf16.mxu0 %v5205
    %5930 = vmatpush1.bf16.msra.mxu0 %v5204
    %5931 = vmatprep.subr.bf16.mxu0 %v5212
    %5932 = vmatpush1.bf16.msra.mxu0 %v5211
    %5933 = vmatprep.subr.bf16.mxu0 %v5219
    %5934 = vmatpush1.bf16.msra.mxu0 %v5218
    %5935 = vmatprep.subr.bf16.mxu0 %v5226
    %5936 = vmatpush1.bf16.msra.mxu0 %v5225
    %5937 = vmatprep.subr.bf16.mxu0 %v5233
    %5938 = vmatpush1.bf16.msra.mxu0 %v5232
    %5939 = vmatprep.mubr.bf16.mxu0 %v3502
    %5940 = vmatmul.mubr.bf16.gmra.mrb[0].mxu0 %v3501
    %v5941 = vpop.f32.mrb[0].mxu0
    %v5942 = vadd.f32 %v5901, %v5941
    %v5943 = vpop.f32.mrb[0].mxu0
    %v5944 = vadd.f32 %v5903, %v5943
    %v5945 = vpop.f32.mrb[0].mxu0
    %v5946 = vpop.f32.mrb[0].mxu0
    %5947 = vdwg.mxu0
    %5948 = vmatprep.subr.bf16.mxu0 %v5240
    %5949 = vmatpush1.bf16.msra.mxu0 %v5239
    %5950 = vmatprep.subr.bf16.mxu0 %v5247
    %5951 = vmatpush1.bf16.msra.mxu0 %v5246
    %5952 = vmatprep.subr.bf16.mxu0 %v5254
    %5953 = vmatpush1.bf16.msra.mxu0 %v5253
    %5954 = vmatprep.subr.bf16.mxu0 %v5261
    %5955 = vmatpush1.bf16.msra.mxu0 %v5260
    %5956 = vmatprep.subr.bf16.mxu0 %v5268
    %5957 = vmatpush1.bf16.msra.mxu0 %v5267
    %5958 = vmatprep.subr.bf16.mxu0 %v5275
    %5959 = vmatpush1.bf16.msra.mxu0 %v5274
    %5960 = vmatprep.subr.bf16.mxu0 %v5282
    %5961 = vmatpush1.bf16.msra.mxu0 %v5281
    %5962 = vmatprep.subr.bf16.mxu0 %v5289
    %5963 = vmatpush1.bf16.msra.mxu0 %v5288
    %5964 = vmatprep.subr.bf16.mxu0 %v5296
    %5965 = vmatpush1.bf16.msra.mxu0 %v5295
    %5966 = vmatprep.subr.bf16.mxu0 %v5303
    %5967 = vmatpush1.bf16.msra.mxu0 %v5302
    %5968 = vmatprep.subr.bf16.mxu0 %v5310
    %5969 = vmatpush1.bf16.msra.mxu0 %v5309
    %5970 = vmatprep.subr.bf16.mxu0 %v5317
    %5971 = vmatpush1.bf16.msra.mxu0 %v5316
    %5972 = vmatprep.subr.bf16.mxu0 %v5324
    %5973 = vmatpush1.bf16.msra.mxu0 %v5323
    %5974 = vmatprep.subr.bf16.mxu0 %v5331
    %5975 = vmatpush1.bf16.msra.mxu0 %v5330
    %5976 = vmatprep.subr.bf16.mxu0 %v5338
    %5977 = vmatpush1.bf16.msra.mxu0 %v5337
    %5978 = vmatprep.subr.bf16.mxu0 %v5345
    %5979 = vmatpush1.bf16.msra.mxu0 %v5344
    %5980 = vmatprep.mubr.bf16.mxu0 %v3504
    %5981 = vmatmul.mubr.bf16.gmra.mrb[0].mxu0 %v3503
    %v5982 = vpop.f32.mrb[0].mxu0
    %v5983 = vadd.f32 %v5942, %v5982
    %v5984 = vpop.f32.mrb[0].mxu0
    %v5985 = vadd.f32 %v5944, %v5984
    %v5986 = vpop.f32.mrb[0].mxu0
    %v5987 = vpop.f32.mrb[0].mxu0
    %5988 = vdwg.mxu0
    %5989 = vmatprep.subr.bf16.mxu0 %v5352
    %5990 = vmatpush1.bf16.msra.mxu0 %v5351
    %5991 = vmatprep.subr.bf16.mxu0 0
    %5992 = vmatpush1.bf16.msra.mxu0 0
    %5993 = vmatprep.subr.bf16.mxu0 0
    %5994 = vmatpush1.bf16.msra.mxu0 0
    %5995 = vmatprep.subr.bf16.mxu0 0
    %5996 = vmatpush1.bf16.msra.mxu0 0
    %5997 = vmatprep.subr.bf16.mxu0 0
    %5998 = vmatpush1.bf16.msra.mxu0 0
    %5999 = vmatprep.subr.bf16.mxu0 0
    %6000 = vmatpush1.bf16.msra.mxu0 0
    %6001 = vmatprep.subr.bf16.mxu0 0
    %6002 = vmatpush1.bf16.msra.mxu0 0
    %6003 = vmatprep.subr.bf16.mxu0 0
    %6004 = vmatpush1.bf16.msra.mxu0 0
    %6005 = vmatprep.subr.bf16.mxu0 0
    %6006 = vmatpush1.bf16.msra.mxu0 0
    %6007 = vmatprep.subr.bf16.mxu0 0
    %6008 = vmatpush1.bf16.msra.mxu0 0
    %6009 = vmatprep.subr.bf16.mxu0 0
    %6010 = vmatpush1.bf16.msra.mxu0 0
    %6011 = vmatprep.subr.bf16.mxu0 0
    %6012 = vmatpush1.bf16.msra.mxu0 0
    %6013 = vmatprep.subr.bf16.mxu0 0
    %6014 = vmatpush1.bf16.msra.mxu0 0
    %6015 = vmatprep.subr.bf16.mxu0 0
    %6016 = vmatpush1.bf16.msra.mxu0 0
    %6017 = vmatprep.subr.bf16.mxu0 0
    %6018 = vmatpush1.bf16.msra.mxu0 0
    %6019 = vmatprep.subr.bf16.mxu0 0
    %6020 = vmatpush1.bf16.msra.mxu0 0
    %6021 = vmatprep.mubr.bf16.mxu0 0
    %6022 = vmatmul.mubr.bf16.gmra.mrb[0].mxu0 %v5700
    %v6023 = vpop.f32.mrb[0].mxu0
    %v6024 = vadd.f32 %v5983, %v6023
    %v6025 = vpop.f32.mrb[0].mxu0
    %v6026 = vadd.f32 %v5985, %v6025
    %v6027 = vpop.f32.mrb[0].mxu0
    %v6028 = vpop.f32.mrb[0].mxu0
    %6029 = vdwg.mxu0
    %6030 = vmatprep.subr.bf16.mxu0 %v5018
    %6031 = vmatpush1.bf16.msra.mxu0 %v5017
    %6032 = vmatprep.subr.bf16.mxu0 %v5025
    %6033 = vmatpush1.bf16.msra.mxu0 %v5024
    %6034 = vmatprep.subr.bf16.mxu0 %v5032
    %6035 = vmatpush1.bf16.msra.mxu0 %v5031
    %6036 = vmatprep.subr.bf16.mxu0 %v5039
    %6037 = vmatpush1.bf16.msra.mxu0 %v5038
    %6038 = vmatprep.subr.bf16.mxu0 %v5046
    %6039 = vmatpush1.bf16.msra.mxu0 %v5045
    %6040 = vmatprep.subr.bf16.mxu0 %v5053
    %6041 = vmatpush1.bf16.msra.mxu0 %v5052
    %6042 = vmatprep.subr.bf16.mxu0 %v5060
    %6043 = vmatpush1.bf16.msra.mxu0 %v5059
    %6044 = vmatprep.subr.bf16.mxu0 %v5067
    %6045 = vmatpush1.bf16.msra.mxu0 %v5066
    %6046 = vmatprep.subr.bf16.mxu0 %v5074
    %6047 = vmatpush1.bf16.msra.mxu0 %v5073
    %6048 = vmatprep.subr.bf16.mxu0 %v5081
    %6049 = vmatpush1.bf16.msra.mxu0 %v5080
    %6050 = vmatprep.subr.bf16.mxu0 %v5088
    %6051 = vmatpush1.bf16.msra.mxu0 %v5087
    %6052 = vmatprep.subr.bf16.mxu0 %v5095
    %6053 = vmatpush1.bf16.msra.mxu0 %v5094
    %6054 = vmatprep.subr.bf16.mxu0 %v5102
    %6055 = vmatpush1.bf16.msra.mxu0 %v5101
    %6056 = vmatprep.subr.bf16.mxu0 %v5109
    %6057 = vmatpush1.bf16.msra.mxu0 %v5108
    %6058 = vmatprep.subr.bf16.mxu0 %v5116
    %6059 = vmatpush1.bf16.msra.mxu0 %v5115
    %6060 = vmatprep.subr.bf16.mxu0 %v5123
    %6061 = vmatpush1.bf16.msra.mxu0 %v5122
    %6062 = vmatprep.mubr.bf16.mxu0 %v3500
    %6063 = vmatmul.mubr.bf16.gmra.mrb[0].mxu0 %v3499
    %v6064 = vpop.f32.mrb[0].mxu0
    %v6065 = vadd.f32 %v3919, %v6064
    %v6066 = vpop.f32.mrb[0].mxu0
    %v6067 = vadd.f32 %v3923, %v6066
    %v6068 = vpop.f32.mrb[0].mxu0
    %v6069 = vpop.f32.mrb[0].mxu0
    %6070 = vdwg.mxu0
    %6071 = vmatprep.subr.bf16.mxu0 %v5130
    %6072 = vmatpush1.bf16.msra.mxu0 %v5129
    %6073 = vmatprep.subr.bf16.mxu0 %v5137
    %6074 = vmatpush1.bf16.msra.mxu0 %v5136
    %6075 = vmatprep.subr.bf16.mxu0 %v5144
    %6076 = vmatpush1.bf16.msra.mxu0 %v5143
    %6077 = vmatprep.subr.bf16.mxu0 %v5151
    %6078 = vmatpush1.bf16.msra.mxu0 %v5150
    %6079 = vmatprep.subr.bf16.mxu0 %v5158
    %6080 = vmatpush1.bf16.msra.mxu0 %v5157
    %6081 = vmatprep.subr.bf16.mxu0 %v5165
    %6082 = vmatpush1.bf16.msra.mxu0 %v5164
    %6083 = vmatprep.subr.bf16.mxu0 %v5172
    %6084 = vmatpush1.bf16.msra.mxu0 %v5171
    %6085 = vmatprep.subr.bf16.mxu0 %v5179
    %6086 = vmatpush1.bf16.msra.mxu0 %v5178
    %6087 = vmatprep.subr.bf16.mxu0 %v5186
    %6088 = vmatpush1.bf16.msra.mxu0 %v5185
    %6089 = vmatprep.subr.bf16.mxu0 %v5193
    %6090 = vmatpush1.bf16.msra.mxu0 %v5192
    %6091 = vmatprep.subr.bf16.mxu0 %v5200
    %6092 = vmatpush1.bf16.msra.mxu0 %v5199
    %6093 = vmatprep.subr.bf16.mxu0 %v5207
    %6094 = vmatpush1.bf16.msra.mxu0 %v5206
    %6095 = vmatprep.subr.bf16.mxu0 %v5214
    %6096 = vmatpush1.bf16.msra.mxu0 %v5213
    %6097 = vmatprep.subr.bf16.mxu0 %v5221
    %6098 = vmatpush1.bf16.msra.mxu0 %v5220
    %6099 = vmatprep.subr.bf16.mxu0 %v5228
    %6100 = vmatpush1.bf16.msra.mxu0 %v5227
    %6101 = vmatprep.subr.bf16.mxu0 %v5235
    %6102 = vmatpush1.bf16.msra.mxu0 %v5234
    %6103 = vmatprep.mubr.bf16.mxu0 %v3502
    %6104 = vmatmul.mubr.bf16.gmra.mrb[0].mxu0 %v3501
    %v6105 = vpop.f32.mrb[0].mxu0
    %v6106 = vadd.f32 %v6065, %v6105
    %v6107 = vpop.f32.mrb[0].mxu0
    %v6108 = vadd.f32 %v6067, %v6107
    %v6109 = vpop.f32.mrb[0].mxu0
    %v6110 = vpop.f32.mrb[0].mxu0
    %6111 = vdwg.mxu0
    %6112 = vmatprep.subr.bf16.mxu0 %v5242
    %6113 = vmatpush1.bf16.msra.mxu0 %v5241
    %6114 = vmatprep.subr.bf16.mxu0 %v5249
    %6115 = vmatpush1.bf16.msra.mxu0 %v5248
    %6116 = vmatprep.subr.bf16.mxu0 %v5256
    %6117 = vmatpush1.bf16.msra.mxu0 %v5255
    %6118 = vmatprep.subr.bf16.mxu0 %v5263
    %6119 = vmatpush1.bf16.msra.mxu0 %v5262
    %6120 = vmatprep.subr.bf16.mxu0 %v5270
    %6121 = vmatpush1.bf16.msra.mxu0 %v5269
    %6122 = vmatprep.subr.bf16.mxu0 %v5277
    %6123 = vmatpush1.bf16.msra.mxu0 %v5276
    %6124 = vmatprep.subr.bf16.mxu0 %v5284
    %6125 = vmatpush1.bf16.msra.mxu0 %v5283
    %6126 = vmatprep.subr.bf16.mxu0 %v5291
    %6127 = vmatpush1.bf16.msra.mxu0 %v5290
    %6128 = vmatprep.subr.bf16.mxu0 %v5298
    %6129 = vmatpush1.bf16.msra.mxu0 %v5297
    %6130 = vmatprep.subr.bf16.mxu0 %v5305
    %6131 = vmatpush1.bf16.msra.mxu0 %v5304
    %6132 = vmatprep.subr.bf16.mxu0 %v5312
    %6133 = vmatpush1.bf16.msra.mxu0 %v5311
    %6134 = vmatprep.subr.bf16.mxu0 %v5319
    %6135 = vmatpush1.bf16.msra.mxu0 %v5318
    %6136 = vmatprep.subr.bf16.mxu0 %v5326
    %6137 = vmatpush1.bf16.msra.mxu0 %v5325
    %6138 = vmatprep.subr.bf16.mxu0 %v5333
    %6139 = vmatpush1.bf16.msra.mxu0 %v5332
    %6140 = vmatprep.subr.bf16.mxu0 %v5340
    %6141 = vmatpush1.bf16.msra.mxu0 %v5339
    %6142 = vmatprep.subr.bf16.mxu0 %v5347
    %6143 = vmatpush1.bf16.msra.mxu0 %v5346
    %6144 = vmatprep.mubr.bf16.mxu0 %v3504
    %6145 = vmatmul.mubr.bf16.gmra.mrb[0].mxu0 %v3503
    %v6146 = vpop.f32.mrb[0].mxu0
    %v6147 = vadd.f32 %v6106, %v6146
    %v6148 = vpop.f32.mrb[0].mxu0
    %v6149 = vadd.f32 %v6108, %v6148
    %v6150 = vpop.f32.mrb[0].mxu0
    %v6151 = vpop.f32.mrb[0].mxu0
    %6152 = vdwg.mxu0
    %6153 = vmatprep.subr.bf16.mxu0 %v5354
    %6154 = vmatpush1.bf16.msra.mxu0 %v5353
    %6155 = vmatprep.subr.bf16.mxu0 0
    %6156 = vmatpush1.bf16.msra.mxu0 0
    %6157 = vmatprep.subr.bf16.mxu0 0
    %6158 = vmatpush1.bf16.msra.mxu0 0
    %6159 = vmatprep.subr.bf16.mxu0 0
    %6160 = vmatpush1.bf16.msra.mxu0 0
    %6161 = vmatprep.subr.bf16.mxu0 0
    %6162 = vmatpush1.bf16.msra.mxu0 0
    %6163 = vmatprep.subr.bf16.mxu0 0
    %6164 = vmatpush1.bf16.msra.mxu0 0
    %6165 = vmatprep.subr.bf16.mxu0 0
    %6166 = vmatpush1.bf16.msra.mxu0 0
    %6167 = vmatprep.subr.bf16.mxu0 0
    %6168 = vmatpush1.bf16.msra.mxu0 0
    %6169 = vmatprep.subr.bf16.mxu0 0
    %6170 = vmatpush1.bf16.msra.mxu0 0
    %6171 = vmatprep.subr.bf16.mxu0 0
    %6172 = vmatpush1.bf16.msra.mxu0 0
    %6173 = vmatprep.subr.bf16.mxu0 0
    %6174 = vmatpush1.bf16.msra.mxu0 0
    %6175 = vmatprep.subr.bf16.mxu0 0
    %6176 = vmatpush1.bf16.msra.mxu0 0
    %6177 = vmatprep.subr.bf16.mxu0 0
    %6178 = vmatpush1.bf16.msra.mxu0 0
    %6179 = vmatprep.subr.bf16.mxu0 0
    %6180 = vmatpush1.bf16.msra.mxu0 0
    %6181 = vmatprep.subr.bf16.mxu0 0
    %6182 = vmatpush1.bf16.msra.mxu0 0
    %6183 = vmatprep.subr.bf16.mxu0 0
    %6184 = vmatpush1.bf16.msra.mxu0 0
    %6185 = vmatprep.mubr.bf16.mxu0 0
    %6186 = vmatmul.mubr.bf16.gmra.mrb[0].mxu0 %v5700
    %v6187 = vpop.f32.mrb[0].mxu0
    %v6188 = vadd.f32 %v6147, %v6187
    %v6189 = vpop.f32.mrb[0].mxu0
    %v6190 = vadd.f32 %v6149, %v6189
    %v6191 = vpop.f32.mrb[0].mxu0
    %v6192 = vpop.f32.mrb[0].mxu0
    %6193 = vdwg.mxu0
    %6194 = vmatprep.subr.bf16.mxu0 0
    %6195 = vmatpush1.bf16.msra.mxu0 %v5019
    %6196 = vmatprep.subr.bf16.mxu0 0
    %6197 = vmatpush1.bf16.msra.mxu0 %v5026
    %6198 = vmatprep.subr.bf16.mxu0 0
    %6199 = vmatpush1.bf16.msra.mxu0 %v5033
    %6200 = vmatprep.subr.bf16.mxu0 0
    %6201 = vmatpush1.bf16.msra.mxu0 %v5040
    %6202 = vmatprep.subr.bf16.mxu0 0
    %6203 = vmatpush1.bf16.msra.mxu0 %v5047
    %6204 = vmatprep.subr.bf16.mxu0 0
    %6205 = vmatpush1.bf16.msra.mxu0 %v5054
    %6206 = vmatprep.subr.bf16.mxu0 0
    %6207 = vmatpush1.bf16.msra.mxu0 %v5061
    %6208 = vmatprep.subr.bf16.mxu0 0
    %6209 = vmatpush1.bf16.msra.mxu0 %v5068
    %6210 = vmatprep.subr.bf16.mxu0 0
    %6211 = vmatpush1.bf16.msra.mxu0 %v5075
    %6212 = vmatprep.subr.bf16.mxu0 0
    %6213 = vmatpush1.bf16.msra.mxu0 %v5082
    %6214 = vmatprep.subr.bf16.mxu0 0
    %6215 = vmatpush1.bf16.msra.mxu0 %v5089
    %6216 = vmatprep.subr.bf16.mxu0 0
    %6217 = vmatpush1.bf16.msra.mxu0 %v5096
    %6218 = vmatprep.subr.bf16.mxu0 0
    %6219 = vmatpush1.bf16.msra.mxu0 %v5103
    %6220 = vmatprep.subr.bf16.mxu0 0
    %6221 = vmatpush1.bf16.msra.mxu0 %v5110
    %6222 = vmatprep.subr.bf16.mxu0 0
    %6223 = vmatpush1.bf16.msra.mxu0 %v5117
    %6224 = vmatprep.subr.bf16.mxu0 0
    %6225 = vmatpush1.bf16.msra.mxu0 %v5124
    %6226 = vmatprep.mubr.bf16.mxu0 %v3500
    %6227 = vmatmul.mubr.bf16.gmra.mrb[0].mxu0 %v3499
    %v6228 = vpop.f32.mrb[0].mxu0
    %v6229 = vadd.f32 %v3927, %v6228
    %v6230 = vpop.f32.mrb[0].mxu0
    %v6231 = vpop.f32.mrb[0].mxu0
    %v6232 = vpop.f32.mrb[0].mxu0
    %6233 = vdwg.mxu0
    %6234 = vmatprep.subr.bf16.mxu0 0
    %6235 = vmatpush1.bf16.msra.mxu0 %v5131
    %6236 = vmatprep.subr.bf16.mxu0 0
    %6237 = vmatpush1.bf16.msra.mxu0 %v5138
    %6238 = vmatprep.subr.bf16.mxu0 0
    %6239 = vmatpush1.bf16.msra.mxu0 %v5145
    %6240 = vmatprep.subr.bf16.mxu0 0
    %6241 = vmatpush1.bf16.msra.mxu0 %v5152
    %6242 = vmatprep.subr.bf16.mxu0 0
    %6243 = vmatpush1.bf16.msra.mxu0 %v5159
    %6244 = vmatprep.subr.bf16.mxu0 0
    %6245 = vmatpush1.bf16.msra.mxu0 %v5166
    %6246 = vmatprep.subr.bf16.mxu0 0
    %6247 = vmatpush1.bf16.msra.mxu0 %v5173
    %6248 = vmatprep.subr.bf16.mxu0 0
    %6249 = vmatpush1.bf16.msra.mxu0 %v5180
    %6250 = vmatprep.subr.bf16.mxu0 0
    %6251 = vmatpush1.bf16.msra.mxu0 %v5187
    %6252 = vmatprep.subr.bf16.mxu0 0
    %6253 = vmatpush1.bf16.msra.mxu0 %v5194
    %6254 = vmatprep.subr.bf16.mxu0 0
    %6255 = vmatpush1.bf16.msra.mxu0 %v5201
    %6256 = vmatprep.subr.bf16.mxu0 0
    %6257 = vmatpush1.bf16.msra.mxu0 %v5208
    %6258 = vmatprep.subr.bf16.mxu0 0
    %6259 = vmatpush1.bf16.msra.mxu0 %v5215
    %6260 = vmatprep.subr.bf16.mxu0 0
    %6261 = vmatpush1.bf16.msra.mxu0 %v5222
    %6262 = vmatprep.subr.bf16.mxu0 0
    %6263 = vmatpush1.bf16.msra.mxu0 %v5229
    %6264 = vmatprep.subr.bf16.mxu0 0
    %6265 = vmatpush1.bf16.msra.mxu0 %v5236
    %6266 = vmatprep.mubr.bf16.mxu0 %v3502
    %6267 = vmatmul.mubr.bf16.gmra.mrb[0].mxu0 %v3501
    %v6268 = vpop.f32.mrb[0].mxu0
    %v6269 = vadd.f32 %v6229, %v6268
    %v6270 = vpop.f32.mrb[0].mxu0
    %v6271 = vpop.f32.mrb[0].mxu0
    %v6272 = vpop.f32.mrb[0].mxu0
    %6273 = vdwg.mxu0
    %6274 = vmatprep.subr.bf16.mxu0 0
    %6275 = vmatpush1.bf16.msra.mxu0 %v5243
    %6276 = vmatprep.subr.bf16.mxu0 0
    %6277 = vmatpush1.bf16.msra.mxu0 %v5250
    %6278 = vmatprep.subr.bf16.mxu0 0
    %6279 = vmatpush1.bf16.msra.mxu0 %v5257
    %6280 = vmatprep.subr.bf16.mxu0 0
    %6281 = vmatpush1.bf16.msra.mxu0 %v5264
    %6282 = vmatprep.subr.bf16.mxu0 0
    %6283 = vmatpush1.bf16.msra.mxu0 %v5271
    %6284 = vmatprep.subr.bf16.mxu0 0
    %6285 = vmatpush1.bf16.msra.mxu0 %v5278
    %6286 = vmatprep.subr.bf16.mxu0 0
    %6287 = vmatpush1.bf16.msra.mxu0 %v5285
    %6288 = vmatprep.subr.bf16.mxu0 0
    %6289 = vmatpush1.bf16.msra.mxu0 %v5292
    %6290 = vmatprep.subr.bf16.mxu0 0
    %6291 = vmatpush1.bf16.msra.mxu0 %v5299
    %6292 = vmatprep.subr.bf16.mxu0 0
    %6293 = vmatpush1.bf16.msra.mxu0 %v5306
    %6294 = vmatprep.subr.bf16.mxu0 0
    %6295 = vmatpush1.bf16.msra.mxu0 %v5313
    %6296 = vmatprep.subr.bf16.mxu0 0
    %6297 = vmatpush1.bf16.msra.mxu0 %v5320
    %6298 = vmatprep.subr.bf16.mxu0 0
    %6299 = vmatpush1.bf16.msra.mxu0 %v5327
    %6300 = vmatprep.subr.bf16.mxu0 0
    %6301 = vmatpush1.bf16.msra.mxu0 %v5334
    %6302 = vmatprep.subr.bf16.mxu0 0
    %6303 = vmatpush1.bf16.msra.mxu0 %v5341
    %6304 = vmatprep.subr.bf16.mxu0 0
    %6305 = vmatpush1.bf16.msra.mxu0 %v5348
    %6306 = vmatprep.mubr.bf16.mxu0 %v3504
    %6307 = vmatmul.mubr.bf16.gmra.mrb[0].mxu0 %v3503
    %v6308 = vpop.f32.mrb[0].mxu0
    %v6309 = vadd.f32 %v6269, %v6308
    %v6310 = vpop.f32.mrb[0].mxu0
    %v6311 = vpop.f32.mrb[0].mxu0
    %v6312 = vpop.f32.mrb[0].mxu0
    %6313 = vdwg.mxu0
    %6314 = vmatprep.subr.bf16.mxu0 0
    %6315 = vmatpush1.bf16.msra.mxu0 %v5355
    %6316 = vmatprep.subr.bf16.mxu0 0
    %6317 = vmatpush1.bf16.msra.mxu0 0
    %6318 = vmatprep.subr.bf16.mxu0 0
    %6319 = vmatpush1.bf16.msra.mxu0 0
    %6320 = vmatprep.subr.bf16.mxu0 0
    %6321 = vmatpush1.bf16.msra.mxu0 0
    %6322 = vmatprep.subr.bf16.mxu0 0
    %6323 = vmatpush1.bf16.msra.mxu0 0
    %6324 = vmatprep.subr.bf16.mxu0 0
    %6325 = vmatpush1.bf16.msra.mxu0 0
    %6326 = vmatprep.subr.bf16.mxu0 0
    %6327 = vmatpush1.bf16.msra.mxu0 0
    %6328 = vmatprep.subr.bf16.mxu0 0
    %6329 = vmatpush1.bf16.msra.mxu0 0
    %6330 = vmatprep.subr.bf16.mxu0 0
    %6331 = vmatpush1.bf16.msra.mxu0 0
    %6332 = vmatprep.subr.bf16.mxu0 0
    %6333 = vmatpush1.bf16.msra.mxu0 0
    %6334 = vmatprep.subr.bf16.mxu0 0
    %6335 = vmatpush1.bf16.msra.mxu0 0
    %6336 = vmatprep.subr.bf16.mxu0 0
    %6337 = vmatpush1.bf16.msra.mxu0 0
    %6338 = vmatprep.subr.bf16.mxu0 0
    %6339 = vmatpush1.bf16.msra.mxu0 0
    %6340 = vmatprep.subr.bf16.mxu0 0
    %6341 = vmatpush1.bf16.msra.mxu0 0
    %6342 = vmatprep.subr.bf16.mxu0 0
    %6343 = vmatpush1.bf16.msra.mxu0 0
    %6344 = vmatprep.subr.bf16.mxu0 0
    %6345 = vmatpush1.bf16.msra.mxu0 0
    %6346 = vmatprep.mubr.bf16.mxu0 0
    %6347 = vmatmul.mubr.bf16.gmra.mrb[0].mxu0 %v5700
    %v6348 = vpop.f32.mrb[0].mxu0
    %v6349 = vadd.f32 %v6309, %v6348
    %v6350 = vpop.f32.mrb[0].mxu0
    %v6351 = vpop.f32.mrb[0].mxu0
    %v6352 = vpop.f32.mrb[0].mxu0
    %6353 = vdwg.mxu0
    %v6354 = vtanh.pop %v5860
    %v6355 = vtanh.pop %v5862
    %v6356 = vtanh.pop %v6024
    %v6357 = vtanh.pop %v6026
    %v6358 = vtanh.pop %v6188
    %v6359 = vtanh.pop %v6190
    %v6360 = vtanh.pop %v6349
    %6361 = vst [vmem:[#allocation14] sm:$0xff] %v6354
    %6362 = vst [vmem:[#allocation14 + $0x8] sm:$0xff] %v6355
    %6363 = vst [vmem:[#allocation14 + $0x10] sm:$0xff] %v6356
    %6364 = vst [vmem:[#allocation14 + $0x18] sm:$0xff] %v6357
    %6365 = vst [vmem:[#allocation14 + $0x20] sm:$0xff] %v6358
    %6366 = vst [vmem:[#allocation14 + $0x28] sm:$0xff] %v6359
    %6367 = vst.msk [vmem:[#allocation14 + $0x30] sm:$0xff] %vm2836, %v6360
    // Predicated region
    $region58: #{tpu_custom_call.1} parent=1 // pred_check
      _
    $region59: #{tpu_custom_call.1} parent=1 // pred_check_branch
      %6369 = sbr.rel (0) target = $region61
    $region60: #{tpu_custom_call.1} parent=1 // pred_region
      %s6371 = ssub.s32 896, 896
      %6372 = vsyncadd [#allocation4], %s6371
      %s6374 = sshll.u32 [#allocation14], 4
      %s6375 = int_to_ptr.vmem [resolvable:$true] %s6374
      %6377 = dma.vmem_to_hbm [thread:$0]  %s6375, 896, %s7, [#allocation4]
    $region61: #{tpu_custom_call.1} parent=1 // pred_fallthru
      _
    // Predicated region
    $region62: #{tpu_custom_call.1} parent=1 // pred_check
      _
    $region63: #{tpu_custom_call.1} parent=1 // pred_check_branch
      %6379 = sbr.rel (0) target = $region65
    $region64: #{tpu_custom_call.1} parent=1 // pred_region
      %6380 = dma.done [#allocation4], 896
    $region65: #{tpu_custom_call.1} parent=1 // pred_fallthru
      _
    %6381 = vsyncpa [#allocation3], 1
    %6382 = vsyncpa [#allocation6], 1
    %6383 = vsyncpa [#allocation9], 1
    %6384 = vsyncpa [#allocation12], 1
    %6385 = vsyncpa [#allocation4], 1

</llo_original>
